<compile_context>
chip_gen: v7x
topology: tpu7x:2x2x1
jax: 0.10.0
libtpu: 0.0.40
codegen_flags: <defaults>
</compile_context>

<pallas_src>
import functools
import math

import jax
import jax.numpy as jnp
from jax.experimental import pallas as pl
from jax.experimental.pallas import tpu as pltpu


# --------------------------------------------------------------------------
# Fused kernel: embedding + n_layers transformer layers + projection.
# Processes a batch block of TB elements per grid step; everything stays in VMEM.
# --------------------------------------------------------------------------
def tsfm_kernel(
    x_ref, ew_ref, eb_ref,
    wq_ref, bq_ref, wk_ref, bk_ref, wv_ref, bv_ref, wo_ref, bo_ref,
    ln1w_ref, ln1b_ref, c1w_ref, c1b_ref, c2w_ref, c2b_ref, ln2w_ref, ln2b_ref,
    pw_ref, pb_ref,
    out_ref,
    *, n_heads, dim_k, dim_v, n_layers, norm_fact,
):
    TB, L, d_in = x_ref.shape

    def mm(a, b):
        # bf16 operands feed the MXU at native rate; accumulate in f32.
        return jnp.dot(a.astype(jnp.bfloat16), b.astype(jnp.bfloat16),
                       preferred_element_type=jnp.float32)

    def mm_nt(a, b):
        # a @ b.T without an explicit XLU transpose (contract last dims of both).
        return jax.lax.dot_general(
            a.astype(jnp.bfloat16), b.astype(jnp.bfloat16),
            dimension_numbers=(((1,), (1,)), ((), ())),
            preferred_element_type=jnp.float32)

    def layer_norm(v, w, b, eps=1e-5):
        mu = jnp.mean(v, axis=-1, keepdims=True)
        c = v - mu
        var = jnp.mean(c * c, axis=-1, keepdims=True)
        return c * jax.lax.rsqrt(var + eps) * w + b

    # --- TemporalEmbedding: batch + seq fused into the matmul row dimension.
    h = mm(x_ref[...].reshape(TB * L, d_in), ew_ref[...]) + eb_ref[...]   # (TB*L, D)

    # --- n_layers x _SingleLayerTemporalTSFM (half=False); weights are stacked on axis 0.
    for li in range(n_layers):
        # Q/K/V projections over ALL rows at once (MXU-shaped, bf16).
        q_all = mm(h, wq_ref[li]) + bq_ref[li]          # (TB*L, H*dk)
        k_all = mm(h, wk_ref[li]) + bk_ref[li]          # (TB*L, H*dk)
        v_all = mm(h, wv_ref[li]) + bv_ref[li]          # (TB*L, H*dv)

        # Attention scores are inherently per (batch, head); unroll the small static loops.
        ctx_rows = []
        for b in range(TB):
            rs = b * L
            head_outs = []
            for hd in range(n_heads):
                qh = q_all[rs:rs + L, hd * dim_k:(hd + 1) * dim_k]   # (L, dk)
                kh = k_all[rs:rs + L, hd * dim_k:(hd + 1) * dim_k]   # (L, dk)
                vh = v_all[rs:rs + L, hd * dim_v:(hd + 1) * dim_v]   # (L, dv)
                s = mm_nt(qh, kh) * norm_fact                        # (L, L) f32
                s = s - jnp.max(s, axis=-1, keepdims=True)
                e = jnp.exp(s)
                p = e * pl.reciprocal(jnp.sum(e, axis=-1, keepdims=True))
                head_outs.append(mm(p, vh))                          # (L, dv) f32
            ctx_rows.append(jnp.concatenate(head_outs, axis=-1))     # (L, H*dv)
        ctx = jnp.concatenate(ctx_rows, axis=0)                      # (TB*L, H*dv)

        attn_out = mm(ctx, wo_ref[li]) + bo_ref[li]                  # output projection
        h = layer_norm(h + attn_out, ln1w_ref[li], ln1b_ref[li])     # norm1(x + attn)

        # Feed-forward: Conv1d(kernel_size=1) == per-position Linear.
        y = jnp.maximum(mm(h, c1w_ref[li]) + c1b_ref[li], 0.0)       # relu(conv1)
        y = mm(y, c2w_ref[li]) + c2b_ref[li]                         # conv2
        h = layer_norm(h + y, ln2w_ref[li], ln2b_ref[li])            # norm2(x + y)

    # --- Projection back to d_in.
    out = mm(h, pw_ref[...]) + pb_ref[...]                           # (TB*L, d_in)
    for b in range(TB):                                              # dense per-batch stores
        out_ref[b] = out[b * L:(b + 1) * L, :].astype(out_ref.dtype)


# --------------------------------------------------------------------------
# Wrapper: single pallas_call, grid only over batch blocks ("parallel" axis).
# --------------------------------------------------------------------------
WEIGHT_ORDER = ('embed_w', 'embed_b',
                'wq', 'bq', 'wk', 'bk', 'wv', 'bv', 'wo', 'bo',
                'ln1_w', 'ln1_b', 'c1w', 'c1b', 'c2w', 'c2b', 'ln2_w', 'ln2_b',
                'proj_w', 'proj_b')


def temporal_tsfm_forward(x, params, *, n_heads, dim_k, dim_v, batch_block=8):
    B, L, d_in = x.shape
    d_model = params['embed_w'].shape[1]
    n_layers = params['wq'].shape[0]

    # Largest batch block <= batch_block that divides B (whole batch fused per step
    # when B is small; multiple "parallel" steps when B is large).
    TB = 1
    for cand in range(min(B, batch_block), 0, -1):
        if B % cand == 0:
            TB = cand
            break

    kernel = functools.partial(
        tsfm_kernel, n_heads=n_heads, dim_k=dim_k, dim_v=dim_v,
        n_layers=n_layers, norm_fact=1.0 / math.sqrt(d_model))

    weights = [params[k] for k in WEIGHT_ORDER]

    def invariant_spec(a):
        # Full-array, grid-invariant operand (kept resident; constant index map).
        return pl.BlockSpec(a.shape, lambda b, _n=a.ndim: (0,) * _n)

    in_specs = [pl.BlockSpec((TB, L, d_in), lambda b: (b, 0, 0))]
    in_specs += [invariant_spec(a) for a in weights]

    return pl.pallas_call(
        kernel,
        out_shape=jax.ShapeDtypeStruct((B, L, d_in), jnp.float32),
        grid=(B // TB,),
        in_specs=in_specs,
        out_specs=pl.BlockSpec((TB, L, d_in), lambda b: (b, 0, 0)),
        compiler_params=pltpu.CompilerParams(
            dimension_semantics=("parallel",),
            vmem_limit_bytes=48 * 1024 * 1024),
    )(x, *weights)


# --------------------------------------------------------------------------
# Parameter init (PyTorch-style uniform bounds; weights stored as (in, out)).
# --------------------------------------------------------------------------
def init_params(key, d_in, d_model, dim_k, dim_v, n_heads, dim_fc, n_layers):
    def linear_init(k, fan_in, fan_out):
        kw, kb = jax.random.split(k)
        bound = 1.0 / math.sqrt(fan_in)
        w = jax.random.uniform(kw, (fan_in, fan_out), jnp.float32, -bound, bound)
        b = jax.random.uniform(kb, (1, fan_out), jnp.float32, -bound, bound)
        return w, b

    keys = jax.random.split(key, 2 + n_layers)
    embed_w, embed_b = linear_init(keys[0], d_in, d_model)     # TemporalEmbedding ~ Linear
    proj_w, proj_b = linear_init(keys[1], d_model, d_in)       # projection

    names = ('wq', 'bq', 'wk', 'bk', 'wv', 'bv', 'wo', 'bo',
             'ln1_w', 'ln1_b', 'c1w', 'c1b', 'c2w', 'c2b', 'ln2_w', 'ln2_b')
    per_layer = {n: [] for n in names}
    for li in range(n_layers):
        lk = jax.random.split(keys[2 + li], 8)
        wq, bq = linear_init(lk[0], d_model, dim_k * n_heads)
        wk, bk = linear_init(lk[1], d_model, dim_k * n_heads)
        wv, bv = linear_init(lk[2], d_model, dim_v * n_heads)
        wo, bo = linear_init(lk[3], dim_v * n_heads, d_model)
        c1w, c1b = linear_init(lk[4], d_model, dim_fc)          # Conv1d(d_model, dim_fc, 1)
        c2w, c2b = linear_init(lk[5], dim_fc, d_model)          # Conv1d(dim_fc, d_model, 1)
        ln1_w = 1.0 + 0.1 * jax.random.normal(lk[6], (1, d_model), jnp.float32)
        ln1_b = 0.1 * jax.random.normal(jax.random.fold_in(lk[6], 1), (1, d_model), jnp.float32)
        ln2_w = 1.0 + 0.1 * jax.random.normal(lk[7], (1, d_model), jnp.float32)
        ln2_b = 0.1 * jax.random.normal(jax.random.fold_in(lk[7], 1), (1, d_model), jnp.float32)
        for n, v in zip(names, (wq, bq, wk, bk, wv, bv, wo, bo,
                                ln1_w, ln1_b, c1w, c1b, c2w, c2b, ln2_w, ln2_b)):
            per_layer[n].append(v)

    stacked = {n: jnp.stack(v, axis=0) for n, v in per_layer.items()}
    return dict(embed_w=embed_w, embed_b=embed_b, proj_w=proj_w, proj_b=proj_b, **stacked)


# --------------------------------------------------------------------------
# Pure-JAX reference (PyTorch-faithful). bf16_matmul=True mirrors the kernel's
# MXU precision for a tight implementation check.
# --------------------------------------------------------------------------
def reference_forward(x, params, *, n_heads, dim_k, dim_v, bf16_matmul=False):
    f32 = jnp.float32

    def cast(a):
        return a.astype(jnp.bfloat16) if bf16_matmul else a

    def mm(a, b):
        return jnp.dot(cast(a), cast(b), preferred_element_type=f32)

    def ln(v, w, b, eps=1e-5):
        mu = jnp.mean(v, axis=-1, keepdims=True)
        var = jnp.mean((v - mu) ** 2, axis=-1, keepdims=True)
        return (v - mu) * jax.lax.rsqrt(var + eps) * w + b

    B, L, _ = x.shape
    d_model = params['embed_w'].shape[1]
    n_layers = params['wq'].shape[0]
    norm_fact = 1.0 / math.sqrt(d_model)

    h = mm(x, params['embed_w']) + params['embed_b']
    for li in range(n_layers):
        q = (mm(h, params['wq'][li]) + params['bq'][li]).reshape(B, L, n_heads, dim_k)
        k = (mm(h, params['wk'][li]) + params['bk'][li]).reshape(B, L, n_heads, dim_k)
        v = (mm(h, params['wv'][li]) + params['bv'][li]).reshape(B, L, n_heads, dim_v)
        s = jnp.einsum('blhe,bshe->bhls', cast(q), cast(k),
                       preferred_element_type=f32) * norm_fact
        p = jax.nn.softmax(s, axis=-1)
        o = jnp.einsum('bhls,bshd->blhd', cast(p), cast(v),
                       preferred_element_type=f32).reshape(B, L, n_heads * dim_v)
        attn_out = mm(o, params['wo'][li]) + params['bo'][li]
        h = ln(h + attn_out, params['ln1_w'][li], params['ln1_b'][li])
        y = jax.nn.relu(mm(h, params['c1w'][li]) + params['c1b'][li])
        y = mm(y, params['c2w'][li]) + params['c2b'][li]
        h = ln(h + y, params['ln2_w'][li], params['ln2_b'][li])
    return mm(h, params['proj_w']) + params['proj_b']


if __name__ == "__main__":
    # Small, module-consistent shapes.
    B, L = 2, 16
    d_in, d_model = 8, 32
    dim_k, dim_v, n_heads = 16, 16, 4
    dim_fc, n_layers = 128, 2          # half=False, projection=True

    key = jax.random.PRNGKey(0)
    k_param, k_x = jax.random.split(key)
    params = init_params(k_param, d_in, d_model, dim_k, dim_v, n_heads, dim_fc, n_layers)
    x = jax.random.normal(k_x, (B, L, d_in), jnp.float32)

    out = temporal_tsfm_forward(x, params, n_heads=n_heads, dim_k=dim_k, dim_v=dim_v)
    out = jax.block_until_ready(out)
    assert out.shape == (B, L, d_in)

    # Tight check against a reference using the same bf16-operand / f32-accumulate matmuls.
    ref_bf16 = reference_forward(x, params, n_heads=n_heads, dim_k=dim_k, dim_v=dim_v,
                                 bf16_matmul=True)
    assert jnp.allclose(out, ref_bf16, rtol=5e-3, atol=5e-3), "mismatch vs bf16-matmul reference"

    # Looser sanity check against the full-f32, PyTorch-faithful reference.
    ref_f32 = reference_forward(x, params, n_heads=n_heads, dim_k=dim_k, dim_v=dim_v,
                                bf16_matmul=False)
    assert jnp.allclose(out, ref_f32, rtol=5e-2, atol=5e-2), "mismatch vs f32 reference"

    print("KERNEL_OK")
</pallas_src>

<mosaic_0001>
module attributes {stable_mosaic.version = 11 : i64} {
  func.func @tsfm_kernel(%arg0: i32, %arg1: memref<2x16x8xf32, #tpu.memory_space<vmem>>, %arg2: memref<8x32xf32, #tpu.memory_space<vmem>>, %arg3: memref<1x32xf32, #tpu.memory_space<vmem>>, %arg4: memref<2x32x64xf32, #tpu.memory_space<vmem>>, %arg5: memref<2x1x64xf32, #tpu.memory_space<vmem>>, %arg6: memref<2x32x64xf32, #tpu.memory_space<vmem>>, %arg7: memref<2x1x64xf32, #tpu.memory_space<vmem>>, %arg8: memref<2x32x64xf32, #tpu.memory_space<vmem>>, %arg9: memref<2x1x64xf32, #tpu.memory_space<vmem>>, %arg10: memref<2x64x32xf32, #tpu.memory_space<vmem>>, %arg11: memref<2x1x32xf32, #tpu.memory_space<vmem>>, %arg12: memref<2x1x32xf32, #tpu.memory_space<vmem>>, %arg13: memref<2x1x32xf32, #tpu.memory_space<vmem>>, %arg14: memref<2x32x128xf32, #tpu.memory_space<vmem>>, %arg15: memref<2x1x128xf32, #tpu.memory_space<vmem>>, %arg16: memref<2x128x32xf32, #tpu.memory_space<vmem>>, %arg17: memref<2x1x32xf32, #tpu.memory_space<vmem>>, %arg18: memref<2x1x32xf32, #tpu.memory_space<vmem>>, %arg19: memref<2x1x32xf32, #tpu.memory_space<vmem>>, %arg20: memref<32x8xf32, #tpu.memory_space<vmem>>, %arg21: memref<1x8xf32, #tpu.memory_space<vmem>>, %arg22: memref<2x16x8xf32, #tpu.memory_space<vmem>>) attributes {dimension_semantics = [#tpu.dimension_semantics<parallel>], iteration_bounds = array<i64: 1>, scalar_prefetch = 0 : i64, scratch_operands = 0 : i64, tpu.core_type = #tpu.core_type<tc>, window_params = [{transform_indices = @transform_0, window_bounds = array<i64: 2, 16, 8>}, {pipeline_mode = #tpu.pipeline_mode<synchronous>, transform_indices = @transform_1, window_bounds = array<i64: 8, 32>}, {pipeline_mode = #tpu.pipeline_mode<synchronous>, transform_indices = @transform_2, window_bounds = array<i64: 1, 32>}, {pipeline_mode = #tpu.pipeline_mode<synchronous>, transform_indices = @transform_3, window_bounds = array<i64: 2, 32, 64>}, {pipeline_mode = #tpu.pipeline_mode<synchronous>, transform_indices = @transform_4, window_bounds = array<i64: 2, 1, 64>}, {pipeline_mode = #tpu.pipeline_mode<synchronous>, transform_indices = @transform_5, window_bounds = array<i64: 2, 32, 64>}, {pipeline_mode = #tpu.pipeline_mode<synchronous>, transform_indices = @transform_6, window_bounds = array<i64: 2, 1, 64>}, {pipeline_mode = #tpu.pipeline_mode<synchronous>, transform_indices = @transform_7, window_bounds = array<i64: 2, 32, 64>}, {pipeline_mode = #tpu.pipeline_mode<synchronous>, transform_indices = @transform_8, window_bounds = array<i64: 2, 1, 64>}, {pipeline_mode = #tpu.pipeline_mode<synchronous>, transform_indices = @transform_9, window_bounds = array<i64: 2, 64, 32>}, {pipeline_mode = #tpu.pipeline_mode<synchronous>, transform_indices = @transform_10, window_bounds = array<i64: 2, 1, 32>}, {pipeline_mode = #tpu.pipeline_mode<synchronous>, transform_indices = @transform_11, window_bounds = array<i64: 2, 1, 32>}, {pipeline_mode = #tpu.pipeline_mode<synchronous>, transform_indices = @transform_12, window_bounds = array<i64: 2, 1, 32>}, {pipeline_mode = #tpu.pipeline_mode<synchronous>, transform_indices = @transform_13, window_bounds = array<i64: 2, 32, 128>}, {pipeline_mode = #tpu.pipeline_mode<synchronous>, transform_indices = @transform_14, window_bounds = array<i64: 2, 1, 128>}, {pipeline_mode = #tpu.pipeline_mode<synchronous>, transform_indices = @transform_15, window_bounds = array<i64: 2, 128, 32>}, {pipeline_mode = #tpu.pipeline_mode<synchronous>, transform_indices = @transform_16, window_bounds = array<i64: 2, 1, 32>}, {pipeline_mode = #tpu.pipeline_mode<synchronous>, transform_indices = @transform_17, window_bounds = array<i64: 2, 1, 32>}, {pipeline_mode = #tpu.pipeline_mode<synchronous>, transform_indices = @transform_18, window_bounds = array<i64: 2, 1, 32>}, {pipeline_mode = #tpu.pipeline_mode<synchronous>, transform_indices = @transform_19, window_bounds = array<i64: 32, 8>}, {pipeline_mode = #tpu.pipeline_mode<synchronous>, transform_indices = @transform_20, window_bounds = array<i64: 1, 8>}, {transform_indices = @transform_21, window_bounds = array<i64: 2, 16, 8>}]} {
    %c0 = arith.constant 0 : index
    %c0_0 = arith.constant 0 : index
    %c0_1 = arith.constant 0 : index
    %0 = vector.load %arg1[%c0, %c0_0, %c0_1] : memref<2x16x8xf32, #tpu.memory_space<vmem>>, vector<2x16x8xf32>
    %1 = vector.shape_cast %0 : vector<2x16x8xf32> to vector<32x8xf32>
    %c0_2 = arith.constant 0 : index
    %c0_3 = arith.constant 0 : index
    %2 = vector.load %arg2[%c0_2, %c0_3] : memref<8x32xf32, #tpu.memory_space<vmem>>, vector<8x32xf32>
    %3 = arith.truncf %1 : vector<32x8xf32> to vector<32x8xbf16>
    %4 = arith.truncf %2 : vector<8x32xf32> to vector<8x32xbf16>
    %cst = arith.constant dense<0.000000e+00> : vector<32x32xf32>
    %5 = tpu.matmul %3, %4, %cst {dimension_numbers = #tpu.dot_dimension_numbers<[1], [0], [0], [1], [0, 0, 1, 1], [], []>} : vector<32x8xbf16>, vector<8x32xbf16>, vector<32x32xf32> -> vector<32x32xf32>
    %c0_4 = arith.constant 0 : index
    %c0_5 = arith.constant 0 : index
    %6 = vector.load %arg3[%c0_4, %c0_5] : memref<1x32xf32, #tpu.memory_space<vmem>>, vector<1x32xf32>
    %7 = vector.broadcast %6 : vector<1x32xf32> to vector<32x32xf32>
    %8 = arith.addf %5, %7 : vector<32x32xf32>
    %c0_6 = arith.constant 0 : index
    %c0_7 = arith.constant 0 : index
    %c0_8 = arith.constant 0 : index
    %9 = vector.load %arg4[%c0_6, %c0_7, %c0_8] : memref<2x32x64xf32, #tpu.memory_space<vmem>>, vector<1x32x64xf32>
    %10 = vector.shape_cast %9 : vector<1x32x64xf32> to vector<32x64xf32>
    %11 = arith.truncf %8 : vector<32x32xf32> to vector<32x32xbf16>
    %12 = arith.truncf %10 : vector<32x64xf32> to vector<32x64xbf16>
    %cst_9 = arith.constant dense<0.000000e+00> : vector<32x64xf32>
    %13 = tpu.matmul %11, %12, %cst_9 {dimension_numbers = #tpu.dot_dimension_numbers<[1], [0], [0], [1], [0, 0, 1, 1], [], []>} : vector<32x32xbf16>, vector<32x64xbf16>, vector<32x64xf32> -> vector<32x64xf32>
    %c0_10 = arith.constant 0 : index
    %c0_11 = arith.constant 0 : index
    %c0_12 = arith.constant 0 : index
    %14 = vector.load %arg5[%c0_10, %c0_11, %c0_12] : memref<2x1x64xf32, #tpu.memory_space<vmem>>, vector<1x1x64xf32>
    %15 = vector.shape_cast %14 : vector<1x1x64xf32> to vector<1x64xf32>
    %16 = vector.broadcast %15 : vector<1x64xf32> to vector<32x64xf32>
    %17 = arith.addf %13, %16 : vector<32x64xf32>
    %c0_13 = arith.constant 0 : index
    %c0_14 = arith.constant 0 : index
    %c0_15 = arith.constant 0 : index
    %18 = vector.load %arg6[%c0_13, %c0_14, %c0_15] : memref<2x32x64xf32, #tpu.memory_space<vmem>>, vector<1x32x64xf32>
    %19 = vector.shape_cast %18 : vector<1x32x64xf32> to vector<32x64xf32>
    %20 = arith.truncf %8 : vector<32x32xf32> to vector<32x32xbf16>
    %21 = arith.truncf %19 : vector<32x64xf32> to vector<32x64xbf16>
    %cst_16 = arith.constant dense<0.000000e+00> : vector<32x64xf32>
    %22 = tpu.matmul %20, %21, %cst_16 {dimension_numbers = #tpu.dot_dimension_numbers<[1], [0], [0], [1], [0, 0, 1, 1], [], []>} : vector<32x32xbf16>, vector<32x64xbf16>, vector<32x64xf32> -> vector<32x64xf32>
    %c0_17 = arith.constant 0 : index
    %c0_18 = arith.constant 0 : index
    %c0_19 = arith.constant 0 : index
    %23 = vector.load %arg7[%c0_17, %c0_18, %c0_19] : memref<2x1x64xf32, #tpu.memory_space<vmem>>, vector<1x1x64xf32>
    %24 = vector.shape_cast %23 : vector<1x1x64xf32> to vector<1x64xf32>
    %25 = vector.broadcast %24 : vector<1x64xf32> to vector<32x64xf32>
    %26 = arith.addf %22, %25 : vector<32x64xf32>
    %c0_20 = arith.constant 0 : index
    %c0_21 = arith.constant 0 : index
    %c0_22 = arith.constant 0 : index
    %27 = vector.load %arg8[%c0_20, %c0_21, %c0_22] : memref<2x32x64xf32, #tpu.memory_space<vmem>>, vector<1x32x64xf32>
    %28 = vector.shape_cast %27 : vector<1x32x64xf32> to vector<32x64xf32>
    %29 = arith.truncf %8 : vector<32x32xf32> to vector<32x32xbf16>
    %30 = arith.truncf %28 : vector<32x64xf32> to vector<32x64xbf16>
    %cst_23 = arith.constant dense<0.000000e+00> : vector<32x64xf32>
    %31 = tpu.matmul %29, %30, %cst_23 {dimension_numbers = #tpu.dot_dimension_numbers<[1], [0], [0], [1], [0, 0, 1, 1], [], []>} : vector<32x32xbf16>, vector<32x64xbf16>, vector<32x64xf32> -> vector<32x64xf32>
    %c0_24 = arith.constant 0 : index
    %c0_25 = arith.constant 0 : index
    %c0_26 = arith.constant 0 : index
    %32 = vector.load %arg9[%c0_24, %c0_25, %c0_26] : memref<2x1x64xf32, #tpu.memory_space<vmem>>, vector<1x1x64xf32>
    %33 = vector.shape_cast %32 : vector<1x1x64xf32> to vector<1x64xf32>
    %34 = vector.broadcast %33 : vector<1x64xf32> to vector<32x64xf32>
    %35 = arith.addf %31, %34 : vector<32x64xf32>
    %36 = vector.extract_strided_slice %17 {offsets = [0, 0], sizes = [16, 16], strides = [1, 1]} : vector<32x64xf32> to vector<16x16xf32>
    %37 = vector.extract_strided_slice %26 {offsets = [0, 0], sizes = [16, 16], strides = [1, 1]} : vector<32x64xf32> to vector<16x16xf32>
    %38 = vector.extract_strided_slice %35 {offsets = [0, 0], sizes = [16, 16], strides = [1, 1]} : vector<32x64xf32> to vector<16x16xf32>
    %39 = arith.truncf %36 : vector<16x16xf32> to vector<16x16xbf16>
    %40 = arith.truncf %37 : vector<16x16xf32> to vector<16x16xbf16>
    %cst_27 = arith.constant dense<0.000000e+00> : vector<16x16xf32>
    %41 = tpu.matmul %39, %40, %cst_27 {dimension_numbers = #tpu.dot_dimension_numbers<[1], [1], [0], [0], [0, 0, 1, 0], [], []>} : vector<16x16xbf16>, vector<16x16xbf16>, vector<16x16xf32> -> vector<16x16xf32>
    %cst_28 = arith.constant 0.176776692 : f32
    %42 = vector.broadcast %cst_28 : f32 to vector<16x16xf32>
    %43 = arith.mulf %41, %42 : vector<16x16xf32>
    %cst_29 = arith.constant dense<0xFF800000> : vector<16xf32>
    %44 = vector.multi_reduction <maximumf>, %43, %cst_29 [1] : vector<16x16xf32> to vector<16xf32>
    %45 = vector.shape_cast %44 : vector<16xf32> to vector<16x1xf32>
    %46 = vector.broadcast %45 : vector<16x1xf32> to vector<16x16xf32>
    %47 = arith.subf %43, %46 : vector<16x16xf32>
    %48 = math.exp %47 : vector<16x16xf32>
    %cst_30 = arith.constant dense<0.000000e+00> : vector<16xf32>
    %49 = vector.multi_reduction <add>, %48, %cst_30 [1] : vector<16x16xf32> to vector<16xf32>
    %50 = vector.shape_cast %49 : vector<16xf32> to vector<16x1xf32>
    %51 = tpu.reciprocal %50 : vector<16x1xf32> -> vector<16x1xf32>
    %52 = vector.broadcast %51 : vector<16x1xf32> to vector<16x16xf32>
    %53 = arith.mulf %48, %52 : vector<16x16xf32>
    %54 = arith.truncf %53 : vector<16x16xf32> to vector<16x16xbf16>
    %55 = arith.truncf %38 : vector<16x16xf32> to vector<16x16xbf16>
    %cst_31 = arith.constant dense<0.000000e+00> : vector<16x16xf32>
    %56 = tpu.matmul %54, %55, %cst_31 {dimension_numbers = #tpu.dot_dimension_numbers<[1], [0], [0], [1], [0, 0, 1, 1], [], []>} : vector<16x16xbf16>, vector<16x16xbf16>, vector<16x16xf32> -> vector<16x16xf32>
    %57 = vector.extract_strided_slice %17 {offsets = [0, 16], sizes = [16, 16], strides = [1, 1]} : vector<32x64xf32> to vector<16x16xf32>
    %58 = vector.extract_strided_slice %26 {offsets = [0, 16], sizes = [16, 16], strides = [1, 1]} : vector<32x64xf32> to vector<16x16xf32>
    %59 = vector.extract_strided_slice %35 {offsets = [0, 16], sizes = [16, 16], strides = [1, 1]} : vector<32x64xf32> to vector<16x16xf32>
    %60 = arith.truncf %57 : vector<16x16xf32> to vector<16x16xbf16>
    %61 = arith.truncf %58 : vector<16x16xf32> to vector<16x16xbf16>
    %cst_32 = arith.constant dense<0.000000e+00> : vector<16x16xf32>
    %62 = tpu.matmul %60, %61, %cst_32 {dimension_numbers = #tpu.dot_dimension_numbers<[1], [1], [0], [0], [0, 0, 1, 0], [], []>} : vector<16x16xbf16>, vector<16x16xbf16>, vector<16x16xf32> -> vector<16x16xf32>
    %cst_33 = arith.constant 0.176776692 : f32
    %63 = vector.broadcast %cst_33 : f32 to vector<16x16xf32>
    %64 = arith.mulf %62, %63 : vector<16x16xf32>
    %cst_34 = arith.constant dense<0xFF800000> : vector<16xf32>
    %65 = vector.multi_reduction <maximumf>, %64, %cst_34 [1] : vector<16x16xf32> to vector<16xf32>
    %66 = vector.shape_cast %65 : vector<16xf32> to vector<16x1xf32>
    %67 = vector.broadcast %66 : vector<16x1xf32> to vector<16x16xf32>
    %68 = arith.subf %64, %67 : vector<16x16xf32>
    %69 = math.exp %68 : vector<16x16xf32>
    %cst_35 = arith.constant dense<0.000000e+00> : vector<16xf32>
    %70 = vector.multi_reduction <add>, %69, %cst_35 [1] : vector<16x16xf32> to vector<16xf32>
    %71 = vector.shape_cast %70 : vector<16xf32> to vector<16x1xf32>
    %72 = tpu.reciprocal %71 : vector<16x1xf32> -> vector<16x1xf32>
    %73 = vector.broadcast %72 : vector<16x1xf32> to vector<16x16xf32>
    %74 = arith.mulf %69, %73 : vector<16x16xf32>
    %75 = arith.truncf %74 : vector<16x16xf32> to vector<16x16xbf16>
    %76 = arith.truncf %59 : vector<16x16xf32> to vector<16x16xbf16>
    %cst_36 = arith.constant dense<0.000000e+00> : vector<16x16xf32>
    %77 = tpu.matmul %75, %76, %cst_36 {dimension_numbers = #tpu.dot_dimension_numbers<[1], [0], [0], [1], [0, 0, 1, 1], [], []>} : vector<16x16xbf16>, vector<16x16xbf16>, vector<16x16xf32> -> vector<16x16xf32>
    %78 = vector.extract_strided_slice %17 {offsets = [0, 32], sizes = [16, 16], strides = [1, 1]} : vector<32x64xf32> to vector<16x16xf32>
    %79 = vector.extract_strided_slice %26 {offsets = [0, 32], sizes = [16, 16], strides = [1, 1]} : vector<32x64xf32> to vector<16x16xf32>
    %80 = vector.extract_strided_slice %35 {offsets = [0, 32], sizes = [16, 16], strides = [1, 1]} : vector<32x64xf32> to vector<16x16xf32>
    %81 = arith.truncf %78 : vector<16x16xf32> to vector<16x16xbf16>
    %82 = arith.truncf %79 : vector<16x16xf32> to vector<16x16xbf16>
    %cst_37 = arith.constant dense<0.000000e+00> : vector<16x16xf32>
    %83 = tpu.matmul %81, %82, %cst_37 {dimension_numbers = #tpu.dot_dimension_numbers<[1], [1], [0], [0], [0, 0, 1, 0], [], []>} : vector<16x16xbf16>, vector<16x16xbf16>, vector<16x16xf32> -> vector<16x16xf32>
    %cst_38 = arith.constant 0.176776692 : f32
    %84 = vector.broadcast %cst_38 : f32 to vector<16x16xf32>
    %85 = arith.mulf %83, %84 : vector<16x16xf32>
    %cst_39 = arith.constant dense<0xFF800000> : vector<16xf32>
    %86 = vector.multi_reduction <maximumf>, %85, %cst_39 [1] : vector<16x16xf32> to vector<16xf32>
    %87 = vector.shape_cast %86 : vector<16xf32> to vector<16x1xf32>
    %88 = vector.broadcast %87 : vector<16x1xf32> to vector<16x16xf32>
    %89 = arith.subf %85, %88 : vector<16x16xf32>
    %90 = math.exp %89 : vector<16x16xf32>
    %cst_40 = arith.constant dense<0.000000e+00> : vector<16xf32>
    %91 = vector.multi_reduction <add>, %90, %cst_40 [1] : vector<16x16xf32> to vector<16xf32>
    %92 = vector.shape_cast %91 : vector<16xf32> to vector<16x1xf32>
    %93 = tpu.reciprocal %92 : vector<16x1xf32> -> vector<16x1xf32>
    %94 = vector.broadcast %93 : vector<16x1xf32> to vector<16x16xf32>
    %95 = arith.mulf %90, %94 : vector<16x16xf32>
    %96 = arith.truncf %95 : vector<16x16xf32> to vector<16x16xbf16>
    %97 = arith.truncf %80 : vector<16x16xf32> to vector<16x16xbf16>
    %cst_41 = arith.constant dense<0.000000e+00> : vector<16x16xf32>
    %98 = tpu.matmul %96, %97, %cst_41 {dimension_numbers = #tpu.dot_dimension_numbers<[1], [0], [0], [1], [0, 0, 1, 1], [], []>} : vector<16x16xbf16>, vector<16x16xbf16>, vector<16x16xf32> -> vector<16x16xf32>
    %99 = vector.extract_strided_slice %17 {offsets = [0, 48], sizes = [16, 16], strides = [1, 1]} : vector<32x64xf32> to vector<16x16xf32>
    %100 = vector.extract_strided_slice %26 {offsets = [0, 48], sizes = [16, 16], strides = [1, 1]} : vector<32x64xf32> to vector<16x16xf32>
    %101 = vector.extract_strided_slice %35 {offsets = [0, 48], sizes = [16, 16], strides = [1, 1]} : vector<32x64xf32> to vector<16x16xf32>
    %102 = arith.truncf %99 : vector<16x16xf32> to vector<16x16xbf16>
    %103 = arith.truncf %100 : vector<16x16xf32> to vector<16x16xbf16>
    %cst_42 = arith.constant dense<0.000000e+00> : vector<16x16xf32>
    %104 = tpu.matmul %102, %103, %cst_42 {dimension_numbers = #tpu.dot_dimension_numbers<[1], [1], [0], [0], [0, 0, 1, 0], [], []>} : vector<16x16xbf16>, vector<16x16xbf16>, vector<16x16xf32> -> vector<16x16xf32>
    %cst_43 = arith.constant 0.176776692 : f32
    %105 = vector.broadcast %cst_43 : f32 to vector<16x16xf32>
    %106 = arith.mulf %104, %105 : vector<16x16xf32>
    %cst_44 = arith.constant dense<0xFF800000> : vector<16xf32>
    %107 = vector.multi_reduction <maximumf>, %106, %cst_44 [1] : vector<16x16xf32> to vector<16xf32>
    %108 = vector.shape_cast %107 : vector<16xf32> to vector<16x1xf32>
    %109 = vector.broadcast %108 : vector<16x1xf32> to vector<16x16xf32>
    %110 = arith.subf %106, %109 : vector<16x16xf32>
    %111 = math.exp %110 : vector<16x16xf32>
    %cst_45 = arith.constant dense<0.000000e+00> : vector<16xf32>
    %112 = vector.multi_reduction <add>, %111, %cst_45 [1] : vector<16x16xf32> to vector<16xf32>
    %113 = vector.shape_cast %112 : vector<16xf32> to vector<16x1xf32>
    %114 = tpu.reciprocal %113 : vector<16x1xf32> -> vector<16x1xf32>
    %115 = vector.broadcast %114 : vector<16x1xf32> to vector<16x16xf32>
    %116 = arith.mulf %111, %115 : vector<16x16xf32>
    %117 = arith.truncf %116 : vector<16x16xf32> to vector<16x16xbf16>
    %118 = arith.truncf %101 : vector<16x16xf32> to vector<16x16xbf16>
    %cst_46 = arith.constant dense<0.000000e+00> : vector<16x16xf32>
    %119 = tpu.matmul %117, %118, %cst_46 {dimension_numbers = #tpu.dot_dimension_numbers<[1], [0], [0], [1], [0, 0, 1, 1], [], []>} : vector<16x16xbf16>, vector<16x16xbf16>, vector<16x16xf32> -> vector<16x16xf32>
    %120 = tpu.concatenate %56, %77, %98, %119 in 1 : vector<16x16xf32>, vector<16x16xf32>, vector<16x16xf32>, vector<16x16xf32> -> vector<16x64xf32>
    %121 = vector.extract_strided_slice %17 {offsets = [16, 0], sizes = [16, 16], strides = [1, 1]} : vector<32x64xf32> to vector<16x16xf32>
    %122 = vector.extract_strided_slice %26 {offsets = [16, 0], sizes = [16, 16], strides = [1, 1]} : vector<32x64xf32> to vector<16x16xf32>
    %123 = vector.extract_strided_slice %35 {offsets = [16, 0], sizes = [16, 16], strides = [1, 1]} : vector<32x64xf32> to vector<16x16xf32>
    %124 = arith.truncf %121 : vector<16x16xf32> to vector<16x16xbf16>
    %125 = arith.truncf %122 : vector<16x16xf32> to vector<16x16xbf16>
    %cst_47 = arith.constant dense<0.000000e+00> : vector<16x16xf32>
    %126 = tpu.matmul %124, %125, %cst_47 {dimension_numbers = #tpu.dot_dimension_numbers<[1], [1], [0], [0], [0, 0, 1, 0], [], []>} : vector<16x16xbf16>, vector<16x16xbf16>, vector<16x16xf32> -> vector<16x16xf32>
    %cst_48 = arith.constant 0.176776692 : f32
    %127 = vector.broadcast %cst_48 : f32 to vector<16x16xf32>
    %128 = arith.mulf %126, %127 : vector<16x16xf32>
    %cst_49 = arith.constant dense<0xFF800000> : vector<16xf32>
    %129 = vector.multi_reduction <maximumf>, %128, %cst_49 [1] : vector<16x16xf32> to vector<16xf32>
    %130 = vector.shape_cast %129 : vector<16xf32> to vector<16x1xf32>
    %131 = vector.broadcast %130 : vector<16x1xf32> to vector<16x16xf32>
    %132 = arith.subf %128, %131 : vector<16x16xf32>
    %133 = math.exp %132 : vector<16x16xf32>
    %cst_50 = arith.constant dense<0.000000e+00> : vector<16xf32>
    %134 = vector.multi_reduction <add>, %133, %cst_50 [1] : vector<16x16xf32> to vector<16xf32>
    %135 = vector.shape_cast %134 : vector<16xf32> to vector<16x1xf32>
    %136 = tpu.reciprocal %135 : vector<16x1xf32> -> vector<16x1xf32>
    %137 = vector.broadcast %136 : vector<16x1xf32> to vector<16x16xf32>
    %138 = arith.mulf %133, %137 : vector<16x16xf32>
    %139 = arith.truncf %138 : vector<16x16xf32> to vector<16x16xbf16>
    %140 = arith.truncf %123 : vector<16x16xf32> to vector<16x16xbf16>
    %cst_51 = arith.constant dense<0.000000e+00> : vector<16x16xf32>
    %141 = tpu.matmul %139, %140, %cst_51 {dimension_numbers = #tpu.dot_dimension_numbers<[1], [0], [0], [1], [0, 0, 1, 1], [], []>} : vector<16x16xbf16>, vector<16x16xbf16>, vector<16x16xf32> -> vector<16x16xf32>
    %142 = vector.extract_strided_slice %17 {offsets = [16, 16], sizes = [16, 16], strides = [1, 1]} : vector<32x64xf32> to vector<16x16xf32>
    %143 = vector.extract_strided_slice %26 {offsets = [16, 16], sizes = [16, 16], strides = [1, 1]} : vector<32x64xf32> to vector<16x16xf32>
    %144 = vector.extract_strided_slice %35 {offsets = [16, 16], sizes = [16, 16], strides = [1, 1]} : vector<32x64xf32> to vector<16x16xf32>
    %145 = arith.truncf %142 : vector<16x16xf32> to vector<16x16xbf16>
    %146 = arith.truncf %143 : vector<16x16xf32> to vector<16x16xbf16>
    %cst_52 = arith.constant dense<0.000000e+00> : vector<16x16xf32>
    %147 = tpu.matmul %145, %146, %cst_52 {dimension_numbers = #tpu.dot_dimension_numbers<[1], [1], [0], [0], [0, 0, 1, 0], [], []>} : vector<16x16xbf16>, vector<16x16xbf16>, vector<16x16xf32> -> vector<16x16xf32>
    %cst_53 = arith.constant 0.176776692 : f32
    %148 = vector.broadcast %cst_53 : f32 to vector<16x16xf32>
    %149 = arith.mulf %147, %148 : vector<16x16xf32>
    %cst_54 = arith.constant dense<0xFF800000> : vector<16xf32>
    %150 = vector.multi_reduction <maximumf>, %149, %cst_54 [1] : vector<16x16xf32> to vector<16xf32>
    %151 = vector.shape_cast %150 : vector<16xf32> to vector<16x1xf32>
    %152 = vector.broadcast %151 : vector<16x1xf32> to vector<16x16xf32>
    %153 = arith.subf %149, %152 : vector<16x16xf32>
    %154 = math.exp %153 : vector<16x16xf32>
    %cst_55 = arith.constant dense<0.000000e+00> : vector<16xf32>
    %155 = vector.multi_reduction <add>, %154, %cst_55 [1] : vector<16x16xf32> to vector<16xf32>
    %156 = vector.shape_cast %155 : vector<16xf32> to vector<16x1xf32>
    %157 = tpu.reciprocal %156 : vector<16x1xf32> -> vector<16x1xf32>
    %158 = vector.broadcast %157 : vector<16x1xf32> to vector<16x16xf32>
    %159 = arith.mulf %154, %158 : vector<16x16xf32>
    %160 = arith.truncf %159 : vector<16x16xf32> to vector<16x16xbf16>
    %161 = arith.truncf %144 : vector<16x16xf32> to vector<16x16xbf16>
    %cst_56 = arith.constant dense<0.000000e+00> : vector<16x16xf32>
    %162 = tpu.matmul %160, %161, %cst_56 {dimension_numbers = #tpu.dot_dimension_numbers<[1], [0], [0], [1], [0, 0, 1, 1], [], []>} : vector<16x16xbf16>, vector<16x16xbf16>, vector<16x16xf32> -> vector<16x16xf32>
    %163 = vector.extract_strided_slice %17 {offsets = [16, 32], sizes = [16, 16], strides = [1, 1]} : vector<32x64xf32> to vector<16x16xf32>
    %164 = vector.extract_strided_slice %26 {offsets = [16, 32], sizes = [16, 16], strides = [1, 1]} : vector<32x64xf32> to vector<16x16xf32>
    %165 = vector.extract_strided_slice %35 {offsets = [16, 32], sizes = [16, 16], strides = [1, 1]} : vector<32x64xf32> to vector<16x16xf32>
    %166 = arith.truncf %163 : vector<16x16xf32> to vector<16x16xbf16>
    %167 = arith.truncf %164 : vector<16x16xf32> to vector<16x16xbf16>
    %cst_57 = arith.constant dense<0.000000e+00> : vector<16x16xf32>
    %168 = tpu.matmul %166, %167, %cst_57 {dimension_numbers = #tpu.dot_dimension_numbers<[1], [1], [0], [0], [0, 0, 1, 0], [], []>} : vector<16x16xbf16>, vector<16x16xbf16>, vector<16x16xf32> -> vector<16x16xf32>
    %cst_58 = arith.constant 0.176776692 : f32
    %169 = vector.broadcast %cst_58 : f32 to vector<16x16xf32>
    %170 = arith.mulf %168, %169 : vector<16x16xf32>
    %cst_59 = arith.constant dense<0xFF800000> : vector<16xf32>
    %171 = vector.multi_reduction <maximumf>, %170, %cst_59 [1] : vector<16x16xf32> to vector<16xf32>
    %172 = vector.shape_cast %171 : vector<16xf32> to vector<16x1xf32>
    %173 = vector.broadcast %172 : vector<16x1xf32> to vector<16x16xf32>
    %174 = arith.subf %170, %173 : vector<16x16xf32>
    %175 = math.exp %174 : vector<16x16xf32>
    %cst_60 = arith.constant dense<0.000000e+00> : vector<16xf32>
    %176 = vector.multi_reduction <add>, %175, %cst_60 [1] : vector<16x16xf32> to vector<16xf32>
    %177 = vector.shape_cast %176 : vector<16xf32> to vector<16x1xf32>
    %178 = tpu.reciprocal %177 : vector<16x1xf32> -> vector<16x1xf32>
    %179 = vector.broadcast %178 : vector<16x1xf32> to vector<16x16xf32>
    %180 = arith.mulf %175, %179 : vector<16x16xf32>
    %181 = arith.truncf %180 : vector<16x16xf32> to vector<16x16xbf16>
    %182 = arith.truncf %165 : vector<16x16xf32> to vector<16x16xbf16>
    %cst_61 = arith.constant dense<0.000000e+00> : vector<16x16xf32>
    %183 = tpu.matmul %181, %182, %cst_61 {dimension_numbers = #tpu.dot_dimension_numbers<[1], [0], [0], [1], [0, 0, 1, 1], [], []>} : vector<16x16xbf16>, vector<16x16xbf16>, vector<16x16xf32> -> vector<16x16xf32>
    %184 = vector.extract_strided_slice %17 {offsets = [16, 48], sizes = [16, 16], strides = [1, 1]} : vector<32x64xf32> to vector<16x16xf32>
    %185 = vector.extract_strided_slice %26 {offsets = [16, 48], sizes = [16, 16], strides = [1, 1]} : vector<32x64xf32> to vector<16x16xf32>
    %186 = vector.extract_strided_slice %35 {offsets = [16, 48], sizes = [16, 16], strides = [1, 1]} : vector<32x64xf32> to vector<16x16xf32>
    %187 = arith.truncf %184 : vector<16x16xf32> to vector<16x16xbf16>
    %188 = arith.truncf %185 : vector<16x16xf32> to vector<16x16xbf16>
    %cst_62 = arith.constant dense<0.000000e+00> : vector<16x16xf32>
    %189 = tpu.matmul %187, %188, %cst_62 {dimension_numbers = #tpu.dot_dimension_numbers<[1], [1], [0], [0], [0, 0, 1, 0], [], []>} : vector<16x16xbf16>, vector<16x16xbf16>, vector<16x16xf32> -> vector<16x16xf32>
    %cst_63 = arith.constant 0.176776692 : f32
    %190 = vector.broadcast %cst_63 : f32 to vector<16x16xf32>
    %191 = arith.mulf %189, %190 : vector<16x16xf32>
    %cst_64 = arith.constant dense<0xFF800000> : vector<16xf32>
    %192 = vector.multi_reduction <maximumf>, %191, %cst_64 [1] : vector<16x16xf32> to vector<16xf32>
    %193 = vector.shape_cast %192 : vector<16xf32> to vector<16x1xf32>
    %194 = vector.broadcast %193 : vector<16x1xf32> to vector<16x16xf32>
    %195 = arith.subf %191, %194 : vector<16x16xf32>
    %196 = math.exp %195 : vector<16x16xf32>
    %cst_65 = arith.constant dense<0.000000e+00> : vector<16xf32>
    %197 = vector.multi_reduction <add>, %196, %cst_65 [1] : vector<16x16xf32> to vector<16xf32>
    %198 = vector.shape_cast %197 : vector<16xf32> to vector<16x1xf32>
    %199 = tpu.reciprocal %198 : vector<16x1xf32> -> vector<16x1xf32>
    %200 = vector.broadcast %199 : vector<16x1xf32> to vector<16x16xf32>
    %201 = arith.mulf %196, %200 : vector<16x16xf32>
    %202 = arith.truncf %201 : vector<16x16xf32> to vector<16x16xbf16>
    %203 = arith.truncf %186 : vector<16x16xf32> to vector<16x16xbf16>
    %cst_66 = arith.constant dense<0.000000e+00> : vector<16x16xf32>
    %204 = tpu.matmul %202, %203, %cst_66 {dimension_numbers = #tpu.dot_dimension_numbers<[1], [0], [0], [1], [0, 0, 1, 1], [], []>} : vector<16x16xbf16>, vector<16x16xbf16>, vector<16x16xf32> -> vector<16x16xf32>
    %205 = tpu.concatenate %141, %162, %183, %204 in 1 : vector<16x16xf32>, vector<16x16xf32>, vector<16x16xf32>, vector<16x16xf32> -> vector<16x64xf32>
    %206 = tpu.concatenate %120, %205 in 0 : vector<16x64xf32>, vector<16x64xf32> -> vector<32x64xf32>
    %c0_67 = arith.constant 0 : index
    %c0_68 = arith.constant 0 : index
    %c0_69 = arith.constant 0 : index
    %207 = vector.load %arg10[%c0_67, %c0_68, %c0_69] : memref<2x64x32xf32, #tpu.memory_space<vmem>>, vector<1x64x32xf32>
    %208 = vector.shape_cast %207 : vector<1x64x32xf32> to vector<64x32xf32>
    %209 = arith.truncf %206 : vector<32x64xf32> to vector<32x64xbf16>
    %210 = arith.truncf %208 : vector<64x32xf32> to vector<64x32xbf16>
    %cst_70 = arith.constant dense<0.000000e+00> : vector<32x32xf32>
    %211 = tpu.matmul %209, %210, %cst_70 {dimension_numbers = #tpu.dot_dimension_numbers<[1], [0], [0], [1], [0, 0, 1, 1], [], []>} : vector<32x64xbf16>, vector<64x32xbf16>, vector<32x32xf32> -> vector<32x32xf32>
    %c0_71 = arith.constant 0 : index
    %c0_72 = arith.constant 0 : index
    %c0_73 = arith.constant 0 : index
    %212 = vector.load %arg11[%c0_71, %c0_72, %c0_73] : memref<2x1x32xf32, #tpu.memory_space<vmem>>, vector<1x1x32xf32>
    %213 = vector.shape_cast %212 : vector<1x1x32xf32> to vector<1x32xf32>
    %214 = vector.broadcast %213 : vector<1x32xf32> to vector<32x32xf32>
    %215 = arith.addf %211, %214 : vector<32x32xf32>
    %216 = arith.addf %8, %215 : vector<32x32xf32>
    %c0_74 = arith.constant 0 : index
    %c0_75 = arith.constant 0 : index
    %c0_76 = arith.constant 0 : index
    %217 = vector.load %arg12[%c0_74, %c0_75, %c0_76] : memref<2x1x32xf32, #tpu.memory_space<vmem>>, vector<1x1x32xf32>
    %218 = vector.shape_cast %217 : vector<1x1x32xf32> to vector<1x32xf32>
    %c0_77 = arith.constant 0 : index
    %c0_78 = arith.constant 0 : index
    %c0_79 = arith.constant 0 : index
    %219 = vector.load %arg13[%c0_77, %c0_78, %c0_79] : memref<2x1x32xf32, #tpu.memory_space<vmem>>, vector<1x1x32xf32>
    %220 = vector.shape_cast %219 : vector<1x1x32xf32> to vector<1x32xf32>
    %cst_80 = arith.constant dense<0.000000e+00> : vector<32xf32>
    %221 = vector.multi_reduction <add>, %216, %cst_80 [1] : vector<32x32xf32> to vector<32xf32>
    %222 = vector.shape_cast %221 : vector<32xf32> to vector<32x1xf32>
    %cst_81 = arith.constant 3.200000e+01 : f32
    %223 = vector.broadcast %cst_81 : f32 to vector<32x1xf32>
    %224 = arith.divf %222, %223 : vector<32x1xf32>
    %225 = vector.broadcast %224 : vector<32x1xf32> to vector<32x32xf32>
    %226 = arith.subf %216, %225 : vector<32x32xf32>
    %227 = arith.mulf %226, %226 : vector<32x32xf32>
    %cst_82 = arith.constant dense<0.000000e+00> : vector<32xf32>
    %228 = vector.multi_reduction <add>, %227, %cst_82 [1] : vector<32x32xf32> to vector<32xf32>
    %229 = vector.shape_cast %228 : vector<32xf32> to vector<32x1xf32>
    %cst_83 = arith.constant 3.200000e+01 : f32
    %230 = vector.broadcast %cst_83 : f32 to vector<32x1xf32>
    %231 = arith.divf %229, %230 : vector<32x1xf32>
    %cst_84 = arith.constant 9.99999974E-6 : f32
    %232 = vector.broadcast %cst_84 : f32 to vector<32x1xf32>
    %233 = arith.addf %231, %232 : vector<32x1xf32>
    %234 = math.rsqrt %233 : vector<32x1xf32>
    %235 = vector.broadcast %234 : vector<32x1xf32> to vector<32x32xf32>
    %236 = arith.mulf %226, %235 : vector<32x32xf32>
    %237 = vector.broadcast %218 : vector<1x32xf32> to vector<32x32xf32>
    %238 = arith.mulf %236, %237 : vector<32x32xf32>
    %239 = vector.broadcast %220 : vector<1x32xf32> to vector<32x32xf32>
    %240 = arith.addf %238, %239 : vector<32x32xf32>
    %c0_85 = arith.constant 0 : index
    %c0_86 = arith.constant 0 : index
    %c0_87 = arith.constant 0 : index
    %241 = vector.load %arg14[%c0_85, %c0_86, %c0_87] : memref<2x32x128xf32, #tpu.memory_space<vmem>>, vector<1x32x128xf32>
    %242 = vector.shape_cast %241 : vector<1x32x128xf32> to vector<32x128xf32>
    %243 = arith.truncf %240 : vector<32x32xf32> to vector<32x32xbf16>
    %244 = arith.truncf %242 : vector<32x128xf32> to vector<32x128xbf16>
    %cst_88 = arith.constant dense<0.000000e+00> : vector<32x128xf32>
    %245 = tpu.matmul %243, %244, %cst_88 {dimension_numbers = #tpu.dot_dimension_numbers<[1], [0], [0], [1], [0, 0, 1, 1], [], []>} : vector<32x32xbf16>, vector<32x128xbf16>, vector<32x128xf32> -> vector<32x128xf32>
    %c0_89 = arith.constant 0 : index
    %c0_90 = arith.constant 0 : index
    %c0_91 = arith.constant 0 : index
    %246 = vector.load %arg15[%c0_89, %c0_90, %c0_91] : memref<2x1x128xf32, #tpu.memory_space<vmem>>, vector<1x1x128xf32>
    %247 = vector.shape_cast %246 : vector<1x1x128xf32> to vector<1x128xf32>
    %248 = vector.broadcast %247 : vector<1x128xf32> to vector<32x128xf32>
    %249 = arith.addf %245, %248 : vector<32x128xf32>
    %cst_92 = arith.constant 0.000000e+00 : f32
    %250 = vector.broadcast %cst_92 : f32 to vector<32x128xf32>
    %251 = arith.maximumf %249, %250 : vector<32x128xf32>
    %c0_93 = arith.constant 0 : index
    %c0_94 = arith.constant 0 : index
    %c0_95 = arith.constant 0 : index
    %252 = vector.load %arg16[%c0_93, %c0_94, %c0_95] : memref<2x128x32xf32, #tpu.memory_space<vmem>>, vector<1x128x32xf32>
    %253 = vector.shape_cast %252 : vector<1x128x32xf32> to vector<128x32xf32>
    %254 = arith.truncf %251 : vector<32x128xf32> to vector<32x128xbf16>
    %255 = arith.truncf %253 : vector<128x32xf32> to vector<128x32xbf16>
    %cst_96 = arith.constant dense<0.000000e+00> : vector<32x32xf32>
    %256 = tpu.matmul %254, %255, %cst_96 {dimension_numbers = #tpu.dot_dimension_numbers<[1], [0], [0], [1], [0, 0, 1, 1], [], []>} : vector<32x128xbf16>, vector<128x32xbf16>, vector<32x32xf32> -> vector<32x32xf32>
    %c0_97 = arith.constant 0 : index
    %c0_98 = arith.constant 0 : index
    %c0_99 = arith.constant 0 : index
    %257 = vector.load %arg17[%c0_97, %c0_98, %c0_99] : memref<2x1x32xf32, #tpu.memory_space<vmem>>, vector<1x1x32xf32>
    %258 = vector.shape_cast %257 : vector<1x1x32xf32> to vector<1x32xf32>
    %259 = vector.broadcast %258 : vector<1x32xf32> to vector<32x32xf32>
    %260 = arith.addf %256, %259 : vector<32x32xf32>
    %261 = arith.addf %240, %260 : vector<32x32xf32>
    %c0_100 = arith.constant 0 : index
    %c0_101 = arith.constant 0 : index
    %c0_102 = arith.constant 0 : index
    %262 = vector.load %arg18[%c0_100, %c0_101, %c0_102] : memref<2x1x32xf32, #tpu.memory_space<vmem>>, vector<1x1x32xf32>
    %263 = vector.shape_cast %262 : vector<1x1x32xf32> to vector<1x32xf32>
    %c0_103 = arith.constant 0 : index
    %c0_104 = arith.constant 0 : index
    %c0_105 = arith.constant 0 : index
    %264 = vector.load %arg19[%c0_103, %c0_104, %c0_105] : memref<2x1x32xf32, #tpu.memory_space<vmem>>, vector<1x1x32xf32>
    %265 = vector.shape_cast %264 : vector<1x1x32xf32> to vector<1x32xf32>
    %cst_106 = arith.constant dense<0.000000e+00> : vector<32xf32>
    %266 = vector.multi_reduction <add>, %261, %cst_106 [1] : vector<32x32xf32> to vector<32xf32>
    %267 = vector.shape_cast %266 : vector<32xf32> to vector<32x1xf32>
    %cst_107 = arith.constant 3.200000e+01 : f32
    %268 = vector.broadcast %cst_107 : f32 to vector<32x1xf32>
    %269 = arith.divf %267, %268 : vector<32x1xf32>
    %270 = vector.broadcast %269 : vector<32x1xf32> to vector<32x32xf32>
    %271 = arith.subf %261, %270 : vector<32x32xf32>
    %272 = arith.mulf %271, %271 : vector<32x32xf32>
    %cst_108 = arith.constant dense<0.000000e+00> : vector<32xf32>
    %273 = vector.multi_reduction <add>, %272, %cst_108 [1] : vector<32x32xf32> to vector<32xf32>
    %274 = vector.shape_cast %273 : vector<32xf32> to vector<32x1xf32>
    %cst_109 = arith.constant 3.200000e+01 : f32
    %275 = vector.broadcast %cst_109 : f32 to vector<32x1xf32>
    %276 = arith.divf %274, %275 : vector<32x1xf32>
    %cst_110 = arith.constant 9.99999974E-6 : f32
    %277 = vector.broadcast %cst_110 : f32 to vector<32x1xf32>
    %278 = arith.addf %276, %277 : vector<32x1xf32>
    %279 = math.rsqrt %278 : vector<32x1xf32>
    %280 = vector.broadcast %279 : vector<32x1xf32> to vector<32x32xf32>
    %281 = arith.mulf %271, %280 : vector<32x32xf32>
    %282 = vector.broadcast %263 : vector<1x32xf32> to vector<32x32xf32>
    %283 = arith.mulf %281, %282 : vector<32x32xf32>
    %284 = vector.broadcast %265 : vector<1x32xf32> to vector<32x32xf32>
    %285 = arith.addf %283, %284 : vector<32x32xf32>
    %c1 = arith.constant 1 : index
    %c0_111 = arith.constant 0 : index
    %c0_112 = arith.constant 0 : index
    %286 = vector.load %arg4[%c1, %c0_111, %c0_112] : memref<2x32x64xf32, #tpu.memory_space<vmem>>, vector<1x32x64xf32>
    %287 = vector.shape_cast %286 : vector<1x32x64xf32> to vector<32x64xf32>
    %288 = arith.truncf %285 : vector<32x32xf32> to vector<32x32xbf16>
    %289 = arith.truncf %287 : vector<32x64xf32> to vector<32x64xbf16>
    %cst_113 = arith.constant dense<0.000000e+00> : vector<32x64xf32>
    %290 = tpu.matmul %288, %289, %cst_113 {dimension_numbers = #tpu.dot_dimension_numbers<[1], [0], [0], [1], [0, 0, 1, 1], [], []>} : vector<32x32xbf16>, vector<32x64xbf16>, vector<32x64xf32> -> vector<32x64xf32>
    %c1_114 = arith.constant 1 : index
    %c0_115 = arith.constant 0 : index
    %c0_116 = arith.constant 0 : index
    %291 = vector.load %arg5[%c1_114, %c0_115, %c0_116] : memref<2x1x64xf32, #tpu.memory_space<vmem>>, vector<1x1x64xf32>
    %292 = vector.shape_cast %291 : vector<1x1x64xf32> to vector<1x64xf32>
    %293 = vector.broadcast %292 : vector<1x64xf32> to vector<32x64xf32>
    %294 = arith.addf %290, %293 : vector<32x64xf32>
    %c1_117 = arith.constant 1 : index
    %c0_118 = arith.constant 0 : index
    %c0_119 = arith.constant 0 : index
    %295 = vector.load %arg6[%c1_117, %c0_118, %c0_119] : memref<2x32x64xf32, #tpu.memory_space<vmem>>, vector<1x32x64xf32>
    %296 = vector.shape_cast %295 : vector<1x32x64xf32> to vector<32x64xf32>
    %297 = arith.truncf %285 : vector<32x32xf32> to vector<32x32xbf16>
    %298 = arith.truncf %296 : vector<32x64xf32> to vector<32x64xbf16>
    %cst_120 = arith.constant dense<0.000000e+00> : vector<32x64xf32>
    %299 = tpu.matmul %297, %298, %cst_120 {dimension_numbers = #tpu.dot_dimension_numbers<[1], [0], [0], [1], [0, 0, 1, 1], [], []>} : vector<32x32xbf16>, vector<32x64xbf16>, vector<32x64xf32> -> vector<32x64xf32>
    %c1_121 = arith.constant 1 : index
    %c0_122 = arith.constant 0 : index
    %c0_123 = arith.constant 0 : index
    %300 = vector.load %arg7[%c1_121, %c0_122, %c0_123] : memref<2x1x64xf32, #tpu.memory_space<vmem>>, vector<1x1x64xf32>
    %301 = vector.shape_cast %300 : vector<1x1x64xf32> to vector<1x64xf32>
    %302 = vector.broadcast %301 : vector<1x64xf32> to vector<32x64xf32>
    %303 = arith.addf %299, %302 : vector<32x64xf32>
    %c1_124 = arith.constant 1 : index
    %c0_125 = arith.constant 0 : index
    %c0_126 = arith.constant 0 : index
    %304 = vector.load %arg8[%c1_124, %c0_125, %c0_126] : memref<2x32x64xf32, #tpu.memory_space<vmem>>, vector<1x32x64xf32>
    %305 = vector.shape_cast %304 : vector<1x32x64xf32> to vector<32x64xf32>
    %306 = arith.truncf %285 : vector<32x32xf32> to vector<32x32xbf16>
    %307 = arith.truncf %305 : vector<32x64xf32> to vector<32x64xbf16>
    %cst_127 = arith.constant dense<0.000000e+00> : vector<32x64xf32>
    %308 = tpu.matmul %306, %307, %cst_127 {dimension_numbers = #tpu.dot_dimension_numbers<[1], [0], [0], [1], [0, 0, 1, 1], [], []>} : vector<32x32xbf16>, vector<32x64xbf16>, vector<32x64xf32> -> vector<32x64xf32>
    %c1_128 = arith.constant 1 : index
    %c0_129 = arith.constant 0 : index
    %c0_130 = arith.constant 0 : index
    %309 = vector.load %arg9[%c1_128, %c0_129, %c0_130] : memref<2x1x64xf32, #tpu.memory_space<vmem>>, vector<1x1x64xf32>
    %310 = vector.shape_cast %309 : vector<1x1x64xf32> to vector<1x64xf32>
    %311 = vector.broadcast %310 : vector<1x64xf32> to vector<32x64xf32>
    %312 = arith.addf %308, %311 : vector<32x64xf32>
    %313 = vector.extract_strided_slice %294 {offsets = [0, 0], sizes = [16, 16], strides = [1, 1]} : vector<32x64xf32> to vector<16x16xf32>
    %314 = vector.extract_strided_slice %303 {offsets = [0, 0], sizes = [16, 16], strides = [1, 1]} : vector<32x64xf32> to vector<16x16xf32>
    %315 = vector.extract_strided_slice %312 {offsets = [0, 0], sizes = [16, 16], strides = [1, 1]} : vector<32x64xf32> to vector<16x16xf32>
    %316 = arith.truncf %313 : vector<16x16xf32> to vector<16x16xbf16>
    %317 = arith.truncf %314 : vector<16x16xf32> to vector<16x16xbf16>
    %cst_131 = arith.constant dense<0.000000e+00> : vector<16x16xf32>
    %318 = tpu.matmul %316, %317, %cst_131 {dimension_numbers = #tpu.dot_dimension_numbers<[1], [1], [0], [0], [0, 0, 1, 0], [], []>} : vector<16x16xbf16>, vector<16x16xbf16>, vector<16x16xf32> -> vector<16x16xf32>
    %cst_132 = arith.constant 0.176776692 : f32
    %319 = vector.broadcast %cst_132 : f32 to vector<16x16xf32>
    %320 = arith.mulf %318, %319 : vector<16x16xf32>
    %cst_133 = arith.constant dense<0xFF800000> : vector<16xf32>
    %321 = vector.multi_reduction <maximumf>, %320, %cst_133 [1] : vector<16x16xf32> to vector<16xf32>
    %322 = vector.shape_cast %321 : vector<16xf32> to vector<16x1xf32>
    %323 = vector.broadcast %322 : vector<16x1xf32> to vector<16x16xf32>
    %324 = arith.subf %320, %323 : vector<16x16xf32>
    %325 = math.exp %324 : vector<16x16xf32>
    %cst_134 = arith.constant dense<0.000000e+00> : vector<16xf32>
    %326 = vector.multi_reduction <add>, %325, %cst_134 [1] : vector<16x16xf32> to vector<16xf32>
    %327 = vector.shape_cast %326 : vector<16xf32> to vector<16x1xf32>
    %328 = tpu.reciprocal %327 : vector<16x1xf32> -> vector<16x1xf32>
    %329 = vector.broadcast %328 : vector<16x1xf32> to vector<16x16xf32>
    %330 = arith.mulf %325, %329 : vector<16x16xf32>
    %331 = arith.truncf %330 : vector<16x16xf32> to vector<16x16xbf16>
    %332 = arith.truncf %315 : vector<16x16xf32> to vector<16x16xbf16>
    %cst_135 = arith.constant dense<0.000000e+00> : vector<16x16xf32>
    %333 = tpu.matmul %331, %332, %cst_135 {dimension_numbers = #tpu.dot_dimension_numbers<[1], [0], [0], [1], [0, 0, 1, 1], [], []>} : vector<16x16xbf16>, vector<16x16xbf16>, vector<16x16xf32> -> vector<16x16xf32>
    %334 = vector.extract_strided_slice %294 {offsets = [0, 16], sizes = [16, 16], strides = [1, 1]} : vector<32x64xf32> to vector<16x16xf32>
    %335 = vector.extract_strided_slice %303 {offsets = [0, 16], sizes = [16, 16], strides = [1, 1]} : vector<32x64xf32> to vector<16x16xf32>
    %336 = vector.extract_strided_slice %312 {offsets = [0, 16], sizes = [16, 16], strides = [1, 1]} : vector<32x64xf32> to vector<16x16xf32>
    %337 = arith.truncf %334 : vector<16x16xf32> to vector<16x16xbf16>
    %338 = arith.truncf %335 : vector<16x16xf32> to vector<16x16xbf16>
    %cst_136 = arith.constant dense<0.000000e+00> : vector<16x16xf32>
    %339 = tpu.matmul %337, %338, %cst_136 {dimension_numbers = #tpu.dot_dimension_numbers<[1], [1], [0], [0], [0, 0, 1, 0], [], []>} : vector<16x16xbf16>, vector<16x16xbf16>, vector<16x16xf32> -> vector<16x16xf32>
    %cst_137 = arith.constant 0.176776692 : f32
    %340 = vector.broadcast %cst_137 : f32 to vector<16x16xf32>
    %341 = arith.mulf %339, %340 : vector<16x16xf32>
    %cst_138 = arith.constant dense<0xFF800000> : vector<16xf32>
    %342 = vector.multi_reduction <maximumf>, %341, %cst_138 [1] : vector<16x16xf32> to vector<16xf32>
    %343 = vector.shape_cast %342 : vector<16xf32> to vector<16x1xf32>
    %344 = vector.broadcast %343 : vector<16x1xf32> to vector<16x16xf32>
    %345 = arith.subf %341, %344 : vector<16x16xf32>
    %346 = math.exp %345 : vector<16x16xf32>
    %cst_139 = arith.constant dense<0.000000e+00> : vector<16xf32>
    %347 = vector.multi_reduction <add>, %346, %cst_139 [1] : vector<16x16xf32> to vector<16xf32>
    %348 = vector.shape_cast %347 : vector<16xf32> to vector<16x1xf32>
    %349 = tpu.reciprocal %348 : vector<16x1xf32> -> vector<16x1xf32>
    %350 = vector.broadcast %349 : vector<16x1xf32> to vector<16x16xf32>
    %351 = arith.mulf %346, %350 : vector<16x16xf32>
    %352 = arith.truncf %351 : vector<16x16xf32> to vector<16x16xbf16>
    %353 = arith.truncf %336 : vector<16x16xf32> to vector<16x16xbf16>
    %cst_140 = arith.constant dense<0.000000e+00> : vector<16x16xf32>
    %354 = tpu.matmul %352, %353, %cst_140 {dimension_numbers = #tpu.dot_dimension_numbers<[1], [0], [0], [1], [0, 0, 1, 1], [], []>} : vector<16x16xbf16>, vector<16x16xbf16>, vector<16x16xf32> -> vector<16x16xf32>
    %355 = vector.extract_strided_slice %294 {offsets = [0, 32], sizes = [16, 16], strides = [1, 1]} : vector<32x64xf32> to vector<16x16xf32>
    %356 = vector.extract_strided_slice %303 {offsets = [0, 32], sizes = [16, 16], strides = [1, 1]} : vector<32x64xf32> to vector<16x16xf32>
    %357 = vector.extract_strided_slice %312 {offsets = [0, 32], sizes = [16, 16], strides = [1, 1]} : vector<32x64xf32> to vector<16x16xf32>
    %358 = arith.truncf %355 : vector<16x16xf32> to vector<16x16xbf16>
    %359 = arith.truncf %356 : vector<16x16xf32> to vector<16x16xbf16>
    %cst_141 = arith.constant dense<0.000000e+00> : vector<16x16xf32>
    %360 = tpu.matmul %358, %359, %cst_141 {dimension_numbers = #tpu.dot_dimension_numbers<[1], [1], [0], [0], [0, 0, 1, 0], [], []>} : vector<16x16xbf16>, vector<16x16xbf16>, vector<16x16xf32> -> vector<16x16xf32>
    %cst_142 = arith.constant 0.176776692 : f32
    %361 = vector.broadcast %cst_142 : f32 to vector<16x16xf32>
    %362 = arith.mulf %360, %361 : vector<16x16xf32>
    %cst_143 = arith.constant dense<0xFF800000> : vector<16xf32>
    %363 = vector.multi_reduction <maximumf>, %362, %cst_143 [1] : vector<16x16xf32> to vector<16xf32>
    %364 = vector.shape_cast %363 : vector<16xf32> to vector<16x1xf32>
    %365 = vector.broadcast %364 : vector<16x1xf32> to vector<16x16xf32>
    %366 = arith.subf %362, %365 : vector<16x16xf32>
    %367 = math.exp %366 : vector<16x16xf32>
    %cst_144 = arith.constant dense<0.000000e+00> : vector<16xf32>
    %368 = vector.multi_reduction <add>, %367, %cst_144 [1] : vector<16x16xf32> to vector<16xf32>
    %369 = vector.shape_cast %368 : vector<16xf32> to vector<16x1xf32>
    %370 = tpu.reciprocal %369 : vector<16x1xf32> -> vector<16x1xf32>
    %371 = vector.broadcast %370 : vector<16x1xf32> to vector<16x16xf32>
    %372 = arith.mulf %367, %371 : vector<16x16xf32>
    %373 = arith.truncf %372 : vector<16x16xf32> to vector<16x16xbf16>
    %374 = arith.truncf %357 : vector<16x16xf32> to vector<16x16xbf16>
    %cst_145 = arith.constant dense<0.000000e+00> : vector<16x16xf32>
    %375 = tpu.matmul %373, %374, %cst_145 {dimension_numbers = #tpu.dot_dimension_numbers<[1], [0], [0], [1], [0, 0, 1, 1], [], []>} : vector<16x16xbf16>, vector<16x16xbf16>, vector<16x16xf32> -> vector<16x16xf32>
    %376 = vector.extract_strided_slice %294 {offsets = [0, 48], sizes = [16, 16], strides = [1, 1]} : vector<32x64xf32> to vector<16x16xf32>
    %377 = vector.extract_strided_slice %303 {offsets = [0, 48], sizes = [16, 16], strides = [1, 1]} : vector<32x64xf32> to vector<16x16xf32>
    %378 = vector.extract_strided_slice %312 {offsets = [0, 48], sizes = [16, 16], strides = [1, 1]} : vector<32x64xf32> to vector<16x16xf32>
    %379 = arith.truncf %376 : vector<16x16xf32> to vector<16x16xbf16>
    %380 = arith.truncf %377 : vector<16x16xf32> to vector<16x16xbf16>
    %cst_146 = arith.constant dense<0.000000e+00> : vector<16x16xf32>
    %381 = tpu.matmul %379, %380, %cst_146 {dimension_numbers = #tpu.dot_dimension_numbers<[1], [1], [0], [0], [0, 0, 1, 0], [], []>} : vector<16x16xbf16>, vector<16x16xbf16>, vector<16x16xf32> -> vector<16x16xf32>
    %cst_147 = arith.constant 0.176776692 : f32
    %382 = vector.broadcast %cst_147 : f32 to vector<16x16xf32>
    %383 = arith.mulf %381, %382 : vector<16x16xf32>
    %cst_148 = arith.constant dense<0xFF800000> : vector<16xf32>
    %384 = vector.multi_reduction <maximumf>, %383, %cst_148 [1] : vector<16x16xf32> to vector<16xf32>
    %385 = vector.shape_cast %384 : vector<16xf32> to vector<16x1xf32>
    %386 = vector.broadcast %385 : vector<16x1xf32> to vector<16x16xf32>
    %387 = arith.subf %383, %386 : vector<16x16xf32>
    %388 = math.exp %387 : vector<16x16xf32>
    %cst_149 = arith.constant dense<0.000000e+00> : vector<16xf32>
    %389 = vector.multi_reduction <add>, %388, %cst_149 [1] : vector<16x16xf32> to vector<16xf32>
    %390 = vector.shape_cast %389 : vector<16xf32> to vector<16x1xf32>
    %391 = tpu.reciprocal %390 : vector<16x1xf32> -> vector<16x1xf32>
    %392 = vector.broadcast %391 : vector<16x1xf32> to vector<16x16xf32>
    %393 = arith.mulf %388, %392 : vector<16x16xf32>
    %394 = arith.truncf %393 : vector<16x16xf32> to vector<16x16xbf16>
    %395 = arith.truncf %378 : vector<16x16xf32> to vector<16x16xbf16>
    %cst_150 = arith.constant dense<0.000000e+00> : vector<16x16xf32>
    %396 = tpu.matmul %394, %395, %cst_150 {dimension_numbers = #tpu.dot_dimension_numbers<[1], [0], [0], [1], [0, 0, 1, 1], [], []>} : vector<16x16xbf16>, vector<16x16xbf16>, vector<16x16xf32> -> vector<16x16xf32>
    %397 = tpu.concatenate %333, %354, %375, %396 in 1 : vector<16x16xf32>, vector<16x16xf32>, vector<16x16xf32>, vector<16x16xf32> -> vector<16x64xf32>
    %398 = vector.extract_strided_slice %294 {offsets = [16, 0], sizes = [16, 16], strides = [1, 1]} : vector<32x64xf32> to vector<16x16xf32>
    %399 = vector.extract_strided_slice %303 {offsets = [16, 0], sizes = [16, 16], strides = [1, 1]} : vector<32x64xf32> to vector<16x16xf32>
    %400 = vector.extract_strided_slice %312 {offsets = [16, 0], sizes = [16, 16], strides = [1, 1]} : vector<32x64xf32> to vector<16x16xf32>
    %401 = arith.truncf %398 : vector<16x16xf32> to vector<16x16xbf16>
    %402 = arith.truncf %399 : vector<16x16xf32> to vector<16x16xbf16>
    %cst_151 = arith.constant dense<0.000000e+00> : vector<16x16xf32>
    %403 = tpu.matmul %401, %402, %cst_151 {dimension_numbers = #tpu.dot_dimension_numbers<[1], [1], [0], [0], [0, 0, 1, 0], [], []>} : vector<16x16xbf16>, vector<16x16xbf16>, vector<16x16xf32> -> vector<16x16xf32>
    %cst_152 = arith.constant 0.176776692 : f32
    %404 = vector.broadcast %cst_152 : f32 to vector<16x16xf32>
    %405 = arith.mulf %403, %404 : vector<16x16xf32>
    %cst_153 = arith.constant dense<0xFF800000> : vector<16xf32>
    %406 = vector.multi_reduction <maximumf>, %405, %cst_153 [1] : vector<16x16xf32> to vector<16xf32>
    %407 = vector.shape_cast %406 : vector<16xf32> to vector<16x1xf32>
    %408 = vector.broadcast %407 : vector<16x1xf32> to vector<16x16xf32>
    %409 = arith.subf %405, %408 : vector<16x16xf32>
    %410 = math.exp %409 : vector<16x16xf32>
    %cst_154 = arith.constant dense<0.000000e+00> : vector<16xf32>
    %411 = vector.multi_reduction <add>, %410, %cst_154 [1] : vector<16x16xf32> to vector<16xf32>
    %412 = vector.shape_cast %411 : vector<16xf32> to vector<16x1xf32>
    %413 = tpu.reciprocal %412 : vector<16x1xf32> -> vector<16x1xf32>
    %414 = vector.broadcast %413 : vector<16x1xf32> to vector<16x16xf32>
    %415 = arith.mulf %410, %414 : vector<16x16xf32>
    %416 = arith.truncf %415 : vector<16x16xf32> to vector<16x16xbf16>
    %417 = arith.truncf %400 : vector<16x16xf32> to vector<16x16xbf16>
    %cst_155 = arith.constant dense<0.000000e+00> : vector<16x16xf32>
    %418 = tpu.matmul %416, %417, %cst_155 {dimension_numbers = #tpu.dot_dimension_numbers<[1], [0], [0], [1], [0, 0, 1, 1], [], []>} : vector<16x16xbf16>, vector<16x16xbf16>, vector<16x16xf32> -> vector<16x16xf32>
    %419 = vector.extract_strided_slice %294 {offsets = [16, 16], sizes = [16, 16], strides = [1, 1]} : vector<32x64xf32> to vector<16x16xf32>
    %420 = vector.extract_strided_slice %303 {offsets = [16, 16], sizes = [16, 16], strides = [1, 1]} : vector<32x64xf32> to vector<16x16xf32>
    %421 = vector.extract_strided_slice %312 {offsets = [16, 16], sizes = [16, 16], strides = [1, 1]} : vector<32x64xf32> to vector<16x16xf32>
    %422 = arith.truncf %419 : vector<16x16xf32> to vector<16x16xbf16>
    %423 = arith.truncf %420 : vector<16x16xf32> to vector<16x16xbf16>
    %cst_156 = arith.constant dense<0.000000e+00> : vector<16x16xf32>
    %424 = tpu.matmul %422, %423, %cst_156 {dimension_numbers = #tpu.dot_dimension_numbers<[1], [1], [0], [0], [0, 0, 1, 0], [], []>} : vector<16x16xbf16>, vector<16x16xbf16>, vector<16x16xf32> -> vector<16x16xf32>
    %cst_157 = arith.constant 0.176776692 : f32
    %425 = vector.broadcast %cst_157 : f32 to vector<16x16xf32>
    %426 = arith.mulf %424, %425 : vector<16x16xf32>
    %cst_158 = arith.constant dense<0xFF800000> : vector<16xf32>
    %427 = vector.multi_reduction <maximumf>, %426, %cst_158 [1] : vector<16x16xf32> to vector<16xf32>
    %428 = vector.shape_cast %427 : vector<16xf32> to vector<16x1xf32>
    %429 = vector.broadcast %428 : vector<16x1xf32> to vector<16x16xf32>
    %430 = arith.subf %426, %429 : vector<16x16xf32>
    %431 = math.exp %430 : vector<16x16xf32>
    %cst_159 = arith.constant dense<0.000000e+00> : vector<16xf32>
    %432 = vector.multi_reduction <add>, %431, %cst_159 [1] : vector<16x16xf32> to vector<16xf32>
    %433 = vector.shape_cast %432 : vector<16xf32> to vector<16x1xf32>
    %434 = tpu.reciprocal %433 : vector<16x1xf32> -> vector<16x1xf32>
    %435 = vector.broadcast %434 : vector<16x1xf32> to vector<16x16xf32>
    %436 = arith.mulf %431, %435 : vector<16x16xf32>
    %437 = arith.truncf %436 : vector<16x16xf32> to vector<16x16xbf16>
    %438 = arith.truncf %421 : vector<16x16xf32> to vector<16x16xbf16>
    %cst_160 = arith.constant dense<0.000000e+00> : vector<16x16xf32>
    %439 = tpu.matmul %437, %438, %cst_160 {dimension_numbers = #tpu.dot_dimension_numbers<[1], [0], [0], [1], [0, 0, 1, 1], [], []>} : vector<16x16xbf16>, vector<16x16xbf16>, vector<16x16xf32> -> vector<16x16xf32>
    %440 = vector.extract_strided_slice %294 {offsets = [16, 32], sizes = [16, 16], strides = [1, 1]} : vector<32x64xf32> to vector<16x16xf32>
    %441 = vector.extract_strided_slice %303 {offsets = [16, 32], sizes = [16, 16], strides = [1, 1]} : vector<32x64xf32> to vector<16x16xf32>
    %442 = vector.extract_strided_slice %312 {offsets = [16, 32], sizes = [16, 16], strides = [1, 1]} : vector<32x64xf32> to vector<16x16xf32>
    %443 = arith.truncf %440 : vector<16x16xf32> to vector<16x16xbf16>
    %444 = arith.truncf %441 : vector<16x16xf32> to vector<16x16xbf16>
    %cst_161 = arith.constant dense<0.000000e+00> : vector<16x16xf32>
    %445 = tpu.matmul %443, %444, %cst_161 {dimension_numbers = #tpu.dot_dimension_numbers<[1], [1], [0], [0], [0, 0, 1, 0], [], []>} : vector<16x16xbf16>, vector<16x16xbf16>, vector<16x16xf32> -> vector<16x16xf32>
    %cst_162 = arith.constant 0.176776692 : f32
    %446 = vector.broadcast %cst_162 : f32 to vector<16x16xf32>
    %447 = arith.mulf %445, %446 : vector<16x16xf32>
    %cst_163 = arith.constant dense<0xFF800000> : vector<16xf32>
    %448 = vector.multi_reduction <maximumf>, %447, %cst_163 [1] : vector<16x16xf32> to vector<16xf32>
    %449 = vector.shape_cast %448 : vector<16xf32> to vector<16x1xf32>
    %450 = vector.broadcast %449 : vector<16x1xf32> to vector<16x16xf32>
    %451 = arith.subf %447, %450 : vector<16x16xf32>
    %452 = math.exp %451 : vector<16x16xf32>
    %cst_164 = arith.constant dense<0.000000e+00> : vector<16xf32>
    %453 = vector.multi_reduction <add>, %452, %cst_164 [1] : vector<16x16xf32> to vector<16xf32>
    %454 = vector.shape_cast %453 : vector<16xf32> to vector<16x1xf32>
    %455 = tpu.reciprocal %454 : vector<16x1xf32> -> vector<16x1xf32>
    %456 = vector.broadcast %455 : vector<16x1xf32> to vector<16x16xf32>
    %457 = arith.mulf %452, %456 : vector<16x16xf32>
    %458 = arith.truncf %457 : vector<16x16xf32> to vector<16x16xbf16>
    %459 = arith.truncf %442 : vector<16x16xf32> to vector<16x16xbf16>
    %cst_165 = arith.constant dense<0.000000e+00> : vector<16x16xf32>
    %460 = tpu.matmul %458, %459, %cst_165 {dimension_numbers = #tpu.dot_dimension_numbers<[1], [0], [0], [1], [0, 0, 1, 1], [], []>} : vector<16x16xbf16>, vector<16x16xbf16>, vector<16x16xf32> -> vector<16x16xf32>
    %461 = vector.extract_strided_slice %294 {offsets = [16, 48], sizes = [16, 16], strides = [1, 1]} : vector<32x64xf32> to vector<16x16xf32>
    %462 = vector.extract_strided_slice %303 {offsets = [16, 48], sizes = [16, 16], strides = [1, 1]} : vector<32x64xf32> to vector<16x16xf32>
    %463 = vector.extract_strided_slice %312 {offsets = [16, 48], sizes = [16, 16], strides = [1, 1]} : vector<32x64xf32> to vector<16x16xf32>
    %464 = arith.truncf %461 : vector<16x16xf32> to vector<16x16xbf16>
    %465 = arith.truncf %462 : vector<16x16xf32> to vector<16x16xbf16>
    %cst_166 = arith.constant dense<0.000000e+00> : vector<16x16xf32>
    %466 = tpu.matmul %464, %465, %cst_166 {dimension_numbers = #tpu.dot_dimension_numbers<[1], [1], [0], [0], [0, 0, 1, 0], [], []>} : vector<16x16xbf16>, vector<16x16xbf16>, vector<16x16xf32> -> vector<16x16xf32>
    %cst_167 = arith.constant 0.176776692 : f32
    %467 = vector.broadcast %cst_167 : f32 to vector<16x16xf32>
    %468 = arith.mulf %466, %467 : vector<16x16xf32>
    %cst_168 = arith.constant dense<0xFF800000> : vector<16xf32>
    %469 = vector.multi_reduction <maximumf>, %468, %cst_168 [1] : vector<16x16xf32> to vector<16xf32>
    %470 = vector.shape_cast %469 : vector<16xf32> to vector<16x1xf32>
    %471 = vector.broadcast %470 : vector<16x1xf32> to vector<16x16xf32>
    %472 = arith.subf %468, %471 : vector<16x16xf32>
    %473 = math.exp %472 : vector<16x16xf32>
    %cst_169 = arith.constant dense<0.000000e+00> : vector<16xf32>
    %474 = vector.multi_reduction <add>, %473, %cst_169 [1] : vector<16x16xf32> to vector<16xf32>
    %475 = vector.shape_cast %474 : vector<16xf32> to vector<16x1xf32>
    %476 = tpu.reciprocal %475 : vector<16x1xf32> -> vector<16x1xf32>
    %477 = vector.broadcast %476 : vector<16x1xf32> to vector<16x16xf32>
    %478 = arith.mulf %473, %477 : vector<16x16xf32>
    %479 = arith.truncf %478 : vector<16x16xf32> to vector<16x16xbf16>
    %480 = arith.truncf %463 : vector<16x16xf32> to vector<16x16xbf16>
    %cst_170 = arith.constant dense<0.000000e+00> : vector<16x16xf32>
    %481 = tpu.matmul %479, %480, %cst_170 {dimension_numbers = #tpu.dot_dimension_numbers<[1], [0], [0], [1], [0, 0, 1, 1], [], []>} : vector<16x16xbf16>, vector<16x16xbf16>, vector<16x16xf32> -> vector<16x16xf32>
    %482 = tpu.concatenate %418, %439, %460, %481 in 1 : vector<16x16xf32>, vector<16x16xf32>, vector<16x16xf32>, vector<16x16xf32> -> vector<16x64xf32>
    %483 = tpu.concatenate %397, %482 in 0 : vector<16x64xf32>, vector<16x64xf32> -> vector<32x64xf32>
    %c1_171 = arith.constant 1 : index
    %c0_172 = arith.constant 0 : index
    %c0_173 = arith.constant 0 : index
    %484 = vector.load %arg10[%c1_171, %c0_172, %c0_173] : memref<2x64x32xf32, #tpu.memory_space<vmem>>, vector<1x64x32xf32>
    %485 = vector.shape_cast %484 : vector<1x64x32xf32> to vector<64x32xf32>
    %486 = arith.truncf %483 : vector<32x64xf32> to vector<32x64xbf16>
    %487 = arith.truncf %485 : vector<64x32xf32> to vector<64x32xbf16>
    %cst_174 = arith.constant dense<0.000000e+00> : vector<32x32xf32>
    %488 = tpu.matmul %486, %487, %cst_174 {dimension_numbers = #tpu.dot_dimension_numbers<[1], [0], [0], [1], [0, 0, 1, 1], [], []>} : vector<32x64xbf16>, vector<64x32xbf16>, vector<32x32xf32> -> vector<32x32xf32>
    %c1_175 = arith.constant 1 : index
    %c0_176 = arith.constant 0 : index
    %c0_177 = arith.constant 0 : index
    %489 = vector.load %arg11[%c1_175, %c0_176, %c0_177] : memref<2x1x32xf32, #tpu.memory_space<vmem>>, vector<1x1x32xf32>
    %490 = vector.shape_cast %489 : vector<1x1x32xf32> to vector<1x32xf32>
    %491 = vector.broadcast %490 : vector<1x32xf32> to vector<32x32xf32>
    %492 = arith.addf %488, %491 : vector<32x32xf32>
    %493 = arith.addf %285, %492 : vector<32x32xf32>
    %c1_178 = arith.constant 1 : index
    %c0_179 = arith.constant 0 : index
    %c0_180 = arith.constant 0 : index
    %494 = vector.load %arg12[%c1_178, %c0_179, %c0_180] : memref<2x1x32xf32, #tpu.memory_space<vmem>>, vector<1x1x32xf32>
    %495 = vector.shape_cast %494 : vector<1x1x32xf32> to vector<1x32xf32>
    %c1_181 = arith.constant 1 : index
    %c0_182 = arith.constant 0 : index
    %c0_183 = arith.constant 0 : index
    %496 = vector.load %arg13[%c1_181, %c0_182, %c0_183] : memref<2x1x32xf32, #tpu.memory_space<vmem>>, vector<1x1x32xf32>
    %497 = vector.shape_cast %496 : vector<1x1x32xf32> to vector<1x32xf32>
    %cst_184 = arith.constant dense<0.000000e+00> : vector<32xf32>
    %498 = vector.multi_reduction <add>, %493, %cst_184 [1] : vector<32x32xf32> to vector<32xf32>
    %499 = vector.shape_cast %498 : vector<32xf32> to vector<32x1xf32>
    %cst_185 = arith.constant 3.200000e+01 : f32
    %500 = vector.broadcast %cst_185 : f32 to vector<32x1xf32>
    %501 = arith.divf %499, %500 : vector<32x1xf32>
    %502 = vector.broadcast %501 : vector<32x1xf32> to vector<32x32xf32>
    %503 = arith.subf %493, %502 : vector<32x32xf32>
    %504 = arith.mulf %503, %503 : vector<32x32xf32>
    %cst_186 = arith.constant dense<0.000000e+00> : vector<32xf32>
    %505 = vector.multi_reduction <add>, %504, %cst_186 [1] : vector<32x32xf32> to vector<32xf32>
    %506 = vector.shape_cast %505 : vector<32xf32> to vector<32x1xf32>
    %cst_187 = arith.constant 3.200000e+01 : f32
    %507 = vector.broadcast %cst_187 : f32 to vector<32x1xf32>
    %508 = arith.divf %506, %507 : vector<32x1xf32>
    %cst_188 = arith.constant 9.99999974E-6 : f32
    %509 = vector.broadcast %cst_188 : f32 to vector<32x1xf32>
    %510 = arith.addf %508, %509 : vector<32x1xf32>
    %511 = math.rsqrt %510 : vector<32x1xf32>
    %512 = vector.broadcast %511 : vector<32x1xf32> to vector<32x32xf32>
    %513 = arith.mulf %503, %512 : vector<32x32xf32>
    %514 = vector.broadcast %495 : vector<1x32xf32> to vector<32x32xf32>
    %515 = arith.mulf %513, %514 : vector<32x32xf32>
    %516 = vector.broadcast %497 : vector<1x32xf32> to vector<32x32xf32>
    %517 = arith.addf %515, %516 : vector<32x32xf32>
    %c1_189 = arith.constant 1 : index
    %c0_190 = arith.constant 0 : index
    %c0_191 = arith.constant 0 : index
    %518 = vector.load %arg14[%c1_189, %c0_190, %c0_191] : memref<2x32x128xf32, #tpu.memory_space<vmem>>, vector<1x32x128xf32>
    %519 = vector.shape_cast %518 : vector<1x32x128xf32> to vector<32x128xf32>
    %520 = arith.truncf %517 : vector<32x32xf32> to vector<32x32xbf16>
    %521 = arith.truncf %519 : vector<32x128xf32> to vector<32x128xbf16>
    %cst_192 = arith.constant dense<0.000000e+00> : vector<32x128xf32>
    %522 = tpu.matmul %520, %521, %cst_192 {dimension_numbers = #tpu.dot_dimension_numbers<[1], [0], [0], [1], [0, 0, 1, 1], [], []>} : vector<32x32xbf16>, vector<32x128xbf16>, vector<32x128xf32> -> vector<32x128xf32>
    %c1_193 = arith.constant 1 : index
    %c0_194 = arith.constant 0 : index
    %c0_195 = arith.constant 0 : index
    %523 = vector.load %arg15[%c1_193, %c0_194, %c0_195] : memref<2x1x128xf32, #tpu.memory_space<vmem>>, vector<1x1x128xf32>
    %524 = vector.shape_cast %523 : vector<1x1x128xf32> to vector<1x128xf32>
    %525 = vector.broadcast %524 : vector<1x128xf32> to vector<32x128xf32>
    %526 = arith.addf %522, %525 : vector<32x128xf32>
    %cst_196 = arith.constant 0.000000e+00 : f32
    %527 = vector.broadcast %cst_196 : f32 to vector<32x128xf32>
    %528 = arith.maximumf %526, %527 : vector<32x128xf32>
    %c1_197 = arith.constant 1 : index
    %c0_198 = arith.constant 0 : index
    %c0_199 = arith.constant 0 : index
    %529 = vector.load %arg16[%c1_197, %c0_198, %c0_199] : memref<2x128x32xf32, #tpu.memory_space<vmem>>, vector<1x128x32xf32>
    %530 = vector.shape_cast %529 : vector<1x128x32xf32> to vector<128x32xf32>
    %531 = arith.truncf %528 : vector<32x128xf32> to vector<32x128xbf16>
    %532 = arith.truncf %530 : vector<128x32xf32> to vector<128x32xbf16>
    %cst_200 = arith.constant dense<0.000000e+00> : vector<32x32xf32>
    %533 = tpu.matmul %531, %532, %cst_200 {dimension_numbers = #tpu.dot_dimension_numbers<[1], [0], [0], [1], [0, 0, 1, 1], [], []>} : vector<32x128xbf16>, vector<128x32xbf16>, vector<32x32xf32> -> vector<32x32xf32>
    %c1_201 = arith.constant 1 : index
    %c0_202 = arith.constant 0 : index
    %c0_203 = arith.constant 0 : index
    %534 = vector.load %arg17[%c1_201, %c0_202, %c0_203] : memref<2x1x32xf32, #tpu.memory_space<vmem>>, vector<1x1x32xf32>
    %535 = vector.shape_cast %534 : vector<1x1x32xf32> to vector<1x32xf32>
    %536 = vector.broadcast %535 : vector<1x32xf32> to vector<32x32xf32>
    %537 = arith.addf %533, %536 : vector<32x32xf32>
    %538 = arith.addf %517, %537 : vector<32x32xf32>
    %c1_204 = arith.constant 1 : index
    %c0_205 = arith.constant 0 : index
    %c0_206 = arith.constant 0 : index
    %539 = vector.load %arg18[%c1_204, %c0_205, %c0_206] : memref<2x1x32xf32, #tpu.memory_space<vmem>>, vector<1x1x32xf32>
    %540 = vector.shape_cast %539 : vector<1x1x32xf32> to vector<1x32xf32>
    %c1_207 = arith.constant 1 : index
    %c0_208 = arith.constant 0 : index
    %c0_209 = arith.constant 0 : index
    %541 = vector.load %arg19[%c1_207, %c0_208, %c0_209] : memref<2x1x32xf32, #tpu.memory_space<vmem>>, vector<1x1x32xf32>
    %542 = vector.shape_cast %541 : vector<1x1x32xf32> to vector<1x32xf32>
    %cst_210 = arith.constant dense<0.000000e+00> : vector<32xf32>
    %543 = vector.multi_reduction <add>, %538, %cst_210 [1] : vector<32x32xf32> to vector<32xf32>
    %544 = vector.shape_cast %543 : vector<32xf32> to vector<32x1xf32>
    %cst_211 = arith.constant 3.200000e+01 : f32
    %545 = vector.broadcast %cst_211 : f32 to vector<32x1xf32>
    %546 = arith.divf %544, %545 : vector<32x1xf32>
    %547 = vector.broadcast %546 : vector<32x1xf32> to vector<32x32xf32>
    %548 = arith.subf %538, %547 : vector<32x32xf32>
    %549 = arith.mulf %548, %548 : vector<32x32xf32>
    %cst_212 = arith.constant dense<0.000000e+00> : vector<32xf32>
    %550 = vector.multi_reduction <add>, %549, %cst_212 [1] : vector<32x32xf32> to vector<32xf32>
    %551 = vector.shape_cast %550 : vector<32xf32> to vector<32x1xf32>
    %cst_213 = arith.constant 3.200000e+01 : f32
    %552 = vector.broadcast %cst_213 : f32 to vector<32x1xf32>
    %553 = arith.divf %551, %552 : vector<32x1xf32>
    %cst_214 = arith.constant 9.99999974E-6 : f32
    %554 = vector.broadcast %cst_214 : f32 to vector<32x1xf32>
    %555 = arith.addf %553, %554 : vector<32x1xf32>
    %556 = math.rsqrt %555 : vector<32x1xf32>
    %557 = vector.broadcast %556 : vector<32x1xf32> to vector<32x32xf32>
    %558 = arith.mulf %548, %557 : vector<32x32xf32>
    %559 = vector.broadcast %540 : vector<1x32xf32> to vector<32x32xf32>
    %560 = arith.mulf %558, %559 : vector<32x32xf32>
    %561 = vector.broadcast %542 : vector<1x32xf32> to vector<32x32xf32>
    %562 = arith.addf %560, %561 : vector<32x32xf32>
    %c0_215 = arith.constant 0 : index
    %c0_216 = arith.constant 0 : index
    %563 = vector.load %arg20[%c0_215, %c0_216] : memref<32x8xf32, #tpu.memory_space<vmem>>, vector<32x8xf32>
    %564 = arith.truncf %562 : vector<32x32xf32> to vector<32x32xbf16>
    %565 = arith.truncf %563 : vector<32x8xf32> to vector<32x8xbf16>
    %cst_217 = arith.constant dense<0.000000e+00> : vector<32x8xf32>
    %566 = tpu.matmul %564, %565, %cst_217 {dimension_numbers = #tpu.dot_dimension_numbers<[1], [0], [0], [1], [0, 0, 1, 1], [], []>} : vector<32x32xbf16>, vector<32x8xbf16>, vector<32x8xf32> -> vector<32x8xf32>
    %c0_218 = arith.constant 0 : index
    %c0_219 = arith.constant 0 : index
    %567 = vector.load %arg21[%c0_218, %c0_219] : memref<1x8xf32, #tpu.memory_space<vmem>>, vector<1x8xf32>
    %568 = vector.broadcast %567 : vector<1x8xf32> to vector<32x8xf32>
    %569 = arith.addf %566, %568 : vector<32x8xf32>
    %570 = vector.extract_strided_slice %569 {offsets = [0, 0], sizes = [16, 8], strides = [1, 1]} : vector<32x8xf32> to vector<16x8xf32>
    %c0_220 = arith.constant 0 : index
    %c0_221 = arith.constant 0 : index
    %c0_222 = arith.constant 0 : index
    %571 = vector.load %arg22[%c0_220, %c0_221, %c0_222] : memref<2x16x8xf32, #tpu.memory_space<vmem>>, vector<1x16x8xf32>
    %572 = vector.shape_cast %571 : vector<1x16x8xf32> to vector<16x8xf32>
    %573 = vector.shape_cast %570 : vector<16x8xf32> to vector<1x16x8xf32>
    tpu.vector_store %arg22[%c0_220, %c0_221, %c0_222], %573 {strides = array<i32>} : memref<2x16x8xf32, #tpu.memory_space<vmem>>, vector<1x16x8xf32>,
    %574 = vector.extract_strided_slice %569 {offsets = [16, 0], sizes = [16, 8], strides = [1, 1]} : vector<32x8xf32> to vector<16x8xf32>
    %c1_223 = arith.constant 1 : index
    %c0_224 = arith.constant 0 : index
    %c0_225 = arith.constant 0 : index
    %575 = vector.load %arg22[%c1_223, %c0_224, %c0_225] : memref<2x16x8xf32, #tpu.memory_space<vmem>>, vector<1x16x8xf32>
    %576 = vector.shape_cast %575 : vector<1x16x8xf32> to vector<16x8xf32>
    %577 = vector.shape_cast %574 : vector<16x8xf32> to vector<1x16x8xf32>
    tpu.vector_store %arg22[%c1_223, %c0_224, %c0_225], %577 {strides = array<i32>} : memref<2x16x8xf32, #tpu.memory_space<vmem>>, vector<1x16x8xf32>,
    return
  }
  func.func @transform_0(%arg0: i32) -> (i32, i32, i32) {
    %c0_i32 = arith.constant 0 : i32
    %c0_i32_0 = arith.constant 0 : i32
    %c0_i32_1 = arith.constant 0 : i32
    return %arg0, %c0_i32, %c0_i32_0 : i32, i32, i32
  }
  func.func @transform_1(%arg0: i32) -> (i32, i32) {
    %c0_i32 = arith.constant 0 : i32
    %c0_i32_0 = arith.constant 0 : i32
    %c0_i32_1 = arith.constant 0 : i32
    return %c0_i32, %c0_i32_0 : i32, i32
  }
  func.func @transform_2(%arg0: i32) -> (i32, i32) {
    %c0_i32 = arith.constant 0 : i32
    %c0_i32_0 = arith.constant 0 : i32
    %c0_i32_1 = arith.constant 0 : i32
    return %c0_i32, %c0_i32_0 : i32, i32
  }
  func.func @transform_3(%arg0: i32) -> (i32, i32, i32) {
    %c0_i32 = arith.constant 0 : i32
    %c0_i32_0 = arith.constant 0 : i32
    %c0_i32_1 = arith.constant 0 : i32
    %c0_i32_2 = arith.constant 0 : i32
    return %c0_i32, %c0_i32_0, %c0_i32_1 : i32, i32, i32
  }
  func.func @transform_4(%arg0: i32) -> (i32, i32, i32) {
    %c0_i32 = arith.constant 0 : i32
    %c0_i32_0 = arith.constant 0 : i32
    %c0_i32_1 = arith.constant 0 : i32
    %c0_i32_2 = arith.constant 0 : i32
    return %c0_i32, %c0_i32_0, %c0_i32_1 : i32, i32, i32
  }
  func.func @transform_5(%arg0: i32) -> (i32, i32, i32) {
    %c0_i32 = arith.constant 0 : i32
    %c0_i32_0 = arith.constant 0 : i32
    %c0_i32_1 = arith.constant 0 : i32
    %c0_i32_2 = arith.constant 0 : i32
    return %c0_i32, %c0_i32_0, %c0_i32_1 : i32, i32, i32
  }
  func.func @transform_6(%arg0: i32) -> (i32, i32, i32) {
    %c0_i32 = arith.constant 0 : i32
    %c0_i32_0 = arith.constant 0 : i32
    %c0_i32_1 = arith.constant 0 : i32
    %c0_i32_2 = arith.constant 0 : i32
    return %c0_i32, %c0_i32_0, %c0_i32_1 : i32, i32, i32
  }
  func.func @transform_7(%arg0: i32) -> (i32, i32, i32) {
    %c0_i32 = arith.constant 0 : i32
    %c0_i32_0 = arith.constant 0 : i32
    %c0_i32_1 = arith.constant 0 : i32
    %c0_i32_2 = arith.constant 0 : i32
    return %c0_i32, %c0_i32_0, %c0_i32_1 : i32, i32, i32
  }
  func.func @transform_8(%arg0: i32) -> (i32, i32, i32) {
    %c0_i32 = arith.constant 0 : i32
    %c0_i32_0 = arith.constant 0 : i32
    %c0_i32_1 = arith.constant 0 : i32
    %c0_i32_2 = arith.constant 0 : i32
    return %c0_i32, %c0_i32_0, %c0_i32_1 : i32, i32, i32
  }
  func.func @transform_9(%arg0: i32) -> (i32, i32, i32) {
    %c0_i32 = arith.constant 0 : i32
    %c0_i32_0 = arith.constant 0 : i32
    %c0_i32_1 = arith.constant 0 : i32
    %c0_i32_2 = arith.constant 0 : i32
    return %c0_i32, %c0_i32_0, %c0_i32_1 : i32, i32, i32
  }
  func.func @transform_10(%arg0: i32) -> (i32, i32, i32) {
    %c0_i32 = arith.constant 0 : i32
    %c0_i32_0 = arith.constant 0 : i32
    %c0_i32_1 = arith.constant 0 : i32
    %c0_i32_2 = arith.constant 0 : i32
    return %c0_i32, %c0_i32_0, %c0_i32_1 : i32, i32, i32
  }
  func.func @transform_11(%arg0: i32) -> (i32, i32, i32) {
    %c0_i32 = arith.constant 0 : i32
    %c0_i32_0 = arith.constant 0 : i32
    %c0_i32_1 = arith.constant 0 : i32
    %c0_i32_2 = arith.constant 0 : i32
    return %c0_i32, %c0_i32_0, %c0_i32_1 : i32, i32, i32
  }
  func.func @transform_12(%arg0: i32) -> (i32, i32, i32) {
    %c0_i32 = arith.constant 0 : i32
    %c0_i32_0 = arith.constant 0 : i32
    %c0_i32_1 = arith.constant 0 : i32
    %c0_i32_2 = arith.constant 0 : i32
    return %c0_i32, %c0_i32_0, %c0_i32_1 : i32, i32, i32
  }
  func.func @transform_13(%arg0: i32) -> (i32, i32, i32) {
    %c0_i32 = arith.constant 0 : i32
    %c0_i32_0 = arith.constant 0 : i32
    %c0_i32_1 = arith.constant 0 : i32
    %c0_i32_2 = arith.constant 0 : i32
    return %c0_i32, %c0_i32_0, %c0_i32_1 : i32, i32, i32
  }
  func.func @transform_14(%arg0: i32) -> (i32, i32, i32) {
    %c0_i32 = arith.constant 0 : i32
    %c0_i32_0 = arith.constant 0 : i32
    %c0_i32_1 = arith.constant 0 : i32
    %c0_i32_2 = arith.constant 0 : i32
    return %c0_i32, %c0_i32_0, %c0_i32_1 : i32, i32, i32
  }
  func.func @transform_15(%arg0: i32) -> (i32, i32, i32) {
    %c0_i32 = arith.constant 0 : i32
    %c0_i32_0 = arith.constant 0 : i32
    %c0_i32_1 = arith.constant 0 : i32
    %c0_i32_2 = arith.constant 0 : i32
    return %c0_i32, %c0_i32_0, %c0_i32_1 : i32, i32, i32
  }
  func.func @transform_16(%arg0: i32) -> (i32, i32, i32) {
    %c0_i32 = arith.constant 0 : i32
    %c0_i32_0 = arith.constant 0 : i32
    %c0_i32_1 = arith.constant 0 : i32
    %c0_i32_2 = arith.constant 0 : i32
    return %c0_i32, %c0_i32_0, %c0_i32_1 : i32, i32, i32
  }
  func.func @transform_17(%arg0: i32) -> (i32, i32, i32) {
    %c0_i32 = arith.constant 0 : i32
    %c0_i32_0 = arith.constant 0 : i32
    %c0_i32_1 = arith.constant 0 : i32
    %c0_i32_2 = arith.constant 0 : i32
    return %c0_i32, %c0_i32_0, %c0_i32_1 : i32, i32, i32
  }
  func.func @transform_18(%arg0: i32) -> (i32, i32, i32) {
    %c0_i32 = arith.constant 0 : i32
    %c0_i32_0 = arith.constant 0 : i32
    %c0_i32_1 = arith.constant 0 : i32
    %c0_i32_2 = arith.constant 0 : i32
    return %c0_i32, %c0_i32_0, %c0_i32_1 : i32, i32, i32
  }
  func.func @transform_19(%arg0: i32) -> (i32, i32) {
    %c0_i32 = arith.constant 0 : i32
    %c0_i32_0 = arith.constant 0 : i32
    %c0_i32_1 = arith.constant 0 : i32
    return %c0_i32, %c0_i32_0 : i32, i32
  }
  func.func @transform_20(%arg0: i32) -> (i32, i32) {
    %c0_i32 = arith.constant 0 : i32
    %c0_i32_0 = arith.constant 0 : i32
    %c0_i32_1 = arith.constant 0 : i32
    return %c0_i32, %c0_i32_0 : i32, i32
  }
  func.func @transform_21(%arg0: i32) -> (i32, i32, i32) {
    %c0_i32 = arith.constant 0 : i32
    %c0_i32_0 = arith.constant 0 : i32
    %c0_i32_1 = arith.constant 0 : i32
    return %arg0, %c0_i32, %c0_i32_0 : i32, i32, i32
  }
}

</mosaic_0001>

<llo_original>
// kernel: tpu_custom_call.1
$region0: #{tpu_custom_call.1}
  #allocation0 [shape = 'u32[]', space=smem, size = 0x4, offset = 0x4, fixed_abs, tag = 'smem constant byte address 0x4 - core index']
  #allocation1 [shape = 'u32[144,128]{1,0:T(1,128)}', space=vmem, size = 0x12000, scoped, tag = 'internal scratch']
  %s0 = inlined_call_operand.vmem [shape: f32[2,16,8], index: 0, kind: input, shape index: {}]
  %s1 = inlined_call_operand.vmem [shape: f32[8,32], index: 1, kind: input, shape index: {}]
  %s2 = inlined_call_operand.vmem [shape: f32[1,32], index: 2, kind: input, shape index: {}]
  %s3 = inlined_call_operand.vmem [shape: f32[2,32,64], index: 3, kind: input, shape index: {}]
  %s4 = inlined_call_operand.vmem [shape: f32[2,1,64], index: 4, kind: input, shape index: {}]
  %s5 = inlined_call_operand.vmem [shape: f32[2,32,64], index: 5, kind: input, shape index: {}]
  %s6 = inlined_call_operand.vmem [shape: f32[2,1,64], index: 6, kind: input, shape index: {}]
  %s7 = inlined_call_operand.vmem [shape: f32[2,32,64], index: 7, kind: input, shape index: {}]
  %s8 = inlined_call_operand.vmem [shape: f32[2,1,64], index: 8, kind: input, shape index: {}]
  %s9 = inlined_call_operand.vmem [shape: f32[2,64,32], index: 9, kind: input, shape index: {}]
  %s10 = inlined_call_operand.vmem [shape: f32[2,1,32], index: 10, kind: input, shape index: {}]
  %s11 = inlined_call_operand.vmem [shape: f32[2,1,32], index: 11, kind: input, shape index: {}]
  %s12 = inlined_call_operand.vmem [shape: f32[2,1,32], index: 12, kind: input, shape index: {}]
  %s13 = inlined_call_operand.vmem [shape: f32[2,32,128], index: 13, kind: input, shape index: {}]
  %s14 = inlined_call_operand.vmem [shape: f32[2,1,128], index: 14, kind: input, shape index: {}]
  %s15 = inlined_call_operand.vmem [shape: f32[2,128,32], index: 15, kind: input, shape index: {}]
  %s16 = inlined_call_operand.vmem [shape: f32[2,1,32], index: 16, kind: input, shape index: {}]
  %s17 = inlined_call_operand.vmem [shape: f32[2,1,32], index: 17, kind: input, shape index: {}]
  %s18 = inlined_call_operand.vmem [shape: f32[2,1,32], index: 18, kind: input, shape index: {}]
  %s19 = inlined_call_operand.vmem [shape: f32[32,8], index: 19, kind: input, shape index: {}]
  %s20 = inlined_call_operand.vmem [shape: f32[1,8], index: 20, kind: input, shape index: {}]
  %s21 = inlined_call_operand.vmem [shape: f32[2,16,8], index: 21, kind: output, shape index: {}]
  %s22 = sld [smem:[#allocation0]]
  $region94: #{tpu_custom_call.1} parent=0
    _
  %s24 = ssub.s32 1, %s22
  %s25 = scalar_select 0, %s24, %s22
  // Predicated region
  $region2: #{tpu_custom_call.1} parent=0 // pred_check
    _
  $region3: #{tpu_custom_call.1} parent=0 // pred_check_branch
    %27 = sbr.rel (0) target = $region5
  $region4: #{tpu_custom_call.1} parent=0 // pred_region
    _
  $region5: #{tpu_custom_call.1} parent=0 // pred_fallthru
    _
  // Predicated region
  $region6: #{tpu_custom_call.1} parent=0 // pred_check
    _
  $region7: #{tpu_custom_call.1} parent=0 // pred_check_branch
    %29 = sbr.rel (0) target = $region9
  $region8: #{tpu_custom_call.1} parent=0 // pred_region
    _
  $region9: #{tpu_custom_call.1} parent=0 // pred_fallthru
    _
  // Predicated region
  $region10: #{tpu_custom_call.1} parent=0 // pred_check
    _
  $region11: #{tpu_custom_call.1} parent=0 // pred_check_branch
    %31 = sbr.rel (0) target = $region13
  $region12: #{tpu_custom_call.1} parent=0 // pred_region
    _
  $region13: #{tpu_custom_call.1} parent=0 // pred_fallthru
    _
  // Predicated region
  $region14: #{tpu_custom_call.1} parent=0 // pred_check
    _
  $region15: #{tpu_custom_call.1} parent=0 // pred_check_branch
    %33 = sbr.rel (0) target = $region17
  $region16: #{tpu_custom_call.1} parent=0 // pred_region
    _
  $region17: #{tpu_custom_call.1} parent=0 // pred_fallthru
    _
  // Predicated region
  $region18: #{tpu_custom_call.1} parent=0 // pred_check
    _
  $region19: #{tpu_custom_call.1} parent=0 // pred_check_branch
    %35 = sbr.rel (0) target = $region21
  $region20: #{tpu_custom_call.1} parent=0 // pred_region
    _
  $region21: #{tpu_custom_call.1} parent=0 // pred_fallthru
    _
  // Predicated region
  $region22: #{tpu_custom_call.1} parent=0 // pred_check
    _
  $region23: #{tpu_custom_call.1} parent=0 // pred_check_branch
    %37 = sbr.rel (0) target = $region25
  $region24: #{tpu_custom_call.1} parent=0 // pred_region
    _
  $region25: #{tpu_custom_call.1} parent=0 // pred_fallthru
    _
  // Predicated region
  $region26: #{tpu_custom_call.1} parent=0 // pred_check
    _
  $region27: #{tpu_custom_call.1} parent=0 // pred_check_branch
    %39 = sbr.rel (0) target = $region29
  $region28: #{tpu_custom_call.1} parent=0 // pred_region
    _
  $region29: #{tpu_custom_call.1} parent=0 // pred_fallthru
    _
  // Predicated region
  $region30: #{tpu_custom_call.1} parent=0 // pred_check
    _
  $region31: #{tpu_custom_call.1} parent=0 // pred_check_branch
    %41 = sbr.rel (0) target = $region33
  $region32: #{tpu_custom_call.1} parent=0 // pred_region
    _
  $region33: #{tpu_custom_call.1} parent=0 // pred_fallthru
    _
  // Predicated region
  $region34: #{tpu_custom_call.1} parent=0 // pred_check
    _
  $region35: #{tpu_custom_call.1} parent=0 // pred_check_branch
    %43 = sbr.rel (0) target = $region37
  $region36: #{tpu_custom_call.1} parent=0 // pred_region
    _
  $region37: #{tpu_custom_call.1} parent=0 // pred_fallthru
    _
  // Predicated region
  $region38: #{tpu_custom_call.1} parent=0 // pred_check
    _
  $region39: #{tpu_custom_call.1} parent=0 // pred_check_branch
    %45 = sbr.rel (0) target = $region41
  $region40: #{tpu_custom_call.1} parent=0 // pred_region
    _
  $region41: #{tpu_custom_call.1} parent=0 // pred_fallthru
    _
  // Predicated region
  $region42: #{tpu_custom_call.1} parent=0 // pred_check
    _
  $region43: #{tpu_custom_call.1} parent=0 // pred_check_branch
    %47 = sbr.rel (0) target = $region45
  $region44: #{tpu_custom_call.1} parent=0 // pred_region
    _
  $region45: #{tpu_custom_call.1} parent=0 // pred_fallthru
    _
  // Predicated region
  $region46: #{tpu_custom_call.1} parent=0 // pred_check
    _
  $region47: #{tpu_custom_call.1} parent=0 // pred_check_branch
    %49 = sbr.rel (0) target = $region49
  $region48: #{tpu_custom_call.1} parent=0 // pred_region
    _
  $region49: #{tpu_custom_call.1} parent=0 // pred_fallthru
    _
  // Predicated region
  $region50: #{tpu_custom_call.1} parent=0 // pred_check
    _
  $region51: #{tpu_custom_call.1} parent=0 // pred_check_branch
    %51 = sbr.rel (0) target = $region53
  $region52: #{tpu_custom_call.1} parent=0 // pred_region
    _
  $region53: #{tpu_custom_call.1} parent=0 // pred_fallthru
    _
  // Predicated region
  $region54: #{tpu_custom_call.1} parent=0 // pred_check
    _
  $region55: #{tpu_custom_call.1} parent=0 // pred_check_branch
    %53 = sbr.rel (0) target = $region57
  $region56: #{tpu_custom_call.1} parent=0 // pred_region
    _
  $region57: #{tpu_custom_call.1} parent=0 // pred_fallthru
    _
  // Predicated region
  $region58: #{tpu_custom_call.1} parent=0 // pred_check
    _
  $region59: #{tpu_custom_call.1} parent=0 // pred_check_branch
    %55 = sbr.rel (0) target = $region61
  $region60: #{tpu_custom_call.1} parent=0 // pred_region
    _
  $region61: #{tpu_custom_call.1} parent=0 // pred_fallthru
    _
  // Predicated region
  $region62: #{tpu_custom_call.1} parent=0 // pred_check
    _
  $region63: #{tpu_custom_call.1} parent=0 // pred_check_branch
    %57 = sbr.rel (0) target = $region65
  $region64: #{tpu_custom_call.1} parent=0 // pred_region
    _
  $region65: #{tpu_custom_call.1} parent=0 // pred_fallthru
    _
  // Predicated region
  $region66: #{tpu_custom_call.1} parent=0 // pred_check
    _
  $region67: #{tpu_custom_call.1} parent=0 // pred_check_branch
    %59 = sbr.rel (0) target = $region69
  $region68: #{tpu_custom_call.1} parent=0 // pred_region
    _
  $region69: #{tpu_custom_call.1} parent=0 // pred_fallthru
    _
  // Predicated region
  $region70: #{tpu_custom_call.1} parent=0 // pred_check
    _
  $region71: #{tpu_custom_call.1} parent=0 // pred_check_branch
    %61 = sbr.rel (0) target = $region73
  $region72: #{tpu_custom_call.1} parent=0 // pred_region
    _
  $region73: #{tpu_custom_call.1} parent=0 // pred_fallthru
    _
  // Predicated region
  $region74: #{tpu_custom_call.1} parent=0 // pred_check
    _
  $region75: #{tpu_custom_call.1} parent=0 // pred_check_branch
    %63 = sbr.rel (0) target = $region77
  $region76: #{tpu_custom_call.1} parent=0 // pred_region
    _
  $region77: #{tpu_custom_call.1} parent=0 // pred_fallthru
    _
  // Predicated region
  $region78: #{tpu_custom_call.1} parent=0 // pred_check
    _
  $region79: #{tpu_custom_call.1} parent=0 // pred_check_branch
    %65 = sbr.rel (0) target = $region81
  $region80: #{tpu_custom_call.1} parent=0 // pred_region
    _
  $region81: #{tpu_custom_call.1} parent=0 // pred_fallthru
    _
  // Predicated region
  $region82: #{tpu_custom_call.1} parent=0 // pred_check
    _
  $region83: #{tpu_custom_call.1} parent=0 // pred_check_branch
    %67 = sbr.rel (0) target = $region85
  $region84: #{tpu_custom_call.1} parent=0 // pred_region
    _
  $region85: #{tpu_custom_call.1} parent=0 // pred_fallthru
    _
  %v69 = vld [vmem:[%s0] sm:$0xff]
  %v70 = vld [vmem:[%s0 + $0x8] sm:$0xff]
  %v71 = vld [vmem:[%s0 + $0x10] sm:$0xff]
  %v72 = vld [vmem:[%s0 + $0x18] sm:$0xff]
  %v73 = vld [vmem:[%s1] sm:$0xff]
  %v74 = vpack.c.bf16 %v70, %v69
  %v75 = vpack.c.bf16 %v72, %v71
  %v76 = vpack.c.bf16 %v73, %v73
  %v77 = vld [vmem:[%s2] sm:$0x1]
  %v79 = vlaneseq
  %v80 = vshrl.u32 %v79, 7
  %v81 = vsub.s32 0, %v80
  %v82 = vrot.slane %v77, %v81
  %vm84 = vcmask 64512
  %v86 = vsel %vm84, %v74, 0
  %v89 = vsel %vm84, %v75, 0
  %vm91 = vcmask 1043456
  %v93 = vsel %vm91, %v76, 0
  %95 = vmatprep.subr.bf16.mxu0 0
  %96 = vmatpush1.bf16.msra.mxu0 %v93
  %97 = vmatprep.subr.bf16.mxu0 0
  %98 = vmatpush1.bf16.msra.mxu0 0
  %99 = vmatprep.subr.bf16.mxu0 0
  %100 = vmatpush1.bf16.msra.mxu0 0
  %101 = vmatprep.subr.bf16.mxu0 0
  %102 = vmatpush1.bf16.msra.mxu0 0
  %103 = vmatprep.subr.bf16.mxu0 0
  %104 = vmatpush1.bf16.msra.mxu0 0
  %105 = vmatprep.subr.bf16.mxu0 0
  %106 = vmatpush1.bf16.msra.mxu0 0
  %107 = vmatprep.subr.bf16.mxu0 0
  %108 = vmatpush1.bf16.msra.mxu0 0
  %109 = vmatprep.subr.bf16.mxu0 0
  %110 = vmatpush1.bf16.msra.mxu0 0
  %111 = vmatprep.subr.bf16.mxu0 0
  %112 = vmatpush1.bf16.msra.mxu0 0
  %113 = vmatprep.subr.bf16.mxu0 0
  %114 = vmatpush1.bf16.msra.mxu0 0
  %115 = vmatprep.subr.bf16.mxu0 0
  %116 = vmatpush1.bf16.msra.mxu0 0
  %117 = vmatprep.subr.bf16.mxu0 0
  %118 = vmatpush1.bf16.msra.mxu0 0
  %119 = vmatprep.subr.bf16.mxu0 0
  %120 = vmatpush1.bf16.msra.mxu0 0
  %121 = vmatprep.subr.bf16.mxu0 0
  %122 = vmatpush1.bf16.msra.mxu0 0
  %123 = vmatprep.subr.bf16.mxu0 0
  %124 = vmatpush1.bf16.msra.mxu0 0
  %125 = vmatprep.subr.bf16.mxu0 0
  %126 = vmatpush1.bf16.msra.mxu0 0
  %127 = vmatprep.mubr.bf16.mxu0 0
  %128 = vmatmul.mubr.bf16.gmra.mrb[0].mxu0 %v86
  %v129 = vpop.f32.mrb[0].mxu0
  %v130 = vadd.f32 %v82, %v129
  %v131 = vpop.f32.mrb[0].mxu0
  %v132 = vpop.f32.mrb[0].mxu0
  %v133 = vadd.f32 %v82, %v132
  %v134 = vpop.f32.mrb[0].mxu0
  %135 = vmatprep.mubr.bf16.mxu0 0
  %136 = vmatmul.mubr.bf16.gmra.mrb[0].mxu0 %v89
  %v137 = vpop.f32.mrb[0].mxu0
  %v138 = vadd.f32 %v82, %v137
  %v139 = vpop.f32.mrb[0].mxu0
  %v140 = vpop.f32.mrb[0].mxu0
  %v141 = vadd.f32 %v82, %v140
  %v142 = vpop.f32.mrb[0].mxu0
  %143 = vdwg.mxu0
  %v144 = vld [vmem:[%s3] sm:$0xff]
  %v145 = vld [vmem:[%s3 + $0x8] sm:$0xff]
  %v146 = vld [vmem:[%s3 + $0x10] sm:$0xff]
  %v147 = vld [vmem:[%s3 + $0x18] sm:$0xff]
  %v148 = vpack.c.bf16 %v133, %v130
  %v149 = vpack.c.bf16 %v141, %v138
  %v150 = vpack.c.bf16 %v145, %v144
  %v151 = vpack.c.bf16 %v147, %v146
  %v152 = vld [vmem:[%s4] sm:$0x1]
  %v154 = vlaneseq
  %v155 = vshrl.u32 %v154, 7
  %v156 = vsub.s32 0, %v155
  %v157 = vrot.slane %v152, %v156
  %vm159 = vcmask 261120
  %v161 = vsel %vm159, %v148, 0
  %v164 = vsel %vm159, %v149, 0
  %166 = vmatprep.subr.bf16.mxu0 0
  %167 = vmatpush1.bf16.msra.mxu0 %v150
  %168 = vmatprep.subr.bf16.mxu0 0
  %169 = vmatpush1.bf16.msra.mxu0 %v151
  %170 = vmatprep.subr.bf16.mxu0 0
  %171 = vmatpush1.bf16.msra.mxu0 0
  %172 = vmatprep.subr.bf16.mxu0 0
  %173 = vmatpush1.bf16.msra.mxu0 0
  %174 = vmatprep.subr.bf16.mxu0 0
  %175 = vmatpush1.bf16.msra.mxu0 0
  %176 = vmatprep.subr.bf16.mxu0 0
  %177 = vmatpush1.bf16.msra.mxu0 0
  %178 = vmatprep.subr.bf16.mxu0 0
  %179 = vmatpush1.bf16.msra.mxu0 0
  %180 = vmatprep.subr.bf16.mxu0 0
  %181 = vmatpush1.bf16.msra.mxu0 0
  %182 = vmatprep.subr.bf16.mxu0 0
  %183 = vmatpush1.bf16.msra.mxu0 0
  %184 = vmatprep.subr.bf16.mxu0 0
  %185 = vmatpush1.bf16.msra.mxu0 0
  %186 = vmatprep.subr.bf16.mxu0 0
  %187 = vmatpush1.bf16.msra.mxu0 0
  %188 = vmatprep.subr.bf16.mxu0 0
  %189 = vmatpush1.bf16.msra.mxu0 0
  %190 = vmatprep.subr.bf16.mxu0 0
  %191 = vmatpush1.bf16.msra.mxu0 0
  %192 = vmatprep.subr.bf16.mxu0 0
  %193 = vmatpush1.bf16.msra.mxu0 0
  %194 = vmatprep.subr.bf16.mxu0 0
  %195 = vmatpush1.bf16.msra.mxu0 0
  %196 = vmatprep.subr.bf16.mxu0 0
  %197 = vmatpush1.bf16.msra.mxu0 0
  %198 = vmatprep.mubr.bf16.mxu0 0
  %199 = vmatmul.mubr.bf16.gmra.mrb[0].mxu0 %v161
  %v200 = vpop.f32.mrb[0].mxu0
  %v201 = vadd.f32 %v157, %v200
  %v202 = vpop.f32.mrb[0].mxu0
  %v203 = vpop.f32.mrb[0].mxu0
  %v204 = vadd.f32 %v157, %v203
  %v205 = vpop.f32.mrb[0].mxu0
  %206 = vmatprep.mubr.bf16.mxu0 0
  %207 = vmatmul.mubr.bf16.gmra.mrb[0].mxu0 %v164
  %v208 = vpop.f32.mrb[0].mxu0
  %v209 = vadd.f32 %v157, %v208
  %v210 = vpop.f32.mrb[0].mxu0
  %v211 = vpop.f32.mrb[0].mxu0
  %v212 = vadd.f32 %v157, %v211
  %v213 = vpop.f32.mrb[0].mxu0
  %214 = vdwg.mxu0
  %v215 = vld [vmem:[%s5] sm:$0xff]
  %v216 = vld [vmem:[%s5 + $0x8] sm:$0xff]
  %v217 = vld [vmem:[%s5 + $0x10] sm:$0xff]
  %v218 = vld [vmem:[%s5 + $0x18] sm:$0xff]
  %v219 = vpack.c.bf16 %v216, %v215
  %v220 = vpack.c.bf16 %v218, %v217
  %v221 = vld [vmem:[%s6] sm:$0x1]
  %v223 = vlaneseq
  %v224 = vshrl.u32 %v223, 7
  %v225 = vsub.s32 0, %v224
  %v226 = vrot.slane %v221, %v225
  %228 = vmatprep.subr.bf16.mxu0 0
  %229 = vmatpush1.bf16.msra.mxu0 %v219
  %230 = vmatprep.subr.bf16.mxu0 0
  %231 = vmatpush1.bf16.msra.mxu0 %v220
  %232 = vmatprep.subr.bf16.mxu0 0
  %233 = vmatpush1.bf16.msra.mxu0 0
  %234 = vmatprep.subr.bf16.mxu0 0
  %235 = vmatpush1.bf16.msra.mxu0 0
  %236 = vmatprep.subr.bf16.mxu0 0
  %237 = vmatpush1.bf16.msra.mxu0 0
  %238 = vmatprep.subr.bf16.mxu0 0
  %239 = vmatpush1.bf16.msra.mxu0 0
  %240 = vmatprep.subr.bf16.mxu0 0
  %241 = vmatpush1.bf16.msra.mxu0 0
  %242 = vmatprep.subr.bf16.mxu0 0
  %243 = vmatpush1.bf16.msra.mxu0 0
  %244 = vmatprep.subr.bf16.mxu0 0
  %245 = vmatpush1.bf16.msra.mxu0 0
  %246 = vmatprep.subr.bf16.mxu0 0
  %247 = vmatpush1.bf16.msra.mxu0 0
  %248 = vmatprep.subr.bf16.mxu0 0
  %249 = vmatpush1.bf16.msra.mxu0 0
  %250 = vmatprep.subr.bf16.mxu0 0
  %251 = vmatpush1.bf16.msra.mxu0 0
  %252 = vmatprep.subr.bf16.mxu0 0
  %253 = vmatpush1.bf16.msra.mxu0 0
  %254 = vmatprep.subr.bf16.mxu0 0
  %255 = vmatpush1.bf16.msra.mxu0 0
  %256 = vmatprep.subr.bf16.mxu0 0
  %257 = vmatpush1.bf16.msra.mxu0 0
  %258 = vmatprep.subr.bf16.mxu0 0
  %259 = vmatpush1.bf16.msra.mxu0 0
  %260 = vmatprep.mubr.bf16.mxu0 0
  %261 = vmatmul.mubr.bf16.gmra.mrb[0].mxu0 %v161
  %v262 = vpop.f32.mrb[0].mxu0
  %v263 = vadd.f32 %v226, %v262
  %v264 = vpop.f32.mrb[0].mxu0
  %v265 = vpop.f32.mrb[0].mxu0
  %v266 = vadd.f32 %v226, %v265
  %v267 = vpop.f32.mrb[0].mxu0
  %268 = vmatprep.mubr.bf16.mxu0 0
  %269 = vmatmul.mubr.bf16.gmra.mrb[0].mxu0 %v164
  %v270 = vpop.f32.mrb[0].mxu0
  %v271 = vadd.f32 %v226, %v270
  %v272 = vpop.f32.mrb[0].mxu0
  %v273 = vpop.f32.mrb[0].mxu0
  %v274 = vadd.f32 %v226, %v273
  %v275 = vpop.f32.mrb[0].mxu0
  %276 = vdwg.mxu0
  %v277 = vld [vmem:[%s7] sm:$0xff]
  %v278 = vld [vmem:[%s7 + $0x8] sm:$0xff]
  %v279 = vld [vmem:[%s7 + $0x10] sm:$0xff]
  %v280 = vld [vmem:[%s7 + $0x18] sm:$0xff]
  %v281 = vpack.c.bf16 %v278, %v277
  %v282 = vpack.c.bf16 %v280, %v279
  %v283 = vld [vmem:[%s8] sm:$0x1]
  %v285 = vlaneseq
  %v286 = vshrl.u32 %v285, 7
  %v287 = vsub.s32 0, %v286
  %v288 = vrot.slane %v283, %v287
  %290 = vmatprep.subr.bf16.mxu0 0
  %291 = vmatpush1.bf16.msra.mxu0 %v281
  %292 = vmatprep.subr.bf16.mxu0 0
  %293 = vmatpush1.bf16.msra.mxu0 %v282
  %294 = vmatprep.subr.bf16.mxu0 0
  %295 = vmatpush1.bf16.msra.mxu0 0
  %296 = vmatprep.subr.bf16.mxu0 0
  %297 = vmatpush1.bf16.msra.mxu0 0
  %298 = vmatprep.subr.bf16.mxu0 0
  %299 = vmatpush1.bf16.msra.mxu0 0
  %300 = vmatprep.subr.bf16.mxu0 0
  %301 = vmatpush1.bf16.msra.mxu0 0
  %302 = vmatprep.subr.bf16.mxu0 0
  %303 = vmatpush1.bf16.msra.mxu0 0
  %304 = vmatprep.subr.bf16.mxu0 0
  %305 = vmatpush1.bf16.msra.mxu0 0
  %306 = vmatprep.subr.bf16.mxu0 0
  %307 = vmatpush1.bf16.msra.mxu0 0
  %308 = vmatprep.subr.bf16.mxu0 0
  %309 = vmatpush1.bf16.msra.mxu0 0
  %310 = vmatprep.subr.bf16.mxu0 0
  %311 = vmatpush1.bf16.msra.mxu0 0
  %312 = vmatprep.subr.bf16.mxu0 0
  %313 = vmatpush1.bf16.msra.mxu0 0
  %314 = vmatprep.subr.bf16.mxu0 0
  %315 = vmatpush1.bf16.msra.mxu0 0
  %316 = vmatprep.subr.bf16.mxu0 0
  %317 = vmatpush1.bf16.msra.mxu0 0
  %318 = vmatprep.subr.bf16.mxu0 0
  %319 = vmatpush1.bf16.msra.mxu0 0
  %320 = vmatprep.subr.bf16.mxu0 0
  %321 = vmatpush1.bf16.msra.mxu0 0
  %322 = vmatprep.mubr.bf16.mxu0 0
  %323 = vmatmul.mubr.bf16.gmra.mrb[0].mxu0 %v161
  %v324 = vpop.f32.mrb[0].mxu0
  %v325 = vadd.f32 %v288, %v324
  %v326 = vpop.f32.mrb[0].mxu0
  %v327 = vpop.f32.mrb[0].mxu0
  %v328 = vadd.f32 %v288, %v327
  %v329 = vpop.f32.mrb[0].mxu0
  %330 = vmatprep.mubr.bf16.mxu0 0
  %331 = vmatmul.mubr.bf16.gmra.mrb[0].mxu0 %v164
  %v332 = vpop.f32.mrb[0].mxu0
  %v333 = vadd.f32 %v288, %v332
  %v334 = vpop.f32.mrb[0].mxu0
  %v335 = vpop.f32.mrb[0].mxu0
  %v336 = vadd.f32 %v288, %v335
  %v337 = vpop.f32.mrb[0].mxu0
  %338 = vdwg.mxu0
  %v339 = vpack.c.bf16 %v204, %v201
  %v340 = vpack.c.bf16 %v266, %v263
  %vm341 = vcmask 130048
  %v343 = vsel %vm341, %v339, 0
  %v346 = vsel %vm341, %v340, 0
  %348 = vmatprep.subr.bf16.mxu0 0
  %349 = vmatpush1.bf16.xpose.msra.mxu0 %v346
  %350 = vmatprep.subr.bf16.mxu0 0
  %351 = vmatpush1.bf16.xpose.msra.mxu0 0
  %352 = vmatprep.subr.bf16.mxu0 0
  %353 = vmatpush1.bf16.xpose.msra.mxu0 0
  %354 = vmatprep.subr.bf16.mxu0 0
  %355 = vmatpush1.bf16.xpose.msra.mxu0 0
  %356 = vmatprep.subr.bf16.mxu0 0
  %357 = vmatpush1.bf16.xpose.msra.mxu0 0
  %358 = vmatprep.subr.bf16.mxu0 0
  %359 = vmatpush1.bf16.xpose.msra.mxu0 0
  %360 = vmatprep.subr.bf16.mxu0 0
  %361 = vmatpush1.bf16.xpose.msra.mxu0 0
  %362 = vmatprep.subr.bf16.mxu0 0
  %363 = vmatpush1.bf16.xpose.msra.mxu0 0
  %364 = vmatprep.subr.bf16.mxu0 0
  %365 = vmatpush1.bf16.xpose.msra.mxu0 0
  %366 = vmatprep.subr.bf16.mxu0 0
  %367 = vmatpush1.bf16.xpose.msra.mxu0 0
  %368 = vmatprep.subr.bf16.mxu0 0
  %369 = vmatpush1.bf16.xpose.msra.mxu0 0
  %370 = vmatprep.subr.bf16.mxu0 0
  %371 = vmatpush1.bf16.xpose.msra.mxu0 0
  %372 = vmatprep.subr.bf16.mxu0 0
  %373 = vmatpush1.bf16.xpose.msra.mxu0 0
  %374 = vmatprep.subr.bf16.mxu0 0
  %375 = vmatpush1.bf16.xpose.msra.mxu0 0
  %376 = vmatprep.subr.bf16.mxu0 0
  %377 = vmatpush1.bf16.xpose.msra.mxu0 0
  %378 = vmatprep.subr.bf16.mxu0 0
  %379 = vmatpush1.bf16.xpose.msra.mxu0 0
  %380 = vmatprep.mubr.bf16.mxu0 0
  %381 = vmatmul.mubr.bf16.gmra.mrb[0].mxu0 %v343
  %v382 = vpop.f32.mrb[0].mxu0
  %v383 = vadd.f32 0.0, %v382
  %v384 = vpop.f32.mrb[0].mxu0
  %v385 = vpop.f32.mrb[0].mxu0
  %v386 = vadd.f32 0.0, %v385
  %v387 = vpop.f32.mrb[0].mxu0
  %388 = vdwg.mxu0
  %v389 = vmul.f32 %v383, 0.17677669
  %v390 = vmul.f32 %v386, 0.17677669
  %v391 = vsel %vm341, %v389, -inf
  %392 = vmax.xlane.f32.xlu0 %v391
  %v393 = vpop.xlane.xlu0 %392
  %v394 = vsel %vm341, %v390, -inf
  %395 = vmax.xlane.f32.xlu0 %v394
  %v396 = vpop.xlane.xlu0 %395
  %v397 = vsub.f32 %v389, %v393
  %v398 = vsub.f32 %v390, %v396
  %v399 = vmul.f32 %v397, 1.442695
  %v400 = vpow.pop %v399
  %v401 = vmul.f32 %v398, 1.442695
  %v402 = vpow.pop %v401
  %v403 = vsel %vm341, %v400, 0.0
  %404 = vadd.xlane.f32.xlu0 %v403
  %v405 = vpop.xlane.xlu0 %404
  %v406 = vsel %vm341, %v402, 0.0
  %407 = vadd.xlane.f32.xlu0 %v406
  %v408 = vpop.xlane.xlu0 %407
  %v409 = vrcp.pop %v405
  %v410 = vrcp.pop %v408
  %v411 = vmul.f32 %v400, %v409
  %v412 = vmul.f32 %v402, %v410
  %v413 = vpack.c.bf16 %v412, %v411
  %v414 = vpack.c.bf16 %v328, %v325
  %v416 = vsel %vm341, %v413, 0
  %418 = vmatprep.subr.bf16.mxu0 0
  %419 = vmatpush1.bf16.msra.mxu0 %v414
  %420 = vmatprep.subr.bf16.mxu0 0
  %421 = vmatpush1.bf16.msra.mxu0 0
  %422 = vmatprep.subr.bf16.mxu0 0
  %423 = vmatpush1.bf16.msra.mxu0 0
  %424 = vmatprep.subr.bf16.mxu0 0
  %425 = vmatpush1.bf16.msra.mxu0 0
  %426 = vmatprep.subr.bf16.mxu0 0
  %427 = vmatpush1.bf16.msra.mxu0 0
  %428 = vmatprep.subr.bf16.mxu0 0
  %429 = vmatpush1.bf16.msra.mxu0 0
  %430 = vmatprep.subr.bf16.mxu0 0
  %431 = vmatpush1.bf16.msra.mxu0 0
  %432 = vmatprep.subr.bf16.mxu0 0
  %433 = vmatpush1.bf16.msra.mxu0 0
  %434 = vmatprep.subr.bf16.mxu0 0
  %435 = vmatpush1.bf16.msra.mxu0 0
  %436 = vmatprep.subr.bf16.mxu0 0
  %437 = vmatpush1.bf16.msra.mxu0 0
  %438 = vmatprep.subr.bf16.mxu0 0
  %439 = vmatpush1.bf16.msra.mxu0 0
  %440 = vmatprep.subr.bf16.mxu0 0
  %441 = vmatpush1.bf16.msra.mxu0 0
  %442 = vmatprep.subr.bf16.mxu0 0
  %443 = vmatpush1.bf16.msra.mxu0 0
  %444 = vmatprep.subr.bf16.mxu0 0
  %445 = vmatpush1.bf16.msra.mxu0 0
  %446 = vmatprep.subr.bf16.mxu0 0
  %447 = vmatpush1.bf16.msra.mxu0 0
  %448 = vmatprep.subr.bf16.mxu0 0
  %449 = vmatpush1.bf16.msra.mxu0 0
  %450 = vmatprep.mubr.bf16.mxu0 0
  %451 = vmatmul.mubr.bf16.gmra.mrb[0].mxu0 %v416
  %v452 = vpop.f32.mrb[0].mxu0
  %v453 = vadd.f32 0.0, %v452
  %v454 = vpop.f32.mrb[0].mxu0
  %v455 = vpop.f32.mrb[0].mxu0
  %v456 = vadd.f32 0.0, %v455
  %v457 = vpop.f32.mrb[0].mxu0
  %458 = vdwg.mxu0
  %460 = vrot.lane.b32.xlu0 %v339, 112
  %v461 = vpop.permute.xlu0 %460
  %463 = vrot.lane.b32.xlu0 %v340, 112
  %v464 = vpop.permute.xlu0 %463
  %v466 = vsel %vm341, %v461, 0
  %v469 = vsel %vm341, %v464, 0
  %471 = vmatprep.subr.bf16.mxu0 0
  %472 = vmatpush1.bf16.xpose.msra.mxu0 %v469
  %473 = vmatprep.subr.bf16.mxu0 0
  %474 = vmatpush1.bf16.xpose.msra.mxu0 0
  %475 = vmatprep.subr.bf16.mxu0 0
  %476 = vmatpush1.bf16.xpose.msra.mxu0 0
  %477 = vmatprep.subr.bf16.mxu0 0
  %478 = vmatpush1.bf16.xpose.msra.mxu0 0
  %479 = vmatprep.subr.bf16.mxu0 0
  %480 = vmatpush1.bf16.xpose.msra.mxu0 0
  %481 = vmatprep.subr.bf16.mxu0 0
  %482 = vmatpush1.bf16.xpose.msra.mxu0 0
  %483 = vmatprep.subr.bf16.mxu0 0
  %484 = vmatpush1.bf16.xpose.msra.mxu0 0
  %485 = vmatprep.subr.bf16.mxu0 0
  %486 = vmatpush1.bf16.xpose.msra.mxu0 0
  %487 = vmatprep.subr.bf16.mxu0 0
  %488 = vmatpush1.bf16.xpose.msra.mxu0 0
  %489 = vmatprep.subr.bf16.mxu0 0
  %490 = vmatpush1.bf16.xpose.msra.mxu0 0
  %491 = vmatprep.subr.bf16.mxu0 0
  %492 = vmatpush1.bf16.xpose.msra.mxu0 0
  %493 = vmatprep.subr.bf16.mxu0 0
  %494 = vmatpush1.bf16.xpose.msra.mxu0 0
  %495 = vmatprep.subr.bf16.mxu0 0
  %496 = vmatpush1.bf16.xpose.msra.mxu0 0
  %497 = vmatprep.subr.bf16.mxu0 0
  %498 = vmatpush1.bf16.xpose.msra.mxu0 0
  %499 = vmatprep.subr.bf16.mxu0 0
  %500 = vmatpush1.bf16.xpose.msra.mxu0 0
  %501 = vmatprep.subr.bf16.mxu0 0
  %502 = vmatpush1.bf16.xpose.msra.mxu0 0
  %503 = vmatprep.mubr.bf16.mxu0 0
  %504 = vmatmul.mubr.bf16.gmra.mrb[0].mxu0 %v466
  %v505 = vpop.f32.mrb[0].mxu0
  %v506 = vadd.f32 0.0, %v505
  %v507 = vpop.f32.mrb[0].mxu0
  %v508 = vpop.f32.mrb[0].mxu0
  %v509 = vadd.f32 0.0, %v508
  %v510 = vpop.f32.mrb[0].mxu0
  %511 = vdwg.mxu0
  %v512 = vmul.f32 %v506, 0.17677669
  %v513 = vmul.f32 %v509, 0.17677669
  %v514 = vsel %vm341, %v512, -inf
  %515 = vmax.xlane.f32.xlu0 %v514
  %v516 = vpop.xlane.xlu0 %515
  %v517 = vsel %vm341, %v513, -inf
  %518 = vmax.xlane.f32.xlu0 %v517
  %v519 = vpop.xlane.xlu0 %518
  %v520 = vsub.f32 %v512, %v516
  %v521 = vsub.f32 %v513, %v519
  %v522 = vmul.f32 %v520, 1.442695
  %v523 = vpow.pop %v522
  %v524 = vmul.f32 %v521, 1.442695
  %v525 = vpow.pop %v524
  %v526 = vsel %vm341, %v523, 0.0
  %527 = vadd.xlane.f32.xlu0 %v526
  %v528 = vpop.xlane.xlu0 %527
  %v529 = vsel %vm341, %v525, 0.0
  %530 = vadd.xlane.f32.xlu0 %v529
  %v531 = vpop.xlane.xlu0 %530
  %v532 = vrcp.pop %v528
  %v533 = vrcp.pop %v531
  %v534 = vmul.f32 %v523, %v532
  %v535 = vmul.f32 %v525, %v533
  %v536 = vpack.c.bf16 %v535, %v534
  %538 = vrot.lane.b32.xlu0 %v414, 112
  %v539 = vpop.permute.xlu0 %538
  %v542 = vsel %vm341, %v536, 0
  %544 = vmatprep.subr.bf16.mxu0 0
  %545 = vmatpush1.bf16.msra.mxu0 %v539
  %546 = vmatprep.subr.bf16.mxu0 0
  %547 = vmatpush1.bf16.msra.mxu0 0
  %548 = vmatprep.subr.bf16.mxu0 0
  %549 = vmatpush1.bf16.msra.mxu0 0
  %550 = vmatprep.subr.bf16.mxu0 0
  %551 = vmatpush1.bf16.msra.mxu0 0
  %552 = vmatprep.subr.bf16.mxu0 0
  %553 = vmatpush1.bf16.msra.mxu0 0
  %554 = vmatprep.subr.bf16.mxu0 0
  %555 = vmatpush1.bf16.msra.mxu0 0
  %556 = vmatprep.subr.bf16.mxu0 0
  %557 = vmatpush1.bf16.msra.mxu0 0
  %558 = vmatprep.subr.bf16.mxu0 0
  %559 = vmatpush1.bf16.msra.mxu0 0
  %560 = vmatprep.subr.bf16.mxu0 0
  %561 = vmatpush1.bf16.msra.mxu0 0
  %562 = vmatprep.subr.bf16.mxu0 0
  %563 = vmatpush1.bf16.msra.mxu0 0
  %564 = vmatprep.subr.bf16.mxu0 0
  %565 = vmatpush1.bf16.msra.mxu0 0
  %566 = vmatprep.subr.bf16.mxu0 0
  %567 = vmatpush1.bf16.msra.mxu0 0
  %568 = vmatprep.subr.bf16.mxu0 0
  %569 = vmatpush1.bf16.msra.mxu0 0
  %570 = vmatprep.subr.bf16.mxu0 0
  %571 = vmatpush1.bf16.msra.mxu0 0
  %572 = vmatprep.subr.bf16.mxu0 0
  %573 = vmatpush1.bf16.msra.mxu0 0
  %574 = vmatprep.subr.bf16.mxu0 0
  %575 = vmatpush1.bf16.msra.mxu0 0
  %576 = vmatprep.mubr.bf16.mxu0 0
  %577 = vmatmul.mubr.bf16.gmra.mrb[0].mxu0 %v542
  %v578 = vpop.f32.mrb[0].mxu0
  %v579 = vadd.f32 0.0, %v578
  %v580 = vpop.f32.mrb[0].mxu0
  %v581 = vpop.f32.mrb[0].mxu0
  %v582 = vadd.f32 0.0, %v581
  %v583 = vpop.f32.mrb[0].mxu0
  %584 = vdwg.mxu0
  %585 = vrot.lane.b32.xlu0 %v339, 96
  %v586 = vpop.permute.xlu0 %585
  %587 = vrot.lane.b32.xlu0 %v340, 96
  %v588 = vpop.permute.xlu0 %587
  %v590 = vsel %vm341, %v586, 0
  %v593 = vsel %vm341, %v588, 0
  %595 = vmatprep.subr.bf16.mxu0 0
  %596 = vmatpush1.bf16.xpose.msra.mxu0 %v593
  %597 = vmatprep.subr.bf16.mxu0 0
  %598 = vmatpush1.bf16.xpose.msra.mxu0 0
  %599 = vmatprep.subr.bf16.mxu0 0
  %600 = vmatpush1.bf16.xpose.msra.mxu0 0
  %601 = vmatprep.subr.bf16.mxu0 0
  %602 = vmatpush1.bf16.xpose.msra.mxu0 0
  %603 = vmatprep.subr.bf16.mxu0 0
  %604 = vmatpush1.bf16.xpose.msra.mxu0 0
  %605 = vmatprep.subr.bf16.mxu0 0
  %606 = vmatpush1.bf16.xpose.msra.mxu0 0
  %607 = vmatprep.subr.bf16.mxu0 0
  %608 = vmatpush1.bf16.xpose.msra.mxu0 0
  %609 = vmatprep.subr.bf16.mxu0 0
  %610 = vmatpush1.bf16.xpose.msra.mxu0 0
  %611 = vmatprep.subr.bf16.mxu0 0
  %612 = vmatpush1.bf16.xpose.msra.mxu0 0
  %613 = vmatprep.subr.bf16.mxu0 0
  %614 = vmatpush1.bf16.xpose.msra.mxu0 0
  %615 = vmatprep.subr.bf16.mxu0 0
  %616 = vmatpush1.bf16.xpose.msra.mxu0 0
  %617 = vmatprep.subr.bf16.mxu0 0
  %618 = vmatpush1.bf16.xpose.msra.mxu0 0
  %619 = vmatprep.subr.bf16.mxu0 0
  %620 = vmatpush1.bf16.xpose.msra.mxu0 0
  %621 = vmatprep.subr.bf16.mxu0 0
  %622 = vmatpush1.bf16.xpose.msra.mxu0 0
  %623 = vmatprep.subr.bf16.mxu0 0
  %624 = vmatpush1.bf16.xpose.msra.mxu0 0
  %625 = vmatprep.subr.bf16.mxu0 0
  %626 = vmatpush1.bf16.xpose.msra.mxu0 0
  %627 = vmatprep.mubr.bf16.mxu0 0
  %628 = vmatmul.mubr.bf16.gmra.mrb[0].mxu0 %v590
  %v629 = vpop.f32.mrb[0].mxu0
  %v630 = vadd.f32 0.0, %v629
  %v631 = vpop.f32.mrb[0].mxu0
  %v632 = vpop.f32.mrb[0].mxu0
  %v633 = vadd.f32 0.0, %v632
  %v634 = vpop.f32.mrb[0].mxu0
  %635 = vdwg.mxu0
  %v636 = vmul.f32 %v630, 0.17677669
  %v637 = vmul.f32 %v633, 0.17677669
  %v638 = vsel %vm341, %v636, -inf
  %639 = vmax.xlane.f32.xlu0 %v638
  %v640 = vpop.xlane.xlu0 %639
  %v641 = vsel %vm341, %v637, -inf
  %642 = vmax.xlane.f32.xlu0 %v641
  %v643 = vpop.xlane.xlu0 %642
  %v644 = vsub.f32 %v636, %v640
  %v645 = vsub.f32 %v637, %v643
  %v646 = vmul.f32 %v644, 1.442695
  %v647 = vpow.pop %v646
  %v648 = vmul.f32 %v645, 1.442695
  %v649 = vpow.pop %v648
  %v650 = vsel %vm341, %v647, 0.0
  %651 = vadd.xlane.f32.xlu0 %v650
  %v652 = vpop.xlane.xlu0 %651
  %v653 = vsel %vm341, %v649, 0.0
  %654 = vadd.xlane.f32.xlu0 %v653
  %v655 = vpop.xlane.xlu0 %654
  %v656 = vrcp.pop %v652
  %v657 = vrcp.pop %v655
  %v658 = vmul.f32 %v647, %v656
  %v659 = vmul.f32 %v649, %v657
  %v660 = vpack.c.bf16 %v659, %v658
  %661 = vrot.lane.b32.xlu0 %v414, 96
  %v662 = vpop.permute.xlu0 %661
  %v665 = vsel %vm341, %v660, 0
  %667 = vmatprep.subr.bf16.mxu0 0
  %668 = vmatpush1.bf16.msra.mxu0 %v662
  %669 = vmatprep.subr.bf16.mxu0 0
  %670 = vmatpush1.bf16.msra.mxu0 0
  %671 = vmatprep.subr.bf16.mxu0 0
  %672 = vmatpush1.bf16.msra.mxu0 0
  %673 = vmatprep.subr.bf16.mxu0 0
  %674 = vmatpush1.bf16.msra.mxu0 0
  %675 = vmatprep.subr.bf16.mxu0 0
  %676 = vmatpush1.bf16.msra.mxu0 0
  %677 = vmatprep.subr.bf16.mxu0 0
  %678 = vmatpush1.bf16.msra.mxu0 0
  %679 = vmatprep.subr.bf16.mxu0 0
  %680 = vmatpush1.bf16.msra.mxu0 0
  %681 = vmatprep.subr.bf16.mxu0 0
  %682 = vmatpush1.bf16.msra.mxu0 0
  %683 = vmatprep.subr.bf16.mxu0 0
  %684 = vmatpush1.bf16.msra.mxu0 0
  %685 = vmatprep.subr.bf16.mxu0 0
  %686 = vmatpush1.bf16.msra.mxu0 0
  %687 = vmatprep.subr.bf16.mxu0 0
  %688 = vmatpush1.bf16.msra.mxu0 0
  %689 = vmatprep.subr.bf16.mxu0 0
  %690 = vmatpush1.bf16.msra.mxu0 0
  %691 = vmatprep.subr.bf16.mxu0 0
  %692 = vmatpush1.bf16.msra.mxu0 0
  %693 = vmatprep.subr.bf16.mxu0 0
  %694 = vmatpush1.bf16.msra.mxu0 0
  %695 = vmatprep.subr.bf16.mxu0 0
  %696 = vmatpush1.bf16.msra.mxu0 0
  %697 = vmatprep.subr.bf16.mxu0 0
  %698 = vmatpush1.bf16.msra.mxu0 0
  %699 = vmatprep.mubr.bf16.mxu0 0
  %700 = vmatmul.mubr.bf16.gmra.mrb[0].mxu0 %v665
  %v701 = vpop.f32.mrb[0].mxu0
  %v702 = vadd.f32 0.0, %v701
  %v703 = vpop.f32.mrb[0].mxu0
  %v704 = vpop.f32.mrb[0].mxu0
  %v705 = vadd.f32 0.0, %v704
  %v706 = vpop.f32.mrb[0].mxu0
  %707 = vdwg.mxu0
  %708 = vrot.lane.b32.xlu0 %v339, 80
  %v709 = vpop.permute.xlu0 %708
  %710 = vrot.lane.b32.xlu0 %v340, 80
  %v711 = vpop.permute.xlu0 %710
  %v713 = vsel %vm341, %v709, 0
  %v716 = vsel %vm341, %v711, 0
  %718 = vmatprep.subr.bf16.mxu0 0
  %719 = vmatpush1.bf16.xpose.msra.mxu0 %v716
  %720 = vmatprep.subr.bf16.mxu0 0
  %721 = vmatpush1.bf16.xpose.msra.mxu0 0
  %722 = vmatprep.subr.bf16.mxu0 0
  %723 = vmatpush1.bf16.xpose.msra.mxu0 0
  %724 = vmatprep.subr.bf16.mxu0 0
  %725 = vmatpush1.bf16.xpose.msra.mxu0 0
  %726 = vmatprep.subr.bf16.mxu0 0
  %727 = vmatpush1.bf16.xpose.msra.mxu0 0
  %728 = vmatprep.subr.bf16.mxu0 0
  %729 = vmatpush1.bf16.xpose.msra.mxu0 0
  %730 = vmatprep.subr.bf16.mxu0 0
  %731 = vmatpush1.bf16.xpose.msra.mxu0 0
  %732 = vmatprep.subr.bf16.mxu0 0
  %733 = vmatpush1.bf16.xpose.msra.mxu0 0
  %734 = vmatprep.subr.bf16.mxu0 0
  %735 = vmatpush1.bf16.xpose.msra.mxu0 0
  %736 = vmatprep.subr.bf16.mxu0 0
  %737 = vmatpush1.bf16.xpose.msra.mxu0 0
  %738 = vmatprep.subr.bf16.mxu0 0
  %739 = vmatpush1.bf16.xpose.msra.mxu0 0
  %740 = vmatprep.subr.bf16.mxu0 0
  %741 = vmatpush1.bf16.xpose.msra.mxu0 0
  %742 = vmatprep.subr.bf16.mxu0 0
  %743 = vmatpush1.bf16.xpose.msra.mxu0 0
  %744 = vmatprep.subr.bf16.mxu0 0
  %745 = vmatpush1.bf16.xpose.msra.mxu0 0
  %746 = vmatprep.subr.bf16.mxu0 0
  %747 = vmatpush1.bf16.xpose.msra.mxu0 0
  %748 = vmatprep.subr.bf16.mxu0 0
  %749 = vmatpush1.bf16.xpose.msra.mxu0 0
  %750 = vmatprep.mubr.bf16.mxu0 0
  %751 = vmatmul.mubr.bf16.gmra.mrb[0].mxu0 %v713
  %v752 = vpop.f32.mrb[0].mxu0
  %v753 = vadd.f32 0.0, %v752
  %v754 = vpop.f32.mrb[0].mxu0
  %v755 = vpop.f32.mrb[0].mxu0
  %v756 = vadd.f32 0.0, %v755
  %v757 = vpop.f32.mrb[0].mxu0
  %758 = vdwg.mxu0
  %v759 = vmul.f32 %v753, 0.17677669
  %v760 = vmul.f32 %v756, 0.17677669
  %v761 = vsel %vm341, %v759, -inf
  %762 = vmax.xlane.f32.xlu0 %v761
  %v763 = vpop.xlane.xlu0 %762
  %v764 = vsel %vm341, %v760, -inf
  %765 = vmax.xlane.f32.xlu0 %v764
  %v766 = vpop.xlane.xlu0 %765
  %v767 = vsub.f32 %v759, %v763
  %v768 = vsub.f32 %v760, %v766
  %v769 = vmul.f32 %v767, 1.442695
  %v770 = vpow.pop %v769
  %v771 = vmul.f32 %v768, 1.442695
  %v772 = vpow.pop %v771
  %v773 = vsel %vm341, %v770, 0.0
  %774 = vadd.xlane.f32.xlu0 %v773
  %v775 = vpop.xlane.xlu0 %774
  %v776 = vsel %vm341, %v772, 0.0
  %777 = vadd.xlane.f32.xlu0 %v776
  %v778 = vpop.xlane.xlu0 %777
  %v779 = vrcp.pop %v775
  %v780 = vrcp.pop %v778
  %v781 = vmul.f32 %v770, %v779
  %v782 = vmul.f32 %v772, %v780
  %v783 = vpack.c.bf16 %v782, %v781
  %784 = vrot.lane.b32.xlu0 %v414, 80
  %v785 = vpop.permute.xlu0 %784
  %v788 = vsel %vm341, %v783, 0
  %790 = vmatprep.subr.bf16.mxu0 0
  %791 = vmatpush1.bf16.msra.mxu0 %v785
  %792 = vmatprep.subr.bf16.mxu0 0
  %793 = vmatpush1.bf16.msra.mxu0 0
  %794 = vmatprep.subr.bf16.mxu0 0
  %795 = vmatpush1.bf16.msra.mxu0 0
  %796 = vmatprep.subr.bf16.mxu0 0
  %797 = vmatpush1.bf16.msra.mxu0 0
  %798 = vmatprep.subr.bf16.mxu0 0
  %799 = vmatpush1.bf16.msra.mxu0 0
  %800 = vmatprep.subr.bf16.mxu0 0
  %801 = vmatpush1.bf16.msra.mxu0 0
  %802 = vmatprep.subr.bf16.mxu0 0
  %803 = vmatpush1.bf16.msra.mxu0 0
  %804 = vmatprep.subr.bf16.mxu0 0
  %805 = vmatpush1.bf16.msra.mxu0 0
  %806 = vmatprep.subr.bf16.mxu0 0
  %807 = vmatpush1.bf16.msra.mxu0 0
  %808 = vmatprep.subr.bf16.mxu0 0
  %809 = vmatpush1.bf16.msra.mxu0 0
  %810 = vmatprep.subr.bf16.mxu0 0
  %811 = vmatpush1.bf16.msra.mxu0 0
  %812 = vmatprep.subr.bf16.mxu0 0
  %813 = vmatpush1.bf16.msra.mxu0 0
  %814 = vmatprep.subr.bf16.mxu0 0
  %815 = vmatpush1.bf16.msra.mxu0 0
  %816 = vmatprep.subr.bf16.mxu0 0
  %817 = vmatpush1.bf16.msra.mxu0 0
  %818 = vmatprep.subr.bf16.mxu0 0
  %819 = vmatpush1.bf16.msra.mxu0 0
  %820 = vmatprep.subr.bf16.mxu0 0
  %821 = vmatpush1.bf16.msra.mxu0 0
  %822 = vmatprep.mubr.bf16.mxu0 0
  %823 = vmatmul.mubr.bf16.gmra.mrb[0].mxu0 %v788
  %v824 = vpop.f32.mrb[0].mxu0
  %v825 = vadd.f32 0.0, %v824
  %v826 = vpop.f32.mrb[0].mxu0
  %v827 = vpop.f32.mrb[0].mxu0
  %v828 = vadd.f32 0.0, %v827
  %v829 = vpop.f32.mrb[0].mxu0
  %830 = vdwg.mxu0
  %833 = vrot.lane.b32.xlu0 %v579, 16
  %v834 = vpop.permute.xlu0 %833
  %835 = vrot.lane.b32.xlu0 %v582, 16
  %v836 = vpop.permute.xlu0 %835
  %841 = vrot.lane.b32.xlu0 %v702, 32
  %v842 = vpop.permute.xlu0 %841
  %843 = vrot.lane.b32.xlu0 %v705, 32
  %v844 = vpop.permute.xlu0 %843
  %849 = vrot.lane.b32.xlu0 %v825, 48
  %v850 = vpop.permute.xlu0 %849
  %851 = vrot.lane.b32.xlu0 %v828, 48
  %v852 = vpop.permute.xlu0 %851
  %v855 = vsel %vm341, %v453, %v834
  %v856 = vsel %vm341, %v456, %v836
  %v857 = vsel %vm159, %v855, %v842
  %v858 = vsel %vm159, %v856, %v844
  %vm859 = vcmask 392192
  %v860 = vsel %vm859, %v857, %v850
  %v861 = vsel %vm859, %v858, %v852
  %v862 = vpack.c.bf16 %v212, %v209
  %v863 = vpack.c.bf16 %v274, %v271
  %v865 = vsel %vm341, %v862, 0
  %v868 = vsel %vm341, %v863, 0
  %870 = vmatprep.subr.bf16.mxu0 0
  %871 = vmatpush1.bf16.xpose.msra.mxu0 %v868
  %872 = vmatprep.subr.bf16.mxu0 0
  %873 = vmatpush1.bf16.xpose.msra.mxu0 0
  %874 = vmatprep.subr.bf16.mxu0 0
  %875 = vmatpush1.bf16.xpose.msra.mxu0 0
  %876 = vmatprep.subr.bf16.mxu0 0
  %877 = vmatpush1.bf16.xpose.msra.mxu0 0
  %878 = vmatprep.subr.bf16.mxu0 0
  %879 = vmatpush1.bf16.xpose.msra.mxu0 0
  %880 = vmatprep.subr.bf16.mxu0 0
  %881 = vmatpush1.bf16.xpose.msra.mxu0 0
  %882 = vmatprep.subr.bf16.mxu0 0
  %883 = vmatpush1.bf16.xpose.msra.mxu0 0
  %884 = vmatprep.subr.bf16.mxu0 0
  %885 = vmatpush1.bf16.xpose.msra.mxu0 0
  %886 = vmatprep.subr.bf16.mxu0 0
  %887 = vmatpush1.bf16.xpose.msra.mxu0 0
  %888 = vmatprep.subr.bf16.mxu0 0
  %889 = vmatpush1.bf16.xpose.msra.mxu0 0
  %890 = vmatprep.subr.bf16.mxu0 0
  %891 = vmatpush1.bf16.xpose.msra.mxu0 0
  %892 = vmatprep.subr.bf16.mxu0 0
  %893 = vmatpush1.bf16.xpose.msra.mxu0 0
  %894 = vmatprep.subr.bf16.mxu0 0
  %895 = vmatpush1.bf16.xpose.msra.mxu0 0
  %896 = vmatprep.subr.bf16.mxu0 0
  %897 = vmatpush1.bf16.xpose.msra.mxu0 0
  %898 = vmatprep.subr.bf16.mxu0 0
  %899 = vmatpush1.bf16.xpose.msra.mxu0 0
  %900 = vmatprep.subr.bf16.mxu0 0
  %901 = vmatpush1.bf16.xpose.msra.mxu0 0
  %902 = vmatprep.mubr.bf16.mxu0 0
  %903 = vmatmul.mubr.bf16.gmra.mrb[0].mxu0 %v865
  %v904 = vpop.f32.mrb[0].mxu0
  %v905 = vadd.f32 0.0, %v904
  %v906 = vpop.f32.mrb[0].mxu0
  %v907 = vpop.f32.mrb[0].mxu0
  %v908 = vadd.f32 0.0, %v907
  %v909 = vpop.f32.mrb[0].mxu0
  %910 = vdwg.mxu0
  %v911 = vmul.f32 %v905, 0.17677669
  %v912 = vmul.f32 %v908, 0.17677669
  %v913 = vsel %vm341, %v911, -inf
  %914 = vmax.xlane.f32.xlu0 %v913
  %v915 = vpop.xlane.xlu0 %914
  %v916 = vsel %vm341, %v912, -inf
  %917 = vmax.xlane.f32.xlu0 %v916
  %v918 = vpop.xlane.xlu0 %917
  %v919 = vsub.f32 %v911, %v915
  %v920 = vsub.f32 %v912, %v918
  %v921 = vmul.f32 %v919, 1.442695
  %v922 = vpow.pop %v921
  %v923 = vmul.f32 %v920, 1.442695
  %v924 = vpow.pop %v923
  %v925 = vsel %vm341, %v922, 0.0
  %926 = vadd.xlane.f32.xlu0 %v925
  %v927 = vpop.xlane.xlu0 %926
  %v928 = vsel %vm341, %v924, 0.0
  %929 = vadd.xlane.f32.xlu0 %v928
  %v930 = vpop.xlane.xlu0 %929
  %v931 = vrcp.pop %v927
  %v932 = vrcp.pop %v930
  %v933 = vmul.f32 %v922, %v931
  %v934 = vmul.f32 %v924, %v932
  %v935 = vpack.c.bf16 %v934, %v933
  %v936 = vpack.c.bf16 %v336, %v333
  %v938 = vsel %vm341, %v935, 0
  %940 = vmatprep.subr.bf16.mxu0 0
  %941 = vmatpush1.bf16.msra.mxu0 %v936
  %942 = vmatprep.subr.bf16.mxu0 0
  %943 = vmatpush1.bf16.msra.mxu0 0
  %944 = vmatprep.subr.bf16.mxu0 0
  %945 = vmatpush1.bf16.msra.mxu0 0
  %946 = vmatprep.subr.bf16.mxu0 0
  %947 = vmatpush1.bf16.msra.mxu0 0
  %948 = vmatprep.subr.bf16.mxu0 0
  %949 = vmatpush1.bf16.msra.mxu0 0
  %950 = vmatprep.subr.bf16.mxu0 0
  %951 = vmatpush1.bf16.msra.mxu0 0
  %952 = vmatprep.subr.bf16.mxu0 0
  %953 = vmatpush1.bf16.msra.mxu0 0
  %954 = vmatprep.subr.bf16.mxu0 0
  %955 = vmatpush1.bf16.msra.mxu0 0
  %956 = vmatprep.subr.bf16.mxu0 0
  %957 = vmatpush1.bf16.msra.mxu0 0
  %958 = vmatprep.subr.bf16.mxu0 0
  %959 = vmatpush1.bf16.msra.mxu0 0
  %960 = vmatprep.subr.bf16.mxu0 0
  %961 = vmatpush1.bf16.msra.mxu0 0
  %962 = vmatprep.subr.bf16.mxu0 0
  %963 = vmatpush1.bf16.msra.mxu0 0
  %964 = vmatprep.subr.bf16.mxu0 0
  %965 = vmatpush1.bf16.msra.mxu0 0
  %966 = vmatprep.subr.bf16.mxu0 0
  %967 = vmatpush1.bf16.msra.mxu0 0
  %968 = vmatprep.subr.bf16.mxu0 0
  %969 = vmatpush1.bf16.msra.mxu0 0
  %970 = vmatprep.subr.bf16.mxu0 0
  %971 = vmatpush1.bf16.msra.mxu0 0
  %972 = vmatprep.mubr.bf16.mxu0 0
  %973 = vmatmul.mubr.bf16.gmra.mrb[0].mxu0 %v938
  %v974 = vpop.f32.mrb[0].mxu0
  %v975 = vadd.f32 0.0, %v974
  %v976 = vpop.f32.mrb[0].mxu0
  %v977 = vpop.f32.mrb[0].mxu0
  %v978 = vadd.f32 0.0, %v977
  %v979 = vpop.f32.mrb[0].mxu0
  %980 = vdwg.mxu0
  %982 = vrot.lane.b32.xlu0 %v862, 112
  %v983 = vpop.permute.xlu0 %982
  %985 = vrot.lane.b32.xlu0 %v863, 112
  %v986 = vpop.permute.xlu0 %985
  %v988 = vsel %vm341, %v983, 0
  %v991 = vsel %vm341, %v986, 0
  %993 = vmatprep.subr.bf16.mxu0 0
  %994 = vmatpush1.bf16.xpose.msra.mxu0 %v991
  %995 = vmatprep.subr.bf16.mxu0 0
  %996 = vmatpush1.bf16.xpose.msra.mxu0 0
  %997 = vmatprep.subr.bf16.mxu0 0
  %998 = vmatpush1.bf16.xpose.msra.mxu0 0
  %999 = vmatprep.subr.bf16.mxu0 0
  %1000 = vmatpush1.bf16.xpose.msra.mxu0 0
  %1001 = vmatprep.subr.bf16.mxu0 0
  %1002 = vmatpush1.bf16.xpose.msra.mxu0 0
  %1003 = vmatprep.subr.bf16.mxu0 0
  %1004 = vmatpush1.bf16.xpose.msra.mxu0 0
  %1005 = vmatprep.subr.bf16.mxu0 0
  %1006 = vmatpush1.bf16.xpose.msra.mxu0 0
  %1007 = vmatprep.subr.bf16.mxu0 0
  %1008 = vmatpush1.bf16.xpose.msra.mxu0 0
  %1009 = vmatprep.subr.bf16.mxu0 0
  %1010 = vmatpush1.bf16.xpose.msra.mxu0 0
  %1011 = vmatprep.subr.bf16.mxu0 0
  %1012 = vmatpush1.bf16.xpose.msra.mxu0 0
  %1013 = vmatprep.subr.bf16.mxu0 0
  %1014 = vmatpush1.bf16.xpose.msra.mxu0 0
  %1015 = vmatprep.subr.bf16.mxu0 0
  %1016 = vmatpush1.bf16.xpose.msra.mxu0 0
  %1017 = vmatprep.subr.bf16.mxu0 0
  %1018 = vmatpush1.bf16.xpose.msra.mxu0 0
  %1019 = vmatprep.subr.bf16.mxu0 0
  %1020 = vmatpush1.bf16.xpose.msra.mxu0 0
  %1021 = vmatprep.subr.bf16.mxu0 0
  %1022 = vmatpush1.bf16.xpose.msra.mxu0 0
  %1023 = vmatprep.subr.bf16.mxu0 0
  %1024 = vmatpush1.bf16.xpose.msra.mxu0 0
  %1025 = vmatprep.mubr.bf16.mxu0 0
  %1026 = vmatmul.mubr.bf16.gmra.mrb[0].mxu0 %v988
  %v1027 = vpop.f32.mrb[0].mxu0
  %v1028 = vadd.f32 0.0, %v1027
  %v1029 = vpop.f32.mrb[0].mxu0
  %v1030 = vpop.f32.mrb[0].mxu0
  %v1031 = vadd.f32 0.0, %v1030
  %v1032 = vpop.f32.mrb[0].mxu0
  %1033 = vdwg.mxu0
  %v1034 = vmul.f32 %v1028, 0.17677669
  %v1035 = vmul.f32 %v1031, 0.17677669
  %v1036 = vsel %vm341, %v1034, -inf
  %1037 = vmax.xlane.f32.xlu0 %v1036
  %v1038 = vpop.xlane.xlu0 %1037
  %v1039 = vsel %vm341, %v1035, -inf
  %1040 = vmax.xlane.f32.xlu0 %v1039
  %v1041 = vpop.xlane.xlu0 %1040
  %v1042 = vsub.f32 %v1034, %v1038
  %v1043 = vsub.f32 %v1035, %v1041
  %v1044 = vmul.f32 %v1042, 1.442695
  %v1045 = vpow.pop %v1044
  %v1046 = vmul.f32 %v1043, 1.442695
  %v1047 = vpow.pop %v1046
  %v1048 = vsel %vm341, %v1045, 0.0
  %1049 = vadd.xlane.f32.xlu0 %v1048
  %v1050 = vpop.xlane.xlu0 %1049
  %v1051 = vsel %vm341, %v1047, 0.0
  %1052 = vadd.xlane.f32.xlu0 %v1051
  %v1053 = vpop.xlane.xlu0 %1052
  %v1054 = vrcp.pop %v1050
  %v1055 = vrcp.pop %v1053
  %v1056 = vmul.f32 %v1045, %v1054
  %v1057 = vmul.f32 %v1047, %v1055
  %v1058 = vpack.c.bf16 %v1057, %v1056
  %1060 = vrot.lane.b32.xlu0 %v936, 112
  %v1061 = vpop.permute.xlu0 %1060
  %v1064 = vsel %vm341, %v1058, 0
  %1066 = vmatprep.subr.bf16.mxu0 0
  %1067 = vmatpush1.bf16.msra.mxu0 %v1061
  %1068 = vmatprep.subr.bf16.mxu0 0
  %1069 = vmatpush1.bf16.msra.mxu0 0
  %1070 = vmatprep.subr.bf16.mxu0 0
  %1071 = vmatpush1.bf16.msra.mxu0 0
  %1072 = vmatprep.subr.bf16.mxu0 0
  %1073 = vmatpush1.bf16.msra.mxu0 0
  %1074 = vmatprep.subr.bf16.mxu0 0
  %1075 = vmatpush1.bf16.msra.mxu0 0
  %1076 = vmatprep.subr.bf16.mxu0 0
  %1077 = vmatpush1.bf16.msra.mxu0 0
  %1078 = vmatprep.subr.bf16.mxu0 0
  %1079 = vmatpush1.bf16.msra.mxu0 0
  %1080 = vmatprep.subr.bf16.mxu0 0
  %1081 = vmatpush1.bf16.msra.mxu0 0
  %1082 = vmatprep.subr.bf16.mxu0 0
  %1083 = vmatpush1.bf16.msra.mxu0 0
  %1084 = vmatprep.subr.bf16.mxu0 0
  %1085 = vmatpush1.bf16.msra.mxu0 0
  %1086 = vmatprep.subr.bf16.mxu0 0
  %1087 = vmatpush1.bf16.msra.mxu0 0
  %1088 = vmatprep.subr.bf16.mxu0 0
  %1089 = vmatpush1.bf16.msra.mxu0 0
  %1090 = vmatprep.subr.bf16.mxu0 0
  %1091 = vmatpush1.bf16.msra.mxu0 0
  %1092 = vmatprep.subr.bf16.mxu0 0
  %1093 = vmatpush1.bf16.msra.mxu0 0
  %1094 = vmatprep.subr.bf16.mxu0 0
  %1095 = vmatpush1.bf16.msra.mxu0 0
  %1096 = vmatprep.subr.bf16.mxu0 0
  %1097 = vmatpush1.bf16.msra.mxu0 0
  %1098 = vmatprep.mubr.bf16.mxu0 0
  %1099 = vmatmul.mubr.bf16.gmra.mrb[0].mxu0 %v1064
  %v1100 = vpop.f32.mrb[0].mxu0
  %v1101 = vadd.f32 0.0, %v1100
  %v1102 = vpop.f32.mrb[0].mxu0
  %v1103 = vpop.f32.mrb[0].mxu0
  %v1104 = vadd.f32 0.0, %v1103
  %v1105 = vpop.f32.mrb[0].mxu0
  %1106 = vdwg.mxu0
  %1107 = vrot.lane.b32.xlu0 %v862, 96
  %v1108 = vpop.permute.xlu0 %1107
  %1109 = vrot.lane.b32.xlu0 %v863, 96
  %v1110 = vpop.permute.xlu0 %1109
  %v1112 = vsel %vm341, %v1108, 0
  %v1115 = vsel %vm341, %v1110, 0
  %1117 = vmatprep.subr.bf16.mxu0 0
  %1118 = vmatpush1.bf16.xpose.msra.mxu0 %v1115
  %1119 = vmatprep.subr.bf16.mxu0 0
  %1120 = vmatpush1.bf16.xpose.msra.mxu0 0
  %1121 = vmatprep.subr.bf16.mxu0 0
  %1122 = vmatpush1.bf16.xpose.msra.mxu0 0
  %1123 = vmatprep.subr.bf16.mxu0 0
  %1124 = vmatpush1.bf16.xpose.msra.mxu0 0
  %1125 = vmatprep.subr.bf16.mxu0 0
  %1126 = vmatpush1.bf16.xpose.msra.mxu0 0
  %1127 = vmatprep.subr.bf16.mxu0 0
  %1128 = vmatpush1.bf16.xpose.msra.mxu0 0
  %1129 = vmatprep.subr.bf16.mxu0 0
  %1130 = vmatpush1.bf16.xpose.msra.mxu0 0
  %1131 = vmatprep.subr.bf16.mxu0 0
  %1132 = vmatpush1.bf16.xpose.msra.mxu0 0
  %1133 = vmatprep.subr.bf16.mxu0 0
  %1134 = vmatpush1.bf16.xpose.msra.mxu0 0
  %1135 = vmatprep.subr.bf16.mxu0 0
  %1136 = vmatpush1.bf16.xpose.msra.mxu0 0
  %1137 = vmatprep.subr.bf16.mxu0 0
  %1138 = vmatpush1.bf16.xpose.msra.mxu0 0
  %1139 = vmatprep.subr.bf16.mxu0 0
  %1140 = vmatpush1.bf16.xpose.msra.mxu0 0
  %1141 = vmatprep.subr.bf16.mxu0 0
  %1142 = vmatpush1.bf16.xpose.msra.mxu0 0
  %1143 = vmatprep.subr.bf16.mxu0 0
  %1144 = vmatpush1.bf16.xpose.msra.mxu0 0
  %1145 = vmatprep.subr.bf16.mxu0 0
  %1146 = vmatpush1.bf16.xpose.msra.mxu0 0
  %1147 = vmatprep.subr.bf16.mxu0 0
  %1148 = vmatpush1.bf16.xpose.msra.mxu0 0
  %1149 = vmatprep.mubr.bf16.mxu0 0
  %1150 = vmatmul.mubr.bf16.gmra.mrb[0].mxu0 %v1112
  %v1151 = vpop.f32.mrb[0].mxu0
  %v1152 = vadd.f32 0.0, %v1151
  %v1153 = vpop.f32.mrb[0].mxu0
  %v1154 = vpop.f32.mrb[0].mxu0
  %v1155 = vadd.f32 0.0, %v1154
  %v1156 = vpop.f32.mrb[0].mxu0
  %1157 = vdwg.mxu0
  %v1158 = vmul.f32 %v1152, 0.17677669
  %v1159 = vmul.f32 %v1155, 0.17677669
  %v1160 = vsel %vm341, %v1158, -inf
  %1161 = vmax.xlane.f32.xlu0 %v1160
  %v1162 = vpop.xlane.xlu0 %1161
  %v1163 = vsel %vm341, %v1159, -inf
  %1164 = vmax.xlane.f32.xlu0 %v1163
  %v1165 = vpop.xlane.xlu0 %1164
  %v1166 = vsub.f32 %v1158, %v1162
  %v1167 = vsub.f32 %v1159, %v1165
  %v1168 = vmul.f32 %v1166, 1.442695
  %v1169 = vpow.pop %v1168
  %v1170 = vmul.f32 %v1167, 1.442695
  %v1171 = vpow.pop %v1170
  %v1172 = vsel %vm341, %v1169, 0.0
  %1173 = vadd.xlane.f32.xlu0 %v1172
  %v1174 = vpop.xlane.xlu0 %1173
  %v1175 = vsel %vm341, %v1171, 0.0
  %1176 = vadd.xlane.f32.xlu0 %v1175
  %v1177 = vpop.xlane.xlu0 %1176
  %v1178 = vrcp.pop %v1174
  %v1179 = vrcp.pop %v1177
  %v1180 = vmul.f32 %v1169, %v1178
  %v1181 = vmul.f32 %v1171, %v1179
  %v1182 = vpack.c.bf16 %v1181, %v1180
  %1183 = vrot.lane.b32.xlu0 %v936, 96
  %v1184 = vpop.permute.xlu0 %1183
  %v1187 = vsel %vm341, %v1182, 0
  %1189 = vmatprep.subr.bf16.mxu0 0
  %1190 = vmatpush1.bf16.msra.mxu0 %v1184
  %1191 = vmatprep.subr.bf16.mxu0 0
  %1192 = vmatpush1.bf16.msra.mxu0 0
  %1193 = vmatprep.subr.bf16.mxu0 0
  %1194 = vmatpush1.bf16.msra.mxu0 0
  %1195 = vmatprep.subr.bf16.mxu0 0
  %1196 = vmatpush1.bf16.msra.mxu0 0
  %1197 = vmatprep.subr.bf16.mxu0 0
  %1198 = vmatpush1.bf16.msra.mxu0 0
  %1199 = vmatprep.subr.bf16.mxu0 0
  %1200 = vmatpush1.bf16.msra.mxu0 0
  %1201 = vmatprep.subr.bf16.mxu0 0
  %1202 = vmatpush1.bf16.msra.mxu0 0
  %1203 = vmatprep.subr.bf16.mxu0 0
  %1204 = vmatpush1.bf16.msra.mxu0 0
  %1205 = vmatprep.subr.bf16.mxu0 0
  %1206 = vmatpush1.bf16.msra.mxu0 0
  %1207 = vmatprep.subr.bf16.mxu0 0
  %1208 = vmatpush1.bf16.msra.mxu0 0
  %1209 = vmatprep.subr.bf16.mxu0 0
  %1210 = vmatpush1.bf16.msra.mxu0 0
  %1211 = vmatprep.subr.bf16.mxu0 0
  %1212 = vmatpush1.bf16.msra.mxu0 0
  %1213 = vmatprep.subr.bf16.mxu0 0
  %1214 = vmatpush1.bf16.msra.mxu0 0
  %1215 = vmatprep.subr.bf16.mxu0 0
  %1216 = vmatpush1.bf16.msra.mxu0 0
  %1217 = vmatprep.subr.bf16.mxu0 0
  %1218 = vmatpush1.bf16.msra.mxu0 0
  %1219 = vmatprep.subr.bf16.mxu0 0
  %1220 = vmatpush1.bf16.msra.mxu0 0
  %1221 = vmatprep.mubr.bf16.mxu0 0
  %1222 = vmatmul.mubr.bf16.gmra.mrb[0].mxu0 %v1187
  %v1223 = vpop.f32.mrb[0].mxu0
  %v1224 = vadd.f32 0.0, %v1223
  %v1225 = vpop.f32.mrb[0].mxu0
  %v1226 = vpop.f32.mrb[0].mxu0
  %v1227 = vadd.f32 0.0, %v1226
  %v1228 = vpop.f32.mrb[0].mxu0
  %1229 = vdwg.mxu0
  %1230 = vrot.lane.b32.xlu0 %v862, 80
  %v1231 = vpop.permute.xlu0 %1230
  %1232 = vrot.lane.b32.xlu0 %v863, 80
  %v1233 = vpop.permute.xlu0 %1232
  %v1235 = vsel %vm341, %v1231, 0
  %v1238 = vsel %vm341, %v1233, 0
  %1240 = vmatprep.subr.bf16.mxu0 0
  %1241 = vmatpush1.bf16.xpose.msra.mxu0 %v1238
  %1242 = vmatprep.subr.bf16.mxu0 0
  %1243 = vmatpush1.bf16.xpose.msra.mxu0 0
  %1244 = vmatprep.subr.bf16.mxu0 0
  %1245 = vmatpush1.bf16.xpose.msra.mxu0 0
  %1246 = vmatprep.subr.bf16.mxu0 0
  %1247 = vmatpush1.bf16.xpose.msra.mxu0 0
  %1248 = vmatprep.subr.bf16.mxu0 0
  %1249 = vmatpush1.bf16.xpose.msra.mxu0 0
  %1250 = vmatprep.subr.bf16.mxu0 0
  %1251 = vmatpush1.bf16.xpose.msra.mxu0 0
  %1252 = vmatprep.subr.bf16.mxu0 0
  %1253 = vmatpush1.bf16.xpose.msra.mxu0 0
  %1254 = vmatprep.subr.bf16.mxu0 0
  %1255 = vmatpush1.bf16.xpose.msra.mxu0 0
  %1256 = vmatprep.subr.bf16.mxu0 0
  %1257 = vmatpush1.bf16.xpose.msra.mxu0 0
  %1258 = vmatprep.subr.bf16.mxu0 0
  %1259 = vmatpush1.bf16.xpose.msra.mxu0 0
  %1260 = vmatprep.subr.bf16.mxu0 0
  %1261 = vmatpush1.bf16.xpose.msra.mxu0 0
  %1262 = vmatprep.subr.bf16.mxu0 0
  %1263 = vmatpush1.bf16.xpose.msra.mxu0 0
  %1264 = vmatprep.subr.bf16.mxu0 0
  %1265 = vmatpush1.bf16.xpose.msra.mxu0 0
  %1266 = vmatprep.subr.bf16.mxu0 0
  %1267 = vmatpush1.bf16.xpose.msra.mxu0 0
  %1268 = vmatprep.subr.bf16.mxu0 0
  %1269 = vmatpush1.bf16.xpose.msra.mxu0 0
  %1270 = vmatprep.subr.bf16.mxu0 0
  %1271 = vmatpush1.bf16.xpose.msra.mxu0 0
  %1272 = vmatprep.mubr.bf16.mxu0 0
  %1273 = vmatmul.mubr.bf16.gmra.mrb[0].mxu0 %v1235
  %v1274 = vpop.f32.mrb[0].mxu0
  %v1275 = vadd.f32 0.0, %v1274
  %v1276 = vpop.f32.mrb[0].mxu0
  %v1277 = vpop.f32.mrb[0].mxu0
  %v1278 = vadd.f32 0.0, %v1277
  %v1279 = vpop.f32.mrb[0].mxu0
  %1280 = vdwg.mxu0
  %v1281 = vmul.f32 %v1275, 0.17677669
  %v1282 = vmul.f32 %v1278, 0.17677669
  %v1283 = vsel %vm341, %v1281, -inf
  %1284 = vmax.xlane.f32.xlu0 %v1283
  %v1285 = vpop.xlane.xlu0 %1284
  %v1286 = vsel %vm341, %v1282, -inf
  %1287 = vmax.xlane.f32.xlu0 %v1286
  %v1288 = vpop.xlane.xlu0 %1287
  %v1289 = vsub.f32 %v1281, %v1285
  %v1290 = vsub.f32 %v1282, %v1288
  %v1291 = vmul.f32 %v1289, 1.442695
  %v1292 = vpow.pop %v1291
  %v1293 = vmul.f32 %v1290, 1.442695
  %v1294 = vpow.pop %v1293
  %v1295 = vsel %vm341, %v1292, 0.0
  %1296 = vadd.xlane.f32.xlu0 %v1295
  %v1297 = vpop.xlane.xlu0 %1296
  %v1298 = vsel %vm341, %v1294, 0.0
  %1299 = vadd.xlane.f32.xlu0 %v1298
  %v1300 = vpop.xlane.xlu0 %1299
  %v1301 = vrcp.pop %v1297
  %v1302 = vrcp.pop %v1300
  %v1303 = vmul.f32 %v1292, %v1301
  %v1304 = vmul.f32 %v1294, %v1302
  %v1305 = vpack.c.bf16 %v1304, %v1303
  %1306 = vrot.lane.b32.xlu0 %v936, 80
  %v1307 = vpop.permute.xlu0 %1306
  %v1310 = vsel %vm341, %v1305, 0
  %1312 = vmatprep.subr.bf16.mxu0 0
  %1313 = vmatpush1.bf16.msra.mxu0 %v1307
  %1314 = vmatprep.subr.bf16.mxu0 0
  %1315 = vmatpush1.bf16.msra.mxu0 0
  %1316 = vmatprep.subr.bf16.mxu0 0
  %1317 = vmatpush1.bf16.msra.mxu0 0
  %1318 = vmatprep.subr.bf16.mxu0 0
  %1319 = vmatpush1.bf16.msra.mxu0 0
  %1320 = vmatprep.subr.bf16.mxu0 0
  %1321 = vmatpush1.bf16.msra.mxu0 0
  %1322 = vmatprep.subr.bf16.mxu0 0
  %1323 = vmatpush1.bf16.msra.mxu0 0
  %1324 = vmatprep.subr.bf16.mxu0 0
  %1325 = vmatpush1.bf16.msra.mxu0 0
  %1326 = vmatprep.subr.bf16.mxu0 0
  %1327 = vmatpush1.bf16.msra.mxu0 0
  %1328 = vmatprep.subr.bf16.mxu0 0
  %1329 = vmatpush1.bf16.msra.mxu0 0
  %1330 = vmatprep.subr.bf16.mxu0 0
  %1331 = vmatpush1.bf16.msra.mxu0 0
  %1332 = vmatprep.subr.bf16.mxu0 0
  %1333 = vmatpush1.bf16.msra.mxu0 0
  %1334 = vmatprep.subr.bf16.mxu0 0
  %1335 = vmatpush1.bf16.msra.mxu0 0
  %1336 = vmatprep.subr.bf16.mxu0 0
  %1337 = vmatpush1.bf16.msra.mxu0 0
  %1338 = vmatprep.subr.bf16.mxu0 0
  %1339 = vmatpush1.bf16.msra.mxu0 0
  %1340 = vmatprep.subr.bf16.mxu0 0
  %1341 = vmatpush1.bf16.msra.mxu0 0
  %1342 = vmatprep.subr.bf16.mxu0 0
  %1343 = vmatpush1.bf16.msra.mxu0 0
  %1344 = vmatprep.mubr.bf16.mxu0 0
  %1345 = vmatmul.mubr.bf16.gmra.mrb[0].mxu0 %v1310
  %v1346 = vpop.f32.mrb[0].mxu0
  %v1347 = vadd.f32 0.0, %v1346
  %v1348 = vpop.f32.mrb[0].mxu0
  %v1349 = vpop.f32.mrb[0].mxu0
  %v1350 = vadd.f32 0.0, %v1349
  %v1351 = vpop.f32.mrb[0].mxu0
  %1352 = vdwg.mxu0
  %1355 = vrot.lane.b32.xlu0 %v1101, 16
  %v1356 = vpop.permute.xlu0 %1355
  %1357 = vrot.lane.b32.xlu0 %v1104, 16
  %v1358 = vpop.permute.xlu0 %1357
  %1363 = vrot.lane.b32.xlu0 %v1224, 32
  %v1364 = vpop.permute.xlu0 %1363
  %1365 = vrot.lane.b32.xlu0 %v1227, 32
  %v1366 = vpop.permute.xlu0 %1365
  %1371 = vrot.lane.b32.xlu0 %v1347, 48
  %v1372 = vpop.permute.xlu0 %1371
  %1373 = vrot.lane.b32.xlu0 %v1350, 48
  %v1374 = vpop.permute.xlu0 %1373
  %v1377 = vsel %vm341, %v975, %v1356
  %v1378 = vsel %vm341, %v978, %v1358
  %v1379 = vsel %vm159, %v1377, %v1364
  %v1380 = vsel %vm159, %v1378, %v1366
  %v1381 = vsel %vm859, %v1379, %v1372
  %v1382 = vsel %vm859, %v1380, %v1374
  %v1383 = vld [vmem:[%s9] sm:$0xff]
  %v1384 = vld [vmem:[%s9 + $0x8] sm:$0xff]
  %v1385 = vld [vmem:[%s9 + $0x10] sm:$0xff]
  %v1386 = vld [vmem:[%s9 + $0x18] sm:$0xff]
  %v1387 = vld [vmem:[%s9 + $0x20] sm:$0xff]
  %v1388 = vld [vmem:[%s9 + $0x28] sm:$0xff]
  %v1389 = vld [vmem:[%s9 + $0x30] sm:$0xff]
  %v1390 = vld [vmem:[%s9 + $0x38] sm:$0xff]
  %v1391 = vpack.c.bf16 %v861, %v860
  %v1392 = vpack.c.bf16 %v1382, %v1381
  %v1393 = vpack.c.bf16 %v1384, %v1383
  %v1394 = vpack.c.bf16 %v1386, %v1385
  %v1395 = vpack.c.bf16 %v1388, %v1387
  %v1396 = vpack.c.bf16 %v1390, %v1389
  %v1397 = vld [vmem:[%s10] sm:$0x1]
  %v1399 = vlaneseq
  %v1400 = vshrl.u32 %v1399, 7
  %v1401 = vsub.s32 0, %v1400
  %v1402 = vrot.slane %v1397, %v1401
  %vm1404 = vcmask 523264
  %v1406 = vsel %vm1404, %v1391, 0
  %v1409 = vsel %vm1404, %v1392, 0
  %1411 = vmatprep.subr.bf16.mxu0 0
  %1412 = vmatpush1.bf16.msra.mxu0 %v1393
  %1413 = vmatprep.subr.bf16.mxu0 0
  %1414 = vmatpush1.bf16.msra.mxu0 %v1394
  %1415 = vmatprep.subr.bf16.mxu0 0
  %1416 = vmatpush1.bf16.msra.mxu0 %v1395
  %1417 = vmatprep.subr.bf16.mxu0 0
  %1418 = vmatpush1.bf16.msra.mxu0 %v1396
  %1419 = vmatprep.subr.bf16.mxu0 0
  %1420 = vmatpush1.bf16.msra.mxu0 0
  %1421 = vmatprep.subr.bf16.mxu0 0
  %1422 = vmatpush1.bf16.msra.mxu0 0
  %1423 = vmatprep.subr.bf16.mxu0 0
  %1424 = vmatpush1.bf16.msra.mxu0 0
  %1425 = vmatprep.subr.bf16.mxu0 0
  %1426 = vmatpush1.bf16.msra.mxu0 0
  %1427 = vmatprep.subr.bf16.mxu0 0
  %1428 = vmatpush1.bf16.msra.mxu0 0
  %1429 = vmatprep.subr.bf16.mxu0 0
  %1430 = vmatpush1.bf16.msra.mxu0 0
  %1431 = vmatprep.subr.bf16.mxu0 0
  %1432 = vmatpush1.bf16.msra.mxu0 0
  %1433 = vmatprep.subr.bf16.mxu0 0
  %1434 = vmatpush1.bf16.msra.mxu0 0
  %1435 = vmatprep.subr.bf16.mxu0 0
  %1436 = vmatpush1.bf16.msra.mxu0 0
  %1437 = vmatprep.subr.bf16.mxu0 0
  %1438 = vmatpush1.bf16.msra.mxu0 0
  %1439 = vmatprep.subr.bf16.mxu0 0
  %1440 = vmatpush1.bf16.msra.mxu0 0
  %1441 = vmatprep.subr.bf16.mxu0 0
  %1442 = vmatpush1.bf16.msra.mxu0 0
  %1443 = vmatprep.mubr.bf16.mxu0 0
  %1444 = vmatmul.mubr.bf16.gmra.mrb[0].mxu0 %v1406
  %v1445 = vpop.f32.mrb[0].mxu0
  %v1446 = vadd.f32 %v1402, %v1445
  %v1447 = vpop.f32.mrb[0].mxu0
  %v1448 = vpop.f32.mrb[0].mxu0
  %v1449 = vadd.f32 %v1402, %v1448
  %v1450 = vpop.f32.mrb[0].mxu0
  %1451 = vmatprep.mubr.bf16.mxu0 0
  %1452 = vmatmul.mubr.bf16.gmra.mrb[0].mxu0 %v1409
  %v1453 = vpop.f32.mrb[0].mxu0
  %v1454 = vadd.f32 %v1402, %v1453
  %v1455 = vpop.f32.mrb[0].mxu0
  %v1456 = vpop.f32.mrb[0].mxu0
  %v1457 = vadd.f32 %v1402, %v1456
  %v1458 = vpop.f32.mrb[0].mxu0
  %1459 = vdwg.mxu0
  %v1460 = vadd.f32 %v130, %v1446
  %v1461 = vadd.f32 %v133, %v1449
  %v1462 = vadd.f32 %v138, %v1454
  %v1463 = vadd.f32 %v141, %v1457
  %v1464 = vld [vmem:[%s11] sm:$0x1]
  %v1465 = vld [vmem:[%s12] sm:$0x1]
  %v1466 = vsel %vm159, %v1460, 0.0
  %1467 = vadd.xlane.f32.xlu0 %v1466
  %v1468 = vpop.xlane.xlu0 %1467
  %v1469 = vsel %vm159, %v1461, 0.0
  %1470 = vadd.xlane.f32.xlu0 %v1469
  %v1471 = vpop.xlane.xlu0 %1470
  %v1472 = vsel %vm159, %v1462, 0.0
  %1473 = vadd.xlane.f32.xlu0 %v1472
  %v1474 = vpop.xlane.xlu0 %1473
  %v1475 = vsel %vm159, %v1463, 0.0
  %1476 = vadd.xlane.f32.xlu0 %v1475
  %v1477 = vpop.xlane.xlu0 %1476
  %v1478 = vrcp.pop 32.0
  %v1479 = vmul.f32 %v1468, %v1478
  %v1480 = vmul.f32 %v1471, %v1478
  %v1481 = vmul.f32 %v1474, %v1478
  %v1482 = vmul.f32 %v1477, %v1478
  %v1483 = vsub.f32 %v1460, %v1479
  %v1484 = vsub.f32 %v1461, %v1480
  %v1485 = vsub.f32 %v1462, %v1481
  %v1486 = vsub.f32 %v1463, %v1482
  %v1487 = vmul.f32 %v1483, %v1483
  %v1488 = vmul.f32 %v1484, %v1484
  %v1489 = vmul.f32 %v1485, %v1485
  %v1490 = vmul.f32 %v1486, %v1486
  %v1491 = vsel %vm159, %v1487, 0.0
  %1492 = vadd.xlane.f32.xlu0 %v1491
  %v1493 = vpop.xlane.xlu0 %1492
  %v1494 = vsel %vm159, %v1488, 0.0
  %1495 = vadd.xlane.f32.xlu0 %v1494
  %v1496 = vpop.xlane.xlu0 %1495
  %v1497 = vsel %vm159, %v1489, 0.0
  %1498 = vadd.xlane.f32.xlu0 %v1497
  %v1499 = vpop.xlane.xlu0 %1498
  %v1500 = vsel %vm159, %v1490, 0.0
  %1501 = vadd.xlane.f32.xlu0 %v1500
  %v1502 = vpop.xlane.xlu0 %1501
  %v1503 = vmul.f32 %v1493, %v1478
  %v1504 = vmul.f32 %v1496, %v1478
  %v1505 = vmul.f32 %v1499, %v1478
  %v1506 = vmul.f32 %v1502, %v1478
  %v1507 = vadd.f32 %v1503, 1e-05
  %v1508 = vadd.f32 %v1504, 1e-05
  %v1509 = vadd.f32 %v1505, 1e-05
  %v1510 = vadd.f32 %v1506, 1e-05
  %v1511 = vrsqrt.pop %v1507
  %v1512 = vrsqrt.pop %v1508
  %v1513 = vrsqrt.pop %v1509
  %v1514 = vrsqrt.pop %v1510
  %v1515 = vmul.f32 %v1483, %v1511
  %v1516 = vmul.f32 %v1484, %v1512
  %v1517 = vmul.f32 %v1485, %v1513
  %v1518 = vmul.f32 %v1486, %v1514
  %v1520 = vlaneseq
  %v1521 = vshrl.u32 %v1520, 7
  %v1522 = vsub.s32 0, %v1521
  %v1523 = vrot.slane %v1464, %v1522
  %v1525 = vmul.f32 %v1515, %v1523
  %v1526 = vmul.f32 %v1516, %v1523
  %v1527 = vmul.f32 %v1517, %v1523
  %v1528 = vmul.f32 %v1518, %v1523
  %v1530 = vlaneseq
  %v1531 = vshrl.u32 %v1530, 7
  %v1532 = vsub.s32 0, %v1531
  %v1533 = vrot.slane %v1465, %v1532
  %v1535 = vadd.f32 %v1525, %v1533
  %v1536 = vadd.f32 %v1526, %v1533
  %v1537 = vadd.f32 %v1527, %v1533
  %v1538 = vadd.f32 %v1528, %v1533
  %v1539 = vld [vmem:[%s13] sm:$0xff]
  %v1540 = vld [vmem:[%s13 + $0x8] sm:$0xff]
  %v1541 = vld [vmem:[%s13 + $0x10] sm:$0xff]
  %v1542 = vld [vmem:[%s13 + $0x18] sm:$0xff]
  %v1543 = vpack.c.bf16 %v1536, %v1535
  %v1544 = vpack.c.bf16 %v1538, %v1537
  %v1545 = vpack.c.bf16 %v1540, %v1539
  %v1546 = vpack.c.bf16 %v1542, %v1541
  %v1547 = vld [vmem:[%s14] sm:$0x1]
  %v1549 = vlaneseq
  %v1550 = vshrl.u32 %v1549, 7
  %v1551 = vsub.s32 0, %v1550
  %v1552 = vrot.slane %v1547, %v1551
  %v1555 = vsel %vm159, %v1543, 0
  %v1558 = vsel %vm159, %v1544, 0
  %1560 = vmatprep.subr.bf16.mxu0 0
  %1561 = vmatpush1.bf16.msra.mxu0 %v1545
  %1562 = vmatprep.subr.bf16.mxu0 0
  %1563 = vmatpush1.bf16.msra.mxu0 %v1546
  %1564 = vmatprep.subr.bf16.mxu0 0
  %1565 = vmatpush1.bf16.msra.mxu0 0
  %1566 = vmatprep.subr.bf16.mxu0 0
  %1567 = vmatpush1.bf16.msra.mxu0 0
  %1568 = vmatprep.subr.bf16.mxu0 0
  %1569 = vmatpush1.bf16.msra.mxu0 0
  %1570 = vmatprep.subr.bf16.mxu0 0
  %1571 = vmatpush1.bf16.msra.mxu0 0
  %1572 = vmatprep.subr.bf16.mxu0 0
  %1573 = vmatpush1.bf16.msra.mxu0 0
  %1574 = vmatprep.subr.bf16.mxu0 0
  %1575 = vmatpush1.bf16.msra.mxu0 0
  %1576 = vmatprep.subr.bf16.mxu0 0
  %1577 = vmatpush1.bf16.msra.mxu0 0
  %1578 = vmatprep.subr.bf16.mxu0 0
  %1579 = vmatpush1.bf16.msra.mxu0 0
  %1580 = vmatprep.subr.bf16.mxu0 0
  %1581 = vmatpush1.bf16.msra.mxu0 0
  %1582 = vmatprep.subr.bf16.mxu0 0
  %1583 = vmatpush1.bf16.msra.mxu0 0
  %1584 = vmatprep.subr.bf16.mxu0 0
  %1585 = vmatpush1.bf16.msra.mxu0 0
  %1586 = vmatprep.subr.bf16.mxu0 0
  %1587 = vmatpush1.bf16.msra.mxu0 0
  %1588 = vmatprep.subr.bf16.mxu0 0
  %1589 = vmatpush1.bf16.msra.mxu0 0
  %1590 = vmatprep.subr.bf16.mxu0 0
  %1591 = vmatpush1.bf16.msra.mxu0 0
  %1592 = vmatprep.mubr.bf16.mxu0 0
  %1593 = vmatmul.mubr.bf16.gmra.mrb[0].mxu0 %v1555
  %v1594 = vpop.f32.mrb[0].mxu0
  %v1595 = vadd.f32 %v1552, %v1594
  %v1596 = vpop.f32.mrb[0].mxu0
  %v1597 = vpop.f32.mrb[0].mxu0
  %v1598 = vadd.f32 %v1552, %v1597
  %v1599 = vpop.f32.mrb[0].mxu0
  %1600 = vmatprep.mubr.bf16.mxu0 0
  %1601 = vmatmul.mubr.bf16.gmra.mrb[0].mxu0 %v1558
  %v1602 = vpop.f32.mrb[0].mxu0
  %v1603 = vadd.f32 %v1552, %v1602
  %v1604 = vpop.f32.mrb[0].mxu0
  %v1605 = vpop.f32.mrb[0].mxu0
  %v1606 = vadd.f32 %v1552, %v1605
  %v1607 = vpop.f32.mrb[0].mxu0
  %1608 = vdwg.mxu0
  %v1609 = vmax.f32 %v1595, 0.0
  %v1610 = vmax.f32 %v1598, 0.0
  %v1611 = vmax.f32 %v1603, 0.0
  %v1612 = vmax.f32 %v1606, 0.0
  %v1613 = vld [vmem:[%s15] sm:$0xff]
  %v1614 = vld [vmem:[%s15 + $0x8] sm:$0xff]
  %v1615 = vld [vmem:[%s15 + $0x10] sm:$0xff]
  %v1616 = vld [vmem:[%s15 + $0x18] sm:$0xff]
  %v1617 = vld [vmem:[%s15 + $0x20] sm:$0xff]
  %v1618 = vld [vmem:[%s15 + $0x28] sm:$0xff]
  %v1619 = vld [vmem:[%s15 + $0x30] sm:$0xff]
  %v1620 = vld [vmem:[%s15 + $0x38] sm:$0xff]
  %v1621 = vld [vmem:[%s15 + $0x40] sm:$0xff]
  %v1622 = vld [vmem:[%s15 + $0x48] sm:$0xff]
  %v1623 = vld [vmem:[%s15 + $0x50] sm:$0xff]
  %v1624 = vld [vmem:[%s15 + $0x58] sm:$0xff]
  %v1625 = vld [vmem:[%s15 + $0x60] sm:$0xff]
  %v1626 = vld [vmem:[%s15 + $0x68] sm:$0xff]
  %v1627 = vld [vmem:[%s15 + $0x70] sm:$0xff]
  %v1628 = vld [vmem:[%s15 + $0x78] sm:$0xff]
  %v1629 = vpack.c.bf16 %v1610, %v1609
  %v1630 = vpack.c.bf16 %v1612, %v1611
  %v1631 = vpack.c.bf16 %v1614, %v1613
  %v1632 = vpack.c.bf16 %v1616, %v1615
  %v1633 = vpack.c.bf16 %v1618, %v1617
  %v1634 = vpack.c.bf16 %v1620, %v1619
  %v1635 = vpack.c.bf16 %v1622, %v1621
  %v1636 = vpack.c.bf16 %v1624, %v1623
  %v1637 = vpack.c.bf16 %v1626, %v1625
  %v1638 = vpack.c.bf16 %v1628, %v1627
  %v1639 = vld [vmem:[%s16] sm:$0x1]
  %v1641 = vlaneseq
  %v1642 = vshrl.u32 %v1641, 7
  %v1643 = vsub.s32 0, %v1642
  %v1644 = vrot.slane %v1639, %v1643
  %1646 = vmatprep.subr.bf16.mxu0 0
  %1647 = vmatpush1.bf16.msra.mxu0 %v1631
  %1648 = vmatprep.subr.bf16.mxu0 0
  %1649 = vmatpush1.bf16.msra.mxu0 %v1632
  %1650 = vmatprep.subr.bf16.mxu0 0
  %1651 = vmatpush1.bf16.msra.mxu0 %v1633
  %1652 = vmatprep.subr.bf16.mxu0 0
  %1653 = vmatpush1.bf16.msra.mxu0 %v1634
  %1654 = vmatprep.subr.bf16.mxu0 0
  %1655 = vmatpush1.bf16.msra.mxu0 %v1635
  %1656 = vmatprep.subr.bf16.mxu0 0
  %1657 = vmatpush1.bf16.msra.mxu0 %v1636
  %1658 = vmatprep.subr.bf16.mxu0 0
  %1659 = vmatpush1.bf16.msra.mxu0 %v1637
  %1660 = vmatprep.subr.bf16.mxu0 0
  %1661 = vmatpush1.bf16.msra.mxu0 %v1638
  %1662 = vmatprep.subr.bf16.mxu0 0
  %1663 = vmatpush1.bf16.msra.mxu0 0
  %1664 = vmatprep.subr.bf16.mxu0 0
  %1665 = vmatpush1.bf16.msra.mxu0 0
  %1666 = vmatprep.subr.bf16.mxu0 0
  %1667 = vmatpush1.bf16.msra.mxu0 0
  %1668 = vmatprep.subr.bf16.mxu0 0
  %1669 = vmatpush1.bf16.msra.mxu0 0
  %1670 = vmatprep.subr.bf16.mxu0 0
  %1671 = vmatpush1.bf16.msra.mxu0 0
  %1672 = vmatprep.subr.bf16.mxu0 0
  %1673 = vmatpush1.bf16.msra.mxu0 0
  %1674 = vmatprep.subr.bf16.mxu0 0
  %1675 = vmatpush1.bf16.msra.mxu0 0
  %1676 = vmatprep.subr.bf16.mxu0 0
  %1677 = vmatpush1.bf16.msra.mxu0 0
  %1678 = vmatprep.mubr.bf16.mxu0 0
  %1679 = vmatmul.mubr.bf16.gmra.mrb[0].mxu0 %v1629
  %v1680 = vpop.f32.mrb[0].mxu0
  %v1681 = vadd.f32 %v1644, %v1680
  %v1682 = vpop.f32.mrb[0].mxu0
  %v1683 = vpop.f32.mrb[0].mxu0
  %v1684 = vadd.f32 %v1644, %v1683
  %v1685 = vpop.f32.mrb[0].mxu0
  %1686 = vmatprep.mubr.bf16.mxu0 0
  %1687 = vmatmul.mubr.bf16.gmra.mrb[0].mxu0 %v1630
  %v1688 = vpop.f32.mrb[0].mxu0
  %v1689 = vadd.f32 %v1644, %v1688
  %v1690 = vpop.f32.mrb[0].mxu0
  %v1691 = vpop.f32.mrb[0].mxu0
  %v1692 = vadd.f32 %v1644, %v1691
  %v1693 = vpop.f32.mrb[0].mxu0
  %1694 = vdwg.mxu0
  %v1695 = vadd.f32 %v1535, %v1681
  %v1696 = vadd.f32 %v1536, %v1684
  %v1697 = vadd.f32 %v1537, %v1689
  %v1698 = vadd.f32 %v1538, %v1692
  %v1699 = vld [vmem:[%s17] sm:$0x1]
  %v1700 = vld [vmem:[%s18] sm:$0x1]
  %v1701 = vsel %vm159, %v1695, 0.0
  %1702 = vadd.xlane.f32.xlu0 %v1701
  %v1703 = vpop.xlane.xlu0 %1702
  %v1704 = vsel %vm159, %v1696, 0.0
  %1705 = vadd.xlane.f32.xlu0 %v1704
  %v1706 = vpop.xlane.xlu0 %1705
  %v1707 = vsel %vm159, %v1697, 0.0
  %1708 = vadd.xlane.f32.xlu0 %v1707
  %v1709 = vpop.xlane.xlu0 %1708
  %v1710 = vsel %vm159, %v1698, 0.0
  %1711 = vadd.xlane.f32.xlu0 %v1710
  %v1712 = vpop.xlane.xlu0 %1711
  %v1713 = vmul.f32 %v1703, %v1478
  %v1714 = vmul.f32 %v1706, %v1478
  %v1715 = vmul.f32 %v1709, %v1478
  %v1716 = vmul.f32 %v1712, %v1478
  %v1717 = vsub.f32 %v1695, %v1713
  %v1718 = vsub.f32 %v1696, %v1714
  %v1719 = vsub.f32 %v1697, %v1715
  %v1720 = vsub.f32 %v1698, %v1716
  %v1721 = vmul.f32 %v1717, %v1717
  %v1722 = vmul.f32 %v1718, %v1718
  %v1723 = vmul.f32 %v1719, %v1719
  %v1724 = vmul.f32 %v1720, %v1720
  %v1725 = vsel %vm159, %v1721, 0.0
  %1726 = vadd.xlane.f32.xlu0 %v1725
  %v1727 = vpop.xlane.xlu0 %1726
  %v1728 = vsel %vm159, %v1722, 0.0
  %1729 = vadd.xlane.f32.xlu0 %v1728
  %v1730 = vpop.xlane.xlu0 %1729
  %v1731 = vsel %vm159, %v1723, 0.0
  %1732 = vadd.xlane.f32.xlu0 %v1731
  %v1733 = vpop.xlane.xlu0 %1732
  %v1734 = vsel %vm159, %v1724, 0.0
  %1735 = vadd.xlane.f32.xlu0 %v1734
  %v1736 = vpop.xlane.xlu0 %1735
  %v1737 = vmul.f32 %v1727, %v1478
  %v1738 = vmul.f32 %v1730, %v1478
  %v1739 = vmul.f32 %v1733, %v1478
  %v1740 = vmul.f32 %v1736, %v1478
  %v1741 = vadd.f32 %v1737, 1e-05
  %v1742 = vadd.f32 %v1738, 1e-05
  %v1743 = vadd.f32 %v1739, 1e-05
  %v1744 = vadd.f32 %v1740, 1e-05
  %v1745 = vrsqrt.pop %v1741
  %v1746 = vrsqrt.pop %v1742
  %v1747 = vrsqrt.pop %v1743
  %v1748 = vrsqrt.pop %v1744
  %v1749 = vmul.f32 %v1717, %v1745
  %v1750 = vmul.f32 %v1718, %v1746
  %v1751 = vmul.f32 %v1719, %v1747
  %v1752 = vmul.f32 %v1720, %v1748
  %v1754 = vlaneseq
  %v1755 = vshrl.u32 %v1754, 7
  %v1756 = vsub.s32 0, %v1755
  %v1757 = vrot.slane %v1699, %v1756
  %v1759 = vmul.f32 %v1749, %v1757
  %v1760 = vmul.f32 %v1750, %v1757
  %v1761 = vmul.f32 %v1751, %v1757
  %v1762 = vmul.f32 %v1752, %v1757
  %v1764 = vlaneseq
  %v1765 = vshrl.u32 %v1764, 7
  %v1766 = vsub.s32 0, %v1765
  %v1767 = vrot.slane %v1700, %v1766
  %v1769 = vadd.f32 %v1759, %v1767
  %v1770 = vadd.f32 %v1760, %v1767
  %v1771 = vadd.f32 %v1761, %v1767
  %v1772 = vadd.f32 %v1762, %v1767
  %s1773 = scalar_lea.vmem %s3, 32
  %v1774 = vld [vmem:[%s1773] sm:$0xff]
  %v1775 = vld [vmem:[%s1773 + $0x8] sm:$0xff]
  %v1776 = vld [vmem:[%s1773 + $0x10] sm:$0xff]
  %v1777 = vld [vmem:[%s1773 + $0x18] sm:$0xff]
  %v1778 = vpack.c.bf16 %v1770, %v1769
  %v1779 = vpack.c.bf16 %v1772, %v1771
  %v1780 = vpack.c.bf16 %v1775, %v1774
  %v1781 = vpack.c.bf16 %v1777, %v1776
  %s1782 = scalar_lea.vmem %s4, 1
  %v1783 = vld [vmem:[%s1782] sm:$0x1]
  %v1785 = vlaneseq
  %v1786 = vshrl.u32 %v1785, 7
  %v1787 = vsub.s32 0, %v1786
  %v1788 = vrot.slane %v1783, %v1787
  %v1791 = vsel %vm159, %v1778, 0
  %v1794 = vsel %vm159, %v1779, 0
  %1796 = vmatprep.subr.bf16.mxu0 0
  %1797 = vmatpush1.bf16.msra.mxu0 %v1780
  %1798 = vmatprep.subr.bf16.mxu0 0
  %1799 = vmatpush1.bf16.msra.mxu0 %v1781
  %1800 = vmatprep.subr.bf16.mxu0 0
  %1801 = vmatpush1.bf16.msra.mxu0 0
  %1802 = vmatprep.subr.bf16.mxu0 0
  %1803 = vmatpush1.bf16.msra.mxu0 0
  %1804 = vmatprep.subr.bf16.mxu0 0
  %1805 = vmatpush1.bf16.msra.mxu0 0
  %1806 = vmatprep.subr.bf16.mxu0 0
  %1807 = vmatpush1.bf16.msra.mxu0 0
  %1808 = vmatprep.subr.bf16.mxu0 0
  %1809 = vmatpush1.bf16.msra.mxu0 0
  %1810 = vmatprep.subr.bf16.mxu0 0
  %1811 = vmatpush1.bf16.msra.mxu0 0
  %1812 = vmatprep.subr.bf16.mxu0 0
  %1813 = vmatpush1.bf16.msra.mxu0 0
  %1814 = vmatprep.subr.bf16.mxu0 0
  %1815 = vmatpush1.bf16.msra.mxu0 0
  %1816 = vmatprep.subr.bf16.mxu0 0
  %1817 = vmatpush1.bf16.msra.mxu0 0
  %1818 = vmatprep.subr.bf16.mxu0 0
  %1819 = vmatpush1.bf16.msra.mxu0 0
  %1820 = vmatprep.subr.bf16.mxu0 0
  %1821 = vmatpush1.bf16.msra.mxu0 0
  %1822 = vmatprep.subr.bf16.mxu0 0
  %1823 = vmatpush1.bf16.msra.mxu0 0
  %1824 = vmatprep.subr.bf16.mxu0 0
  %1825 = vmatpush1.bf16.msra.mxu0 0
  %1826 = vmatprep.subr.bf16.mxu0 0
  %1827 = vmatpush1.bf16.msra.mxu0 0
  %1828 = vmatprep.mubr.bf16.mxu0 0
  %1829 = vmatmul.mubr.bf16.gmra.mrb[0].mxu0 %v1791
  %v1830 = vpop.f32.mrb[0].mxu0
  %v1831 = vadd.f32 %v1788, %v1830
  %v1832 = vpop.f32.mrb[0].mxu0
  %v1833 = vpop.f32.mrb[0].mxu0
  %v1834 = vadd.f32 %v1788, %v1833
  %v1835 = vpop.f32.mrb[0].mxu0
  %1836 = vmatprep.mubr.bf16.mxu0 0
  %1837 = vmatmul.mubr.bf16.gmra.mrb[0].mxu0 %v1794
  %v1838 = vpop.f32.mrb[0].mxu0
  %v1839 = vadd.f32 %v1788, %v1838
  %v1840 = vpop.f32.mrb[0].mxu0
  %v1841 = vpop.f32.mrb[0].mxu0
  %v1842 = vadd.f32 %v1788, %v1841
  %v1843 = vpop.f32.mrb[0].mxu0
  %1844 = vdwg.mxu0
  %s1845 = scalar_lea.vmem %s5, 32
  %v1846 = vld [vmem:[%s1845] sm:$0xff]
  %v1847 = vld [vmem:[%s1845 + $0x8] sm:$0xff]
  %v1848 = vld [vmem:[%s1845 + $0x10] sm:$0xff]
  %v1849 = vld [vmem:[%s1845 + $0x18] sm:$0xff]
  %v1850 = vpack.c.bf16 %v1847, %v1846
  %v1851 = vpack.c.bf16 %v1849, %v1848
  %s1852 = scalar_lea.vmem %s6, 1
  %v1853 = vld [vmem:[%s1852] sm:$0x1]
  %v1855 = vlaneseq
  %v1856 = vshrl.u32 %v1855, 7
  %v1857 = vsub.s32 0, %v1856
  %v1858 = vrot.slane %v1853, %v1857
  %1860 = vmatprep.subr.bf16.mxu0 0
  %1861 = vmatpush1.bf16.msra.mxu0 %v1850
  %1862 = vmatprep.subr.bf16.mxu0 0
  %1863 = vmatpush1.bf16.msra.mxu0 %v1851
  %1864 = vmatprep.subr.bf16.mxu0 0
  %1865 = vmatpush1.bf16.msra.mxu0 0
  %1866 = vmatprep.subr.bf16.mxu0 0
  %1867 = vmatpush1.bf16.msra.mxu0 0
  %1868 = vmatprep.subr.bf16.mxu0 0
  %1869 = vmatpush1.bf16.msra.mxu0 0
  %1870 = vmatprep.subr.bf16.mxu0 0
  %1871 = vmatpush1.bf16.msra.mxu0 0
  %1872 = vmatprep.subr.bf16.mxu0 0
  %1873 = vmatpush1.bf16.msra.mxu0 0
  %1874 = vmatprep.subr.bf16.mxu0 0
  %1875 = vmatpush1.bf16.msra.mxu0 0
  %1876 = vmatprep.subr.bf16.mxu0 0
  %1877 = vmatpush1.bf16.msra.mxu0 0
  %1878 = vmatprep.subr.bf16.mxu0 0
  %1879 = vmatpush1.bf16.msra.mxu0 0
  %1880 = vmatprep.subr.bf16.mxu0 0
  %1881 = vmatpush1.bf16.msra.mxu0 0
  %1882 = vmatprep.subr.bf16.mxu0 0
  %1883 = vmatpush1.bf16.msra.mxu0 0
  %1884 = vmatprep.subr.bf16.mxu0 0
  %1885 = vmatpush1.bf16.msra.mxu0 0
  %1886 = vmatprep.subr.bf16.mxu0 0
  %1887 = vmatpush1.bf16.msra.mxu0 0
  %1888 = vmatprep.subr.bf16.mxu0 0
  %1889 = vmatpush1.bf16.msra.mxu0 0
  %1890 = vmatprep.subr.bf16.mxu0 0
  %1891 = vmatpush1.bf16.msra.mxu0 0
  %1892 = vmatprep.mubr.bf16.mxu0 0
  %1893 = vmatmul.mubr.bf16.gmra.mrb[0].mxu0 %v1791
  %v1894 = vpop.f32.mrb[0].mxu0
  %v1895 = vadd.f32 %v1858, %v1894
  %v1896 = vpop.f32.mrb[0].mxu0
  %v1897 = vpop.f32.mrb[0].mxu0
  %v1898 = vadd.f32 %v1858, %v1897
  %v1899 = vpop.f32.mrb[0].mxu0
  %1900 = vmatprep.mubr.bf16.mxu0 0
  %1901 = vmatmul.mubr.bf16.gmra.mrb[0].mxu0 %v1794
  %v1902 = vpop.f32.mrb[0].mxu0
  %v1903 = vadd.f32 %v1858, %v1902
  %v1904 = vpop.f32.mrb[0].mxu0
  %v1905 = vpop.f32.mrb[0].mxu0
  %v1906 = vadd.f32 %v1858, %v1905
  %v1907 = vpop.f32.mrb[0].mxu0
  %1908 = vdwg.mxu0
  %s1909 = scalar_lea.vmem %s7, 32
  %v1910 = vld [vmem:[%s1909] sm:$0xff]
  %v1911 = vld [vmem:[%s1909 + $0x8] sm:$0xff]
  %v1912 = vld [vmem:[%s1909 + $0x10] sm:$0xff]
  %v1913 = vld [vmem:[%s1909 + $0x18] sm:$0xff]
  %v1914 = vpack.c.bf16 %v1911, %v1910
  %v1915 = vpack.c.bf16 %v1913, %v1912
  %s1916 = scalar_lea.vmem %s8, 1
  %v1917 = vld [vmem:[%s1916] sm:$0x1]
  %v1919 = vlaneseq
  %v1920 = vshrl.u32 %v1919, 7
  %v1921 = vsub.s32 0, %v1920
  %v1922 = vrot.slane %v1917, %v1921
  %1924 = vmatprep.subr.bf16.mxu0 0
  %1925 = vmatpush1.bf16.msra.mxu0 %v1914
  %1926 = vmatprep.subr.bf16.mxu0 0
  %1927 = vmatpush1.bf16.msra.mxu0 %v1915
  %1928 = vmatprep.subr.bf16.mxu0 0
  %1929 = vmatpush1.bf16.msra.mxu0 0
  %1930 = vmatprep.subr.bf16.mxu0 0
  %1931 = vmatpush1.bf16.msra.mxu0 0
  %1932 = vmatprep.subr.bf16.mxu0 0
  %1933 = vmatpush1.bf16.msra.mxu0 0
  %1934 = vmatprep.subr.bf16.mxu0 0
  %1935 = vmatpush1.bf16.msra.mxu0 0
  %1936 = vmatprep.subr.bf16.mxu0 0
  %1937 = vmatpush1.bf16.msra.mxu0 0
  %1938 = vmatprep.subr.bf16.mxu0 0
  %1939 = vmatpush1.bf16.msra.mxu0 0
  %1940 = vmatprep.subr.bf16.mxu0 0
  %1941 = vmatpush1.bf16.msra.mxu0 0
  %1942 = vmatprep.subr.bf16.mxu0 0
  %1943 = vmatpush1.bf16.msra.mxu0 0
  %1944 = vmatprep.subr.bf16.mxu0 0
  %1945 = vmatpush1.bf16.msra.mxu0 0
  %1946 = vmatprep.subr.bf16.mxu0 0
  %1947 = vmatpush1.bf16.msra.mxu0 0
  %1948 = vmatprep.subr.bf16.mxu0 0
  %1949 = vmatpush1.bf16.msra.mxu0 0
  %1950 = vmatprep.subr.bf16.mxu0 0
  %1951 = vmatpush1.bf16.msra.mxu0 0
  %1952 = vmatprep.subr.bf16.mxu0 0
  %1953 = vmatpush1.bf16.msra.mxu0 0
  %1954 = vmatprep.subr.bf16.mxu0 0
  %1955 = vmatpush1.bf16.msra.mxu0 0
  %1956 = vmatprep.mubr.bf16.mxu0 0
  %1957 = vmatmul.mubr.bf16.gmra.mrb[0].mxu0 %v1791
  %v1958 = vpop.f32.mrb[0].mxu0
  %v1959 = vadd.f32 %v1922, %v1958
  %v1960 = vpop.f32.mrb[0].mxu0
  %v1961 = vpop.f32.mrb[0].mxu0
  %v1962 = vadd.f32 %v1922, %v1961
  %v1963 = vpop.f32.mrb[0].mxu0
  %1964 = vmatprep.mubr.bf16.mxu0 0
  %1965 = vmatmul.mubr.bf16.gmra.mrb[0].mxu0 %v1794
  %v1966 = vpop.f32.mrb[0].mxu0
  %v1967 = vadd.f32 %v1922, %v1966
  %v1968 = vpop.f32.mrb[0].mxu0
  %v1969 = vpop.f32.mrb[0].mxu0
  %v1970 = vadd.f32 %v1922, %v1969
  %v1971 = vpop.f32.mrb[0].mxu0
  %1972 = vdwg.mxu0
  %v1973 = vpack.c.bf16 %v1834, %v1831
  %v1974 = vpack.c.bf16 %v1898, %v1895
  %v1976 = vsel %vm341, %v1973, 0
  %v1979 = vsel %vm341, %v1974, 0
  %1981 = vmatprep.subr.bf16.mxu0 0
  %1982 = vmatpush1.bf16.xpose.msra.mxu0 %v1979
  %1983 = vmatprep.subr.bf16.mxu0 0
  %1984 = vmatpush1.bf16.xpose.msra.mxu0 0
  %1985 = vmatprep.subr.bf16.mxu0 0
  %1986 = vmatpush1.bf16.xpose.msra.mxu0 0
  %1987 = vmatprep.subr.bf16.mxu0 0
  %1988 = vmatpush1.bf16.xpose.msra.mxu0 0
  %1989 = vmatprep.subr.bf16.mxu0 0
  %1990 = vmatpush1.bf16.xpose.msra.mxu0 0
  %1991 = vmatprep.subr.bf16.mxu0 0
  %1992 = vmatpush1.bf16.xpose.msra.mxu0 0
  %1993 = vmatprep.subr.bf16.mxu0 0
  %1994 = vmatpush1.bf16.xpose.msra.mxu0 0
  %1995 = vmatprep.subr.bf16.mxu0 0
  %1996 = vmatpush1.bf16.xpose.msra.mxu0 0
  %1997 = vmatprep.subr.bf16.mxu0 0
  %1998 = vmatpush1.bf16.xpose.msra.mxu0 0
  %1999 = vmatprep.subr.bf16.mxu0 0
  %2000 = vmatpush1.bf16.xpose.msra.mxu0 0
  %2001 = vmatprep.subr.bf16.mxu0 0
  %2002 = vmatpush1.bf16.xpose.msra.mxu0 0
  %2003 = vmatprep.subr.bf16.mxu0 0
  %2004 = vmatpush1.bf16.xpose.msra.mxu0 0
  %2005 = vmatprep.subr.bf16.mxu0 0
  %2006 = vmatpush1.bf16.xpose.msra.mxu0 0
  %2007 = vmatprep.subr.bf16.mxu0 0
  %2008 = vmatpush1.bf16.xpose.msra.mxu0 0
  %2009 = vmatprep.subr.bf16.mxu0 0
  %2010 = vmatpush1.bf16.xpose.msra.mxu0 0
  %2011 = vmatprep.subr.bf16.mxu0 0
  %2012 = vmatpush1.bf16.xpose.msra.mxu0 0
  %2013 = vmatprep.mubr.bf16.mxu0 0
  %2014 = vmatmul.mubr.bf16.gmra.mrb[0].mxu0 %v1976
  %v2015 = vpop.f32.mrb[0].mxu0
  %v2016 = vadd.f32 0.0, %v2015
  %v2017 = vpop.f32.mrb[0].mxu0
  %v2018 = vpop.f32.mrb[0].mxu0
  %v2019 = vadd.f32 0.0, %v2018
  %v2020 = vpop.f32.mrb[0].mxu0
  %2021 = vdwg.mxu0
  %v2022 = vmul.f32 %v2016, 0.17677669
  %v2023 = vmul.f32 %v2019, 0.17677669
  %v2024 = vsel %vm341, %v2022, -inf
  %2025 = vmax.xlane.f32.xlu0 %v2024
  %v2026 = vpop.xlane.xlu0 %2025
  %v2027 = vsel %vm341, %v2023, -inf
  %2028 = vmax.xlane.f32.xlu0 %v2027
  %v2029 = vpop.xlane.xlu0 %2028
  %v2030 = vsub.f32 %v2022, %v2026
  %v2031 = vsub.f32 %v2023, %v2029
  %v2032 = vmul.f32 %v2030, 1.442695
  %v2033 = vpow.pop %v2032
  %v2034 = vmul.f32 %v2031, 1.442695
  %v2035 = vpow.pop %v2034
  %v2036 = vsel %vm341, %v2033, 0.0
  %2037 = vadd.xlane.f32.xlu0 %v2036
  %v2038 = vpop.xlane.xlu0 %2037
  %v2039 = vsel %vm341, %v2035, 0.0
  %2040 = vadd.xlane.f32.xlu0 %v2039
  %v2041 = vpop.xlane.xlu0 %2040
  %v2042 = vrcp.pop %v2038
  %v2043 = vrcp.pop %v2041
  %v2044 = vmul.f32 %v2033, %v2042
  %v2045 = vmul.f32 %v2035, %v2043
  %v2046 = vpack.c.bf16 %v2045, %v2044
  %v2047 = vpack.c.bf16 %v1962, %v1959
  %v2049 = vsel %vm341, %v2046, 0
  %2051 = vmatprep.subr.bf16.mxu0 0
  %2052 = vmatpush1.bf16.msra.mxu0 %v2047
  %2053 = vmatprep.subr.bf16.mxu0 0
  %2054 = vmatpush1.bf16.msra.mxu0 0
  %2055 = vmatprep.subr.bf16.mxu0 0
  %2056 = vmatpush1.bf16.msra.mxu0 0
  %2057 = vmatprep.subr.bf16.mxu0 0
  %2058 = vmatpush1.bf16.msra.mxu0 0
  %2059 = vmatprep.subr.bf16.mxu0 0
  %2060 = vmatpush1.bf16.msra.mxu0 0
  %2061 = vmatprep.subr.bf16.mxu0 0
  %2062 = vmatpush1.bf16.msra.mxu0 0
  %2063 = vmatprep.subr.bf16.mxu0 0
  %2064 = vmatpush1.bf16.msra.mxu0 0
  %2065 = vmatprep.subr.bf16.mxu0 0
  %2066 = vmatpush1.bf16.msra.mxu0 0
  %2067 = vmatprep.subr.bf16.mxu0 0
  %2068 = vmatpush1.bf16.msra.mxu0 0
  %2069 = vmatprep.subr.bf16.mxu0 0
  %2070 = vmatpush1.bf16.msra.mxu0 0
  %2071 = vmatprep.subr.bf16.mxu0 0
  %2072 = vmatpush1.bf16.msra.mxu0 0
  %2073 = vmatprep.subr.bf16.mxu0 0
  %2074 = vmatpush1.bf16.msra.mxu0 0
  %2075 = vmatprep.subr.bf16.mxu0 0
  %2076 = vmatpush1.bf16.msra.mxu0 0
  %2077 = vmatprep.subr.bf16.mxu0 0
  %2078 = vmatpush1.bf16.msra.mxu0 0
  %2079 = vmatprep.subr.bf16.mxu0 0
  %2080 = vmatpush1.bf16.msra.mxu0 0
  %2081 = vmatprep.subr.bf16.mxu0 0
  %2082 = vmatpush1.bf16.msra.mxu0 0
  %2083 = vmatprep.mubr.bf16.mxu0 0
  %2084 = vmatmul.mubr.bf16.gmra.mrb[0].mxu0 %v2049
  %v2085 = vpop.f32.mrb[0].mxu0
  %v2086 = vadd.f32 0.0, %v2085
  %v2087 = vpop.f32.mrb[0].mxu0
  %v2088 = vpop.f32.mrb[0].mxu0
  %v2089 = vadd.f32 0.0, %v2088
  %v2090 = vpop.f32.mrb[0].mxu0
  %2091 = vdwg.mxu0
  %2093 = vrot.lane.b32.xlu0 %v1973, 112
  %v2094 = vpop.permute.xlu0 %2093
  %2096 = vrot.lane.b32.xlu0 %v1974, 112
  %v2097 = vpop.permute.xlu0 %2096
  %v2099 = vsel %vm341, %v2094, 0
  %v2102 = vsel %vm341, %v2097, 0
  %2104 = vmatprep.subr.bf16.mxu0 0
  %2105 = vmatpush1.bf16.xpose.msra.mxu0 %v2102
  %2106 = vmatprep.subr.bf16.mxu0 0
  %2107 = vmatpush1.bf16.xpose.msra.mxu0 0
  %2108 = vmatprep.subr.bf16.mxu0 0
  %2109 = vmatpush1.bf16.xpose.msra.mxu0 0
  %2110 = vmatprep.subr.bf16.mxu0 0
  %2111 = vmatpush1.bf16.xpose.msra.mxu0 0
  %2112 = vmatprep.subr.bf16.mxu0 0
  %2113 = vmatpush1.bf16.xpose.msra.mxu0 0
  %2114 = vmatprep.subr.bf16.mxu0 0
  %2115 = vmatpush1.bf16.xpose.msra.mxu0 0
  %2116 = vmatprep.subr.bf16.mxu0 0
  %2117 = vmatpush1.bf16.xpose.msra.mxu0 0
  %2118 = vmatprep.subr.bf16.mxu0 0
  %2119 = vmatpush1.bf16.xpose.msra.mxu0 0
  %2120 = vmatprep.subr.bf16.mxu0 0
  %2121 = vmatpush1.bf16.xpose.msra.mxu0 0
  %2122 = vmatprep.subr.bf16.mxu0 0
  %2123 = vmatpush1.bf16.xpose.msra.mxu0 0
  %2124 = vmatprep.subr.bf16.mxu0 0
  %2125 = vmatpush1.bf16.xpose.msra.mxu0 0
  %2126 = vmatprep.subr.bf16.mxu0 0
  %2127 = vmatpush1.bf16.xpose.msra.mxu0 0
  %2128 = vmatprep.subr.bf16.mxu0 0
  %2129 = vmatpush1.bf16.xpose.msra.mxu0 0
  %2130 = vmatprep.subr.bf16.mxu0 0
  %2131 = vmatpush1.bf16.xpose.msra.mxu0 0
  %2132 = vmatprep.subr.bf16.mxu0 0
  %2133 = vmatpush1.bf16.xpose.msra.mxu0 0
  %2134 = vmatprep.subr.bf16.mxu0 0
  %2135 = vmatpush1.bf16.xpose.msra.mxu0 0
  %2136 = vmatprep.mubr.bf16.mxu0 0
  %2137 = vmatmul.mubr.bf16.gmra.mrb[0].mxu0 %v2099
  %v2138 = vpop.f32.mrb[0].mxu0
  %v2139 = vadd.f32 0.0, %v2138
  %v2140 = vpop.f32.mrb[0].mxu0
  %v2141 = vpop.f32.mrb[0].mxu0
  %v2142 = vadd.f32 0.0, %v2141
  %v2143 = vpop.f32.mrb[0].mxu0
  %2144 = vdwg.mxu0
  %v2145 = vmul.f32 %v2139, 0.17677669
  %v2146 = vmul.f32 %v2142, 0.17677669
  %v2147 = vsel %vm341, %v2145, -inf
  %2148 = vmax.xlane.f32.xlu0 %v2147
  %v2149 = vpop.xlane.xlu0 %2148
  %v2150 = vsel %vm341, %v2146, -inf
  %2151 = vmax.xlane.f32.xlu0 %v2150
  %v2152 = vpop.xlane.xlu0 %2151
  %v2153 = vsub.f32 %v2145, %v2149
  %v2154 = vsub.f32 %v2146, %v2152
  %v2155 = vmul.f32 %v2153, 1.442695
  %v2156 = vpow.pop %v2155
  %v2157 = vmul.f32 %v2154, 1.442695
  %v2158 = vpow.pop %v2157
  %v2159 = vsel %vm341, %v2156, 0.0
  %2160 = vadd.xlane.f32.xlu0 %v2159
  %v2161 = vpop.xlane.xlu0 %2160
  %v2162 = vsel %vm341, %v2158, 0.0
  %2163 = vadd.xlane.f32.xlu0 %v2162
  %v2164 = vpop.xlane.xlu0 %2163
  %v2165 = vrcp.pop %v2161
  %v2166 = vrcp.pop %v2164
  %v2167 = vmul.f32 %v2156, %v2165
  %v2168 = vmul.f32 %v2158, %v2166
  %v2169 = vpack.c.bf16 %v2168, %v2167
  %2171 = vrot.lane.b32.xlu0 %v2047, 112
  %v2172 = vpop.permute.xlu0 %2171
  %v2175 = vsel %vm341, %v2169, 0
  %2177 = vmatprep.subr.bf16.mxu0 0
  %2178 = vmatpush1.bf16.msra.mxu0 %v2172
  %2179 = vmatprep.subr.bf16.mxu0 0
  %2180 = vmatpush1.bf16.msra.mxu0 0
  %2181 = vmatprep.subr.bf16.mxu0 0
  %2182 = vmatpush1.bf16.msra.mxu0 0
  %2183 = vmatprep.subr.bf16.mxu0 0
  %2184 = vmatpush1.bf16.msra.mxu0 0
  %2185 = vmatprep.subr.bf16.mxu0 0
  %2186 = vmatpush1.bf16.msra.mxu0 0
  %2187 = vmatprep.subr.bf16.mxu0 0
  %2188 = vmatpush1.bf16.msra.mxu0 0
  %2189 = vmatprep.subr.bf16.mxu0 0
  %2190 = vmatpush1.bf16.msra.mxu0 0
  %2191 = vmatprep.subr.bf16.mxu0 0
  %2192 = vmatpush1.bf16.msra.mxu0 0
  %2193 = vmatprep.subr.bf16.mxu0 0
  %2194 = vmatpush1.bf16.msra.mxu0 0
  %2195 = vmatprep.subr.bf16.mxu0 0
  %2196 = vmatpush1.bf16.msra.mxu0 0
  %2197 = vmatprep.subr.bf16.mxu0 0
  %2198 = vmatpush1.bf16.msra.mxu0 0
  %2199 = vmatprep.subr.bf16.mxu0 0
  %2200 = vmatpush1.bf16.msra.mxu0 0
  %2201 = vmatprep.subr.bf16.mxu0 0
  %2202 = vmatpush1.bf16.msra.mxu0 0
  %2203 = vmatprep.subr.bf16.mxu0 0
  %2204 = vmatpush1.bf16.msra.mxu0 0
  %2205 = vmatprep.subr.bf16.mxu0 0
  %2206 = vmatpush1.bf16.msra.mxu0 0
  %2207 = vmatprep.subr.bf16.mxu0 0
  %2208 = vmatpush1.bf16.msra.mxu0 0
  %2209 = vmatprep.mubr.bf16.mxu0 0
  %2210 = vmatmul.mubr.bf16.gmra.mrb[0].mxu0 %v2175
  %v2211 = vpop.f32.mrb[0].mxu0
  %v2212 = vadd.f32 0.0, %v2211
  %v2213 = vpop.f32.mrb[0].mxu0
  %v2214 = vpop.f32.mrb[0].mxu0
  %v2215 = vadd.f32 0.0, %v2214
  %v2216 = vpop.f32.mrb[0].mxu0
  %2217 = vdwg.mxu0
  %2218 = vrot.lane.b32.xlu0 %v1973, 96
  %v2219 = vpop.permute.xlu0 %2218
  %2220 = vrot.lane.b32.xlu0 %v1974, 96
  %v2221 = vpop.permute.xlu0 %2220
  %v2223 = vsel %vm341, %v2219, 0
  %v2226 = vsel %vm341, %v2221, 0
  %2228 = vmatprep.subr.bf16.mxu0 0
  %2229 = vmatpush1.bf16.xpose.msra.mxu0 %v2226
  %2230 = vmatprep.subr.bf16.mxu0 0
  %2231 = vmatpush1.bf16.xpose.msra.mxu0 0
  %2232 = vmatprep.subr.bf16.mxu0 0
  %2233 = vmatpush1.bf16.xpose.msra.mxu0 0
  %2234 = vmatprep.subr.bf16.mxu0 0
  %2235 = vmatpush1.bf16.xpose.msra.mxu0 0
  %2236 = vmatprep.subr.bf16.mxu0 0
  %2237 = vmatpush1.bf16.xpose.msra.mxu0 0
  %2238 = vmatprep.subr.bf16.mxu0 0
  %2239 = vmatpush1.bf16.xpose.msra.mxu0 0
  %2240 = vmatprep.subr.bf16.mxu0 0
  %2241 = vmatpush1.bf16.xpose.msra.mxu0 0
  %2242 = vmatprep.subr.bf16.mxu0 0
  %2243 = vmatpush1.bf16.xpose.msra.mxu0 0
  %2244 = vmatprep.subr.bf16.mxu0 0
  %2245 = vmatpush1.bf16.xpose.msra.mxu0 0
  %2246 = vmatprep.subr.bf16.mxu0 0
  %2247 = vmatpush1.bf16.xpose.msra.mxu0 0
  %2248 = vmatprep.subr.bf16.mxu0 0
  %2249 = vmatpush1.bf16.xpose.msra.mxu0 0
  %2250 = vmatprep.subr.bf16.mxu0 0
  %2251 = vmatpush1.bf16.xpose.msra.mxu0 0
  %2252 = vmatprep.subr.bf16.mxu0 0
  %2253 = vmatpush1.bf16.xpose.msra.mxu0 0
  %2254 = vmatprep.subr.bf16.mxu0 0
  %2255 = vmatpush1.bf16.xpose.msra.mxu0 0
  %2256 = vmatprep.subr.bf16.mxu0 0
  %2257 = vmatpush1.bf16.xpose.msra.mxu0 0
  %2258 = vmatprep.subr.bf16.mxu0 0
  %2259 = vmatpush1.bf16.xpose.msra.mxu0 0
  %2260 = vmatprep.mubr.bf16.mxu0 0
  %2261 = vmatmul.mubr.bf16.gmra.mrb[0].mxu0 %v2223
  %v2262 = vpop.f32.mrb[0].mxu0
  %v2263 = vadd.f32 0.0, %v2262
  %v2264 = vpop.f32.mrb[0].mxu0
  %v2265 = vpop.f32.mrb[0].mxu0
  %v2266 = vadd.f32 0.0, %v2265
  %v2267 = vpop.f32.mrb[0].mxu0
  %2268 = vdwg.mxu0
  %v2269 = vmul.f32 %v2263, 0.17677669
  %v2270 = vmul.f32 %v2266, 0.17677669
  %v2271 = vsel %vm341, %v2269, -inf
  %2272 = vmax.xlane.f32.xlu0 %v2271
  %v2273 = vpop.xlane.xlu0 %2272
  %v2274 = vsel %vm341, %v2270, -inf
  %2275 = vmax.xlane.f32.xlu0 %v2274
  %v2276 = vpop.xlane.xlu0 %2275
  %v2277 = vsub.f32 %v2269, %v2273
  %v2278 = vsub.f32 %v2270, %v2276
  %v2279 = vmul.f32 %v2277, 1.442695
  %v2280 = vpow.pop %v2279
  %v2281 = vmul.f32 %v2278, 1.442695
  %v2282 = vpow.pop %v2281
  %v2283 = vsel %vm341, %v2280, 0.0
  %2284 = vadd.xlane.f32.xlu0 %v2283
  %v2285 = vpop.xlane.xlu0 %2284
  %v2286 = vsel %vm341, %v2282, 0.0
  %2287 = vadd.xlane.f32.xlu0 %v2286
  %v2288 = vpop.xlane.xlu0 %2287
  %v2289 = vrcp.pop %v2285
  %v2290 = vrcp.pop %v2288
  %v2291 = vmul.f32 %v2280, %v2289
  %v2292 = vmul.f32 %v2282, %v2290
  %v2293 = vpack.c.bf16 %v2292, %v2291
  %2294 = vrot.lane.b32.xlu0 %v2047, 96
  %v2295 = vpop.permute.xlu0 %2294
  %v2298 = vsel %vm341, %v2293, 0
  %2300 = vmatprep.subr.bf16.mxu0 0
  %2301 = vmatpush1.bf16.msra.mxu0 %v2295
  %2302 = vmatprep.subr.bf16.mxu0 0
  %2303 = vmatpush1.bf16.msra.mxu0 0
  %2304 = vmatprep.subr.bf16.mxu0 0
  %2305 = vmatpush1.bf16.msra.mxu0 0
  %2306 = vmatprep.subr.bf16.mxu0 0
  %2307 = vmatpush1.bf16.msra.mxu0 0
  %2308 = vmatprep.subr.bf16.mxu0 0
  %2309 = vmatpush1.bf16.msra.mxu0 0
  %2310 = vmatprep.subr.bf16.mxu0 0
  %2311 = vmatpush1.bf16.msra.mxu0 0
  %2312 = vmatprep.subr.bf16.mxu0 0
  %2313 = vmatpush1.bf16.msra.mxu0 0
  %2314 = vmatprep.subr.bf16.mxu0 0
  %2315 = vmatpush1.bf16.msra.mxu0 0
  %2316 = vmatprep.subr.bf16.mxu0 0
  %2317 = vmatpush1.bf16.msra.mxu0 0
  %2318 = vmatprep.subr.bf16.mxu0 0
  %2319 = vmatpush1.bf16.msra.mxu0 0
  %2320 = vmatprep.subr.bf16.mxu0 0
  %2321 = vmatpush1.bf16.msra.mxu0 0
  %2322 = vmatprep.subr.bf16.mxu0 0
  %2323 = vmatpush1.bf16.msra.mxu0 0
  %2324 = vmatprep.subr.bf16.mxu0 0
  %2325 = vmatpush1.bf16.msra.mxu0 0
  %2326 = vmatprep.subr.bf16.mxu0 0
  %2327 = vmatpush1.bf16.msra.mxu0 0
  %2328 = vmatprep.subr.bf16.mxu0 0
  %2329 = vmatpush1.bf16.msra.mxu0 0
  %2330 = vmatprep.subr.bf16.mxu0 0
  %2331 = vmatpush1.bf16.msra.mxu0 0
  %2332 = vmatprep.mubr.bf16.mxu0 0
  %2333 = vmatmul.mubr.bf16.gmra.mrb[0].mxu0 %v2298
  %v2334 = vpop.f32.mrb[0].mxu0
  %v2335 = vadd.f32 0.0, %v2334
  %v2336 = vpop.f32.mrb[0].mxu0
  %v2337 = vpop.f32.mrb[0].mxu0
  %v2338 = vadd.f32 0.0, %v2337
  %v2339 = vpop.f32.mrb[0].mxu0
  %2340 = vdwg.mxu0
  %2341 = vrot.lane.b32.xlu0 %v1973, 80
  %v2342 = vpop.permute.xlu0 %2341
  %2343 = vrot.lane.b32.xlu0 %v1974, 80
  %v2344 = vpop.permute.xlu0 %2343
  %v2346 = vsel %vm341, %v2342, 0
  %v2349 = vsel %vm341, %v2344, 0
  %2351 = vmatprep.subr.bf16.mxu0 0
  %2352 = vmatpush1.bf16.xpose.msra.mxu0 %v2349
  %2353 = vmatprep.subr.bf16.mxu0 0
  %2354 = vmatpush1.bf16.xpose.msra.mxu0 0
  %2355 = vmatprep.subr.bf16.mxu0 0
  %2356 = vmatpush1.bf16.xpose.msra.mxu0 0
  %2357 = vmatprep.subr.bf16.mxu0 0
  %2358 = vmatpush1.bf16.xpose.msra.mxu0 0
  %2359 = vmatprep.subr.bf16.mxu0 0
  %2360 = vmatpush1.bf16.xpose.msra.mxu0 0
  %2361 = vmatprep.subr.bf16.mxu0 0
  %2362 = vmatpush1.bf16.xpose.msra.mxu0 0
  %2363 = vmatprep.subr.bf16.mxu0 0
  %2364 = vmatpush1.bf16.xpose.msra.mxu0 0
  %2365 = vmatprep.subr.bf16.mxu0 0
  %2366 = vmatpush1.bf16.xpose.msra.mxu0 0
  %2367 = vmatprep.subr.bf16.mxu0 0
  %2368 = vmatpush1.bf16.xpose.msra.mxu0 0
  %2369 = vmatprep.subr.bf16.mxu0 0
  %2370 = vmatpush1.bf16.xpose.msra.mxu0 0
  %2371 = vmatprep.subr.bf16.mxu0 0
  %2372 = vmatpush1.bf16.xpose.msra.mxu0 0
  %2373 = vmatprep.subr.bf16.mxu0 0
  %2374 = vmatpush1.bf16.xpose.msra.mxu0 0
  %2375 = vmatprep.subr.bf16.mxu0 0
  %2376 = vmatpush1.bf16.xpose.msra.mxu0 0
  %2377 = vmatprep.subr.bf16.mxu0 0
  %2378 = vmatpush1.bf16.xpose.msra.mxu0 0
  %2379 = vmatprep.subr.bf16.mxu0 0
  %2380 = vmatpush1.bf16.xpose.msra.mxu0 0
  %2381 = vmatprep.subr.bf16.mxu0 0
  %2382 = vmatpush1.bf16.xpose.msra.mxu0 0
  %2383 = vmatprep.mubr.bf16.mxu0 0
  %2384 = vmatmul.mubr.bf16.gmra.mrb[0].mxu0 %v2346
  %v2385 = vpop.f32.mrb[0].mxu0
  %v2386 = vadd.f32 0.0, %v2385
  %v2387 = vpop.f32.mrb[0].mxu0
  %v2388 = vpop.f32.mrb[0].mxu0
  %v2389 = vadd.f32 0.0, %v2388
  %v2390 = vpop.f32.mrb[0].mxu0
  %2391 = vdwg.mxu0
  %v2392 = vmul.f32 %v2386, 0.17677669
  %v2393 = vmul.f32 %v2389, 0.17677669
  %v2394 = vsel %vm341, %v2392, -inf
  %2395 = vmax.xlane.f32.xlu0 %v2394
  %v2396 = vpop.xlane.xlu0 %2395
  %v2397 = vsel %vm341, %v2393, -inf
  %2398 = vmax.xlane.f32.xlu0 %v2397
  %v2399 = vpop.xlane.xlu0 %2398
  %v2400 = vsub.f32 %v2392, %v2396
  %v2401 = vsub.f32 %v2393, %v2399
  %v2402 = vmul.f32 %v2400, 1.442695
  %v2403 = vpow.pop %v2402
  %v2404 = vmul.f32 %v2401, 1.442695
  %v2405 = vpow.pop %v2404
  %v2406 = vsel %vm341, %v2403, 0.0
  %2407 = vadd.xlane.f32.xlu0 %v2406
  %v2408 = vpop.xlane.xlu0 %2407
  %v2409 = vsel %vm341, %v2405, 0.0
  %2410 = vadd.xlane.f32.xlu0 %v2409
  %v2411 = vpop.xlane.xlu0 %2410
  %v2412 = vrcp.pop %v2408
  %v2413 = vrcp.pop %v2411
  %v2414 = vmul.f32 %v2403, %v2412
  %v2415 = vmul.f32 %v2405, %v2413
  %v2416 = vpack.c.bf16 %v2415, %v2414
  %2417 = vrot.lane.b32.xlu0 %v2047, 80
  %v2418 = vpop.permute.xlu0 %2417
  %v2421 = vsel %vm341, %v2416, 0
  %2423 = vmatprep.subr.bf16.mxu0 0
  %2424 = vmatpush1.bf16.msra.mxu0 %v2418
  %2425 = vmatprep.subr.bf16.mxu0 0
  %2426 = vmatpush1.bf16.msra.mxu0 0
  %2427 = vmatprep.subr.bf16.mxu0 0
  %2428 = vmatpush1.bf16.msra.mxu0 0
  %2429 = vmatprep.subr.bf16.mxu0 0
  %2430 = vmatpush1.bf16.msra.mxu0 0
  %2431 = vmatprep.subr.bf16.mxu0 0
  %2432 = vmatpush1.bf16.msra.mxu0 0
  %2433 = vmatprep.subr.bf16.mxu0 0
  %2434 = vmatpush1.bf16.msra.mxu0 0
  %2435 = vmatprep.subr.bf16.mxu0 0
  %2436 = vmatpush1.bf16.msra.mxu0 0
  %2437 = vmatprep.subr.bf16.mxu0 0
  %2438 = vmatpush1.bf16.msra.mxu0 0
  %2439 = vmatprep.subr.bf16.mxu0 0
  %2440 = vmatpush1.bf16.msra.mxu0 0
  %2441 = vmatprep.subr.bf16.mxu0 0
  %2442 = vmatpush1.bf16.msra.mxu0 0
  %2443 = vmatprep.subr.bf16.mxu0 0
  %2444 = vmatpush1.bf16.msra.mxu0 0
  %2445 = vmatprep.subr.bf16.mxu0 0
  %2446 = vmatpush1.bf16.msra.mxu0 0
  %2447 = vmatprep.subr.bf16.mxu0 0
  %2448 = vmatpush1.bf16.msra.mxu0 0
  %2449 = vmatprep.subr.bf16.mxu0 0
  %2450 = vmatpush1.bf16.msra.mxu0 0
  %2451 = vmatprep.subr.bf16.mxu0 0
  %2452 = vmatpush1.bf16.msra.mxu0 0
  %2453 = vmatprep.subr.bf16.mxu0 0
  %2454 = vmatpush1.bf16.msra.mxu0 0
  %2455 = vmatprep.mubr.bf16.mxu0 0
  %2456 = vmatmul.mubr.bf16.gmra.mrb[0].mxu0 %v2421
  %v2457 = vpop.f32.mrb[0].mxu0
  %v2458 = vadd.f32 0.0, %v2457
  %v2459 = vpop.f32.mrb[0].mxu0
  %v2460 = vpop.f32.mrb[0].mxu0
  %v2461 = vadd.f32 0.0, %v2460
  %v2462 = vpop.f32.mrb[0].mxu0
  %2463 = vdwg.mxu0
  %2466 = vrot.lane.b32.xlu0 %v2212, 16
  %v2467 = vpop.permute.xlu0 %2466
  %2468 = vrot.lane.b32.xlu0 %v2215, 16
  %v2469 = vpop.permute.xlu0 %2468
  %2474 = vrot.lane.b32.xlu0 %v2335, 32
  %v2475 = vpop.permute.xlu0 %2474
  %2476 = vrot.lane.b32.xlu0 %v2338, 32
  %v2477 = vpop.permute.xlu0 %2476
  %2482 = vrot.lane.b32.xlu0 %v2458, 48
  %v2483 = vpop.permute.xlu0 %2482
  %2484 = vrot.lane.b32.xlu0 %v2461, 48
  %v2485 = vpop.permute.xlu0 %2484
  %v2488 = vsel %vm341, %v2086, %v2467
  %v2489 = vsel %vm341, %v2089, %v2469
  %v2490 = vsel %vm159, %v2488, %v2475
  %v2491 = vsel %vm159, %v2489, %v2477
  %v2492 = vsel %vm859, %v2490, %v2483
  %v2493 = vsel %vm859, %v2491, %v2485
  %v2494 = vpack.c.bf16 %v1842, %v1839
  %v2495 = vpack.c.bf16 %v1906, %v1903
  %v2497 = vsel %vm341, %v2494, 0
  %v2500 = vsel %vm341, %v2495, 0
  %2502 = vmatprep.subr.bf16.mxu0 0
  %2503 = vmatpush1.bf16.xpose.msra.mxu0 %v2500
  %2504 = vmatprep.subr.bf16.mxu0 0
  %2505 = vmatpush1.bf16.xpose.msra.mxu0 0
  %2506 = vmatprep.subr.bf16.mxu0 0
  %2507 = vmatpush1.bf16.xpose.msra.mxu0 0
  %2508 = vmatprep.subr.bf16.mxu0 0
  %2509 = vmatpush1.bf16.xpose.msra.mxu0 0
  %2510 = vmatprep.subr.bf16.mxu0 0
  %2511 = vmatpush1.bf16.xpose.msra.mxu0 0
  %2512 = vmatprep.subr.bf16.mxu0 0
  %2513 = vmatpush1.bf16.xpose.msra.mxu0 0
  %2514 = vmatprep.subr.bf16.mxu0 0
  %2515 = vmatpush1.bf16.xpose.msra.mxu0 0
  %2516 = vmatprep.subr.bf16.mxu0 0
  %2517 = vmatpush1.bf16.xpose.msra.mxu0 0
  %2518 = vmatprep.subr.bf16.mxu0 0
  %2519 = vmatpush1.bf16.xpose.msra.mxu0 0
  %2520 = vmatprep.subr.bf16.mxu0 0
  %2521 = vmatpush1.bf16.xpose.msra.mxu0 0
  %2522 = vmatprep.subr.bf16.mxu0 0
  %2523 = vmatpush1.bf16.xpose.msra.mxu0 0
  %2524 = vmatprep.subr.bf16.mxu0 0
  %2525 = vmatpush1.bf16.xpose.msra.mxu0 0
  %2526 = vmatprep.subr.bf16.mxu0 0
  %2527 = vmatpush1.bf16.xpose.msra.mxu0 0
  %2528 = vmatprep.subr.bf16.mxu0 0
  %2529 = vmatpush1.bf16.xpose.msra.mxu0 0
  %2530 = vmatprep.subr.bf16.mxu0 0
  %2531 = vmatpush1.bf16.xpose.msra.mxu0 0
  %2532 = vmatprep.subr.bf16.mxu0 0
  %2533 = vmatpush1.bf16.xpose.msra.mxu0 0
  %2534 = vmatprep.mubr.bf16.mxu0 0
  %2535 = vmatmul.mubr.bf16.gmra.mrb[0].mxu0 %v2497
  %v2536 = vpop.f32.mrb[0].mxu0
  %v2537 = vadd.f32 0.0, %v2536
  %v2538 = vpop.f32.mrb[0].mxu0
  %v2539 = vpop.f32.mrb[0].mxu0
  %v2540 = vadd.f32 0.0, %v2539
  %v2541 = vpop.f32.mrb[0].mxu0
  %2542 = vdwg.mxu0
  %v2543 = vmul.f32 %v2537, 0.17677669
  %v2544 = vmul.f32 %v2540, 0.17677669
  %v2545 = vsel %vm341, %v2543, -inf
  %2546 = vmax.xlane.f32.xlu0 %v2545
  %v2547 = vpop.xlane.xlu0 %2546
  %v2548 = vsel %vm341, %v2544, -inf
  %2549 = vmax.xlane.f32.xlu0 %v2548
  %v2550 = vpop.xlane.xlu0 %2549
  %v2551 = vsub.f32 %v2543, %v2547
  %v2552 = vsub.f32 %v2544, %v2550
  %v2553 = vmul.f32 %v2551, 1.442695
  %v2554 = vpow.pop %v2553
  %v2555 = vmul.f32 %v2552, 1.442695
  %v2556 = vpow.pop %v2555
  %v2557 = vsel %vm341, %v2554, 0.0
  %2558 = vadd.xlane.f32.xlu0 %v2557
  %v2559 = vpop.xlane.xlu0 %2558
  %v2560 = vsel %vm341, %v2556, 0.0
  %2561 = vadd.xlane.f32.xlu0 %v2560
  %v2562 = vpop.xlane.xlu0 %2561
  %v2563 = vrcp.pop %v2559
  %v2564 = vrcp.pop %v2562
  %v2565 = vmul.f32 %v2554, %v2563
  %v2566 = vmul.f32 %v2556, %v2564
  %v2567 = vpack.c.bf16 %v2566, %v2565
  %v2568 = vpack.c.bf16 %v1970, %v1967
  %v2570 = vsel %vm341, %v2567, 0
  %2572 = vmatprep.subr.bf16.mxu0 0
  %2573 = vmatpush1.bf16.msra.mxu0 %v2568
  %2574 = vmatprep.subr.bf16.mxu0 0
  %2575 = vmatpush1.bf16.msra.mxu0 0
  %2576 = vmatprep.subr.bf16.mxu0 0
  %2577 = vmatpush1.bf16.msra.mxu0 0
  %2578 = vmatprep.subr.bf16.mxu0 0
  %2579 = vmatpush1.bf16.msra.mxu0 0
  %2580 = vmatprep.subr.bf16.mxu0 0
  %2581 = vmatpush1.bf16.msra.mxu0 0
  %2582 = vmatprep.subr.bf16.mxu0 0
  %2583 = vmatpush1.bf16.msra.mxu0 0
  %2584 = vmatprep.subr.bf16.mxu0 0
  %2585 = vmatpush1.bf16.msra.mxu0 0
  %2586 = vmatprep.subr.bf16.mxu0 0
  %2587 = vmatpush1.bf16.msra.mxu0 0
  %2588 = vmatprep.subr.bf16.mxu0 0
  %2589 = vmatpush1.bf16.msra.mxu0 0
  %2590 = vmatprep.subr.bf16.mxu0 0
  %2591 = vmatpush1.bf16.msra.mxu0 0
  %2592 = vmatprep.subr.bf16.mxu0 0
  %2593 = vmatpush1.bf16.msra.mxu0 0
  %2594 = vmatprep.subr.bf16.mxu0 0
  %2595 = vmatpush1.bf16.msra.mxu0 0
  %2596 = vmatprep.subr.bf16.mxu0 0
  %2597 = vmatpush1.bf16.msra.mxu0 0
  %2598 = vmatprep.subr.bf16.mxu0 0
  %2599 = vmatpush1.bf16.msra.mxu0 0
  %2600 = vmatprep.subr.bf16.mxu0 0
  %2601 = vmatpush1.bf16.msra.mxu0 0
  %2602 = vmatprep.subr.bf16.mxu0 0
  %2603 = vmatpush1.bf16.msra.mxu0 0
  %2604 = vmatprep.mubr.bf16.mxu0 0
  %2605 = vmatmul.mubr.bf16.gmra.mrb[0].mxu0 %v2570
  %v2606 = vpop.f32.mrb[0].mxu0
  %v2607 = vadd.f32 0.0, %v2606
  %v2608 = vpop.f32.mrb[0].mxu0
  %v2609 = vpop.f32.mrb[0].mxu0
  %v2610 = vadd.f32 0.0, %v2609
  %v2611 = vpop.f32.mrb[0].mxu0
  %2612 = vdwg.mxu0
  %2614 = vrot.lane.b32.xlu0 %v2494, 112
  %v2615 = vpop.permute.xlu0 %2614
  %2617 = vrot.lane.b32.xlu0 %v2495, 112
  %v2618 = vpop.permute.xlu0 %2617
  %v2620 = vsel %vm341, %v2615, 0
  %v2623 = vsel %vm341, %v2618, 0
  %2625 = vmatprep.subr.bf16.mxu0 0
  %2626 = vmatpush1.bf16.xpose.msra.mxu0 %v2623
  %2627 = vmatprep.subr.bf16.mxu0 0
  %2628 = vmatpush1.bf16.xpose.msra.mxu0 0
  %2629 = vmatprep.subr.bf16.mxu0 0
  %2630 = vmatpush1.bf16.xpose.msra.mxu0 0
  %2631 = vmatprep.subr.bf16.mxu0 0
  %2632 = vmatpush1.bf16.xpose.msra.mxu0 0
  %2633 = vmatprep.subr.bf16.mxu0 0
  %2634 = vmatpush1.bf16.xpose.msra.mxu0 0
  %2635 = vmatprep.subr.bf16.mxu0 0
  %2636 = vmatpush1.bf16.xpose.msra.mxu0 0
  %2637 = vmatprep.subr.bf16.mxu0 0
  %2638 = vmatpush1.bf16.xpose.msra.mxu0 0
  %2639 = vmatprep.subr.bf16.mxu0 0
  %2640 = vmatpush1.bf16.xpose.msra.mxu0 0
  %2641 = vmatprep.subr.bf16.mxu0 0
  %2642 = vmatpush1.bf16.xpose.msra.mxu0 0
  %2643 = vmatprep.subr.bf16.mxu0 0
  %2644 = vmatpush1.bf16.xpose.msra.mxu0 0
  %2645 = vmatprep.subr.bf16.mxu0 0
  %2646 = vmatpush1.bf16.xpose.msra.mxu0 0
  %2647 = vmatprep.subr.bf16.mxu0 0
  %2648 = vmatpush1.bf16.xpose.msra.mxu0 0
  %2649 = vmatprep.subr.bf16.mxu0 0
  %2650 = vmatpush1.bf16.xpose.msra.mxu0 0
  %2651 = vmatprep.subr.bf16.mxu0 0
  %2652 = vmatpush1.bf16.xpose.msra.mxu0 0
  %2653 = vmatprep.subr.bf16.mxu0 0
  %2654 = vmatpush1.bf16.xpose.msra.mxu0 0
  %2655 = vmatprep.subr.bf16.mxu0 0
  %2656 = vmatpush1.bf16.xpose.msra.mxu0 0
  %2657 = vmatprep.mubr.bf16.mxu0 0
  %2658 = vmatmul.mubr.bf16.gmra.mrb[0].mxu0 %v2620
  %v2659 = vpop.f32.mrb[0].mxu0
  %v2660 = vadd.f32 0.0, %v2659
  %v2661 = vpop.f32.mrb[0].mxu0
  %v2662 = vpop.f32.mrb[0].mxu0
  %v2663 = vadd.f32 0.0, %v2662
  %v2664 = vpop.f32.mrb[0].mxu0
  %2665 = vdwg.mxu0
  %v2666 = vmul.f32 %v2660, 0.17677669
  %v2667 = vmul.f32 %v2663, 0.17677669
  %v2668 = vsel %vm341, %v2666, -inf
  %2669 = vmax.xlane.f32.xlu0 %v2668
  %v2670 = vpop.xlane.xlu0 %2669
  %v2671 = vsel %vm341, %v2667, -inf
  %2672 = vmax.xlane.f32.xlu0 %v2671
  %v2673 = vpop.xlane.xlu0 %2672
  %v2674 = vsub.f32 %v2666, %v2670
  %v2675 = vsub.f32 %v2667, %v2673
  %v2676 = vmul.f32 %v2674, 1.442695
  %v2677 = vpow.pop %v2676
  %v2678 = vmul.f32 %v2675, 1.442695
  %v2679 = vpow.pop %v2678
  %v2680 = vsel %vm341, %v2677, 0.0
  %2681 = vadd.xlane.f32.xlu0 %v2680
  %v2682 = vpop.xlane.xlu0 %2681
  %v2683 = vsel %vm341, %v2679, 0.0
  %2684 = vadd.xlane.f32.xlu0 %v2683
  %v2685 = vpop.xlane.xlu0 %2684
  %v2686 = vrcp.pop %v2682
  %v2687 = vrcp.pop %v2685
  %v2688 = vmul.f32 %v2677, %v2686
  %v2689 = vmul.f32 %v2679, %v2687
  %v2690 = vpack.c.bf16 %v2689, %v2688
  %2692 = vrot.lane.b32.xlu0 %v2568, 112
  %v2693 = vpop.permute.xlu0 %2692
  %v2696 = vsel %vm341, %v2690, 0
  %2698 = vmatprep.subr.bf16.mxu0 0
  %2699 = vmatpush1.bf16.msra.mxu0 %v2693
  %2700 = vmatprep.subr.bf16.mxu0 0
  %2701 = vmatpush1.bf16.msra.mxu0 0
  %2702 = vmatprep.subr.bf16.mxu0 0
  %2703 = vmatpush1.bf16.msra.mxu0 0
  %2704 = vmatprep.subr.bf16.mxu0 0
  %2705 = vmatpush1.bf16.msra.mxu0 0
  %2706 = vmatprep.subr.bf16.mxu0 0
  %2707 = vmatpush1.bf16.msra.mxu0 0
  %2708 = vmatprep.subr.bf16.mxu0 0
  %2709 = vmatpush1.bf16.msra.mxu0 0
  %2710 = vmatprep.subr.bf16.mxu0 0
  %2711 = vmatpush1.bf16.msra.mxu0 0
  %2712 = vmatprep.subr.bf16.mxu0 0
  %2713 = vmatpush1.bf16.msra.mxu0 0
  %2714 = vmatprep.subr.bf16.mxu0 0
  %2715 = vmatpush1.bf16.msra.mxu0 0
  %2716 = vmatprep.subr.bf16.mxu0 0
  %2717 = vmatpush1.bf16.msra.mxu0 0
  %2718 = vmatprep.subr.bf16.mxu0 0
  %2719 = vmatpush1.bf16.msra.mxu0 0
  %2720 = vmatprep.subr.bf16.mxu0 0
  %2721 = vmatpush1.bf16.msra.mxu0 0
  %2722 = vmatprep.subr.bf16.mxu0 0
  %2723 = vmatpush1.bf16.msra.mxu0 0
  %2724 = vmatprep.subr.bf16.mxu0 0
  %2725 = vmatpush1.bf16.msra.mxu0 0
  %2726 = vmatprep.subr.bf16.mxu0 0
  %2727 = vmatpush1.bf16.msra.mxu0 0
  %2728 = vmatprep.subr.bf16.mxu0 0
  %2729 = vmatpush1.bf16.msra.mxu0 0
  %2730 = vmatprep.mubr.bf16.mxu0 0
  %2731 = vmatmul.mubr.bf16.gmra.mrb[0].mxu0 %v2696
  %v2732 = vpop.f32.mrb[0].mxu0
  %v2733 = vadd.f32 0.0, %v2732
  %v2734 = vpop.f32.mrb[0].mxu0
  %v2735 = vpop.f32.mrb[0].mxu0
  %v2736 = vadd.f32 0.0, %v2735
  %v2737 = vpop.f32.mrb[0].mxu0
  %2738 = vdwg.mxu0
  %2739 = vrot.lane.b32.xlu0 %v2494, 96
  %v2740 = vpop.permute.xlu0 %2739
  %2741 = vrot.lane.b32.xlu0 %v2495, 96
  %v2742 = vpop.permute.xlu0 %2741
  %v2744 = vsel %vm341, %v2740, 0
  %v2747 = vsel %vm341, %v2742, 0
  %2749 = vmatprep.subr.bf16.mxu0 0
  %2750 = vmatpush1.bf16.xpose.msra.mxu0 %v2747
  %2751 = vmatprep.subr.bf16.mxu0 0
  %2752 = vmatpush1.bf16.xpose.msra.mxu0 0
  %2753 = vmatprep.subr.bf16.mxu0 0
  %2754 = vmatpush1.bf16.xpose.msra.mxu0 0
  %2755 = vmatprep.subr.bf16.mxu0 0
  %2756 = vmatpush1.bf16.xpose.msra.mxu0 0
  %2757 = vmatprep.subr.bf16.mxu0 0
  %2758 = vmatpush1.bf16.xpose.msra.mxu0 0
  %2759 = vmatprep.subr.bf16.mxu0 0
  %2760 = vmatpush1.bf16.xpose.msra.mxu0 0
  %2761 = vmatprep.subr.bf16.mxu0 0
  %2762 = vmatpush1.bf16.xpose.msra.mxu0 0
  %2763 = vmatprep.subr.bf16.mxu0 0
  %2764 = vmatpush1.bf16.xpose.msra.mxu0 0
  %2765 = vmatprep.subr.bf16.mxu0 0
  %2766 = vmatpush1.bf16.xpose.msra.mxu0 0
  %2767 = vmatprep.subr.bf16.mxu0 0
  %2768 = vmatpush1.bf16.xpose.msra.mxu0 0
  %2769 = vmatprep.subr.bf16.mxu0 0
  %2770 = vmatpush1.bf16.xpose.msra.mxu0 0
  %2771 = vmatprep.subr.bf16.mxu0 0
  %2772 = vmatpush1.bf16.xpose.msra.mxu0 0
  %2773 = vmatprep.subr.bf16.mxu0 0
  %2774 = vmatpush1.bf16.xpose.msra.mxu0 0
  %2775 = vmatprep.subr.bf16.mxu0 0
  %2776 = vmatpush1.bf16.xpose.msra.mxu0 0
  %2777 = vmatprep.subr.bf16.mxu0 0
  %2778 = vmatpush1.bf16.xpose.msra.mxu0 0
  %2779 = vmatprep.subr.bf16.mxu0 0
  %2780 = vmatpush1.bf16.xpose.msra.mxu0 0
  %2781 = vmatprep.mubr.bf16.mxu0 0
  %2782 = vmatmul.mubr.bf16.gmra.mrb[0].mxu0 %v2744
  %v2783 = vpop.f32.mrb[0].mxu0
  %v2784 = vadd.f32 0.0, %v2783
  %v2785 = vpop.f32.mrb[0].mxu0
  %v2786 = vpop.f32.mrb[0].mxu0
  %v2787 = vadd.f32 0.0, %v2786
  %v2788 = vpop.f32.mrb[0].mxu0
  %2789 = vdwg.mxu0
  %v2790 = vmul.f32 %v2784, 0.17677669
  %v2791 = vmul.f32 %v2787, 0.17677669
  %v2792 = vsel %vm341, %v2790, -inf
  %2793 = vmax.xlane.f32.xlu0 %v2792
  %v2794 = vpop.xlane.xlu0 %2793
  %v2795 = vsel %vm341, %v2791, -inf
  %2796 = vmax.xlane.f32.xlu0 %v2795
  %v2797 = vpop.xlane.xlu0 %2796
  %v2798 = vsub.f32 %v2790, %v2794
  %v2799 = vsub.f32 %v2791, %v2797
  %v2800 = vmul.f32 %v2798, 1.442695
  %v2801 = vpow.pop %v2800
  %v2802 = vmul.f32 %v2799, 1.442695
  %v2803 = vpow.pop %v2802
  %v2804 = vsel %vm341, %v2801, 0.0
  %2805 = vadd.xlane.f32.xlu0 %v2804
  %v2806 = vpop.xlane.xlu0 %2805
  %v2807 = vsel %vm341, %v2803, 0.0
  %2808 = vadd.xlane.f32.xlu0 %v2807
  %v2809 = vpop.xlane.xlu0 %2808
  %v2810 = vrcp.pop %v2806
  %v2811 = vrcp.pop %v2809
  %v2812 = vmul.f32 %v2801, %v2810
  %v2813 = vmul.f32 %v2803, %v2811
  %v2814 = vpack.c.bf16 %v2813, %v2812
  %2815 = vrot.lane.b32.xlu0 %v2568, 96
  %v2816 = vpop.permute.xlu0 %2815
  %v2819 = vsel %vm341, %v2814, 0
  %2821 = vmatprep.subr.bf16.mxu0 0
  %2822 = vmatpush1.bf16.msra.mxu0 %v2816
  %2823 = vmatprep.subr.bf16.mxu0 0
  %2824 = vmatpush1.bf16.msra.mxu0 0
  %2825 = vmatprep.subr.bf16.mxu0 0
  %2826 = vmatpush1.bf16.msra.mxu0 0
  %2827 = vmatprep.subr.bf16.mxu0 0
  %2828 = vmatpush1.bf16.msra.mxu0 0
  %2829 = vmatprep.subr.bf16.mxu0 0
  %2830 = vmatpush1.bf16.msra.mxu0 0
  %2831 = vmatprep.subr.bf16.mxu0 0
  %2832 = vmatpush1.bf16.msra.mxu0 0
  %2833 = vmatprep.subr.bf16.mxu0 0
  %2834 = vmatpush1.bf16.msra.mxu0 0
  %2835 = vmatprep.subr.bf16.mxu0 0
  %2836 = vmatpush1.bf16.msra.mxu0 0
  %2837 = vmatprep.subr.bf16.mxu0 0
  %2838 = vmatpush1.bf16.msra.mxu0 0
  %2839 = vmatprep.subr.bf16.mxu0 0
  %2840 = vmatpush1.bf16.msra.mxu0 0
  %2841 = vmatprep.subr.bf16.mxu0 0
  %2842 = vmatpush1.bf16.msra.mxu0 0
  %2843 = vmatprep.subr.bf16.mxu0 0
  %2844 = vmatpush1.bf16.msra.mxu0 0
  %2845 = vmatprep.subr.bf16.mxu0 0
  %2846 = vmatpush1.bf16.msra.mxu0 0
  %2847 = vmatprep.subr.bf16.mxu0 0
  %2848 = vmatpush1.bf16.msra.mxu0 0
  %2849 = vmatprep.subr.bf16.mxu0 0
  %2850 = vmatpush1.bf16.msra.mxu0 0
  %2851 = vmatprep.subr.bf16.mxu0 0
  %2852 = vmatpush1.bf16.msra.mxu0 0
  %2853 = vmatprep.mubr.bf16.mxu0 0
  %2854 = vmatmul.mubr.bf16.gmra.mrb[0].mxu0 %v2819
  %v2855 = vpop.f32.mrb[0].mxu0
  %v2856 = vadd.f32 0.0, %v2855
  %v2857 = vpop.f32.mrb[0].mxu0
  %v2858 = vpop.f32.mrb[0].mxu0
  %v2859 = vadd.f32 0.0, %v2858
  %v2860 = vpop.f32.mrb[0].mxu0
  %2861 = vdwg.mxu0
  %2862 = vrot.lane.b32.xlu0 %v2494, 80
  %v2863 = vpop.permute.xlu0 %2862
  %2864 = vrot.lane.b32.xlu0 %v2495, 80
  %v2865 = vpop.permute.xlu0 %2864
  %v2867 = vsel %vm341, %v2863, 0
  %v2870 = vsel %vm341, %v2865, 0
  %2872 = vmatprep.subr.bf16.mxu0 0
  %2873 = vmatpush1.bf16.xpose.msra.mxu0 %v2870
  %2874 = vmatprep.subr.bf16.mxu0 0
  %2875 = vmatpush1.bf16.xpose.msra.mxu0 0
  %2876 = vmatprep.subr.bf16.mxu0 0
  %2877 = vmatpush1.bf16.xpose.msra.mxu0 0
  %2878 = vmatprep.subr.bf16.mxu0 0
  %2879 = vmatpush1.bf16.xpose.msra.mxu0 0
  %2880 = vmatprep.subr.bf16.mxu0 0
  %2881 = vmatpush1.bf16.xpose.msra.mxu0 0
  %2882 = vmatprep.subr.bf16.mxu0 0
  %2883 = vmatpush1.bf16.xpose.msra.mxu0 0
  %2884 = vmatprep.subr.bf16.mxu0 0
  %2885 = vmatpush1.bf16.xpose.msra.mxu0 0
  %2886 = vmatprep.subr.bf16.mxu0 0
  %2887 = vmatpush1.bf16.xpose.msra.mxu0 0
  %2888 = vmatprep.subr.bf16.mxu0 0
  %2889 = vmatpush1.bf16.xpose.msra.mxu0 0
  %2890 = vmatprep.subr.bf16.mxu0 0
  %2891 = vmatpush1.bf16.xpose.msra.mxu0 0
  %2892 = vmatprep.subr.bf16.mxu0 0
  %2893 = vmatpush1.bf16.xpose.msra.mxu0 0
  %2894 = vmatprep.subr.bf16.mxu0 0
  %2895 = vmatpush1.bf16.xpose.msra.mxu0 0
  %2896 = vmatprep.subr.bf16.mxu0 0
  %2897 = vmatpush1.bf16.xpose.msra.mxu0 0
  %2898 = vmatprep.subr.bf16.mxu0 0
  %2899 = vmatpush1.bf16.xpose.msra.mxu0 0
  %2900 = vmatprep.subr.bf16.mxu0 0
  %2901 = vmatpush1.bf16.xpose.msra.mxu0 0
  %2902 = vmatprep.subr.bf16.mxu0 0
  %2903 = vmatpush1.bf16.xpose.msra.mxu0 0
  %2904 = vmatprep.mubr.bf16.mxu0 0
  %2905 = vmatmul.mubr.bf16.gmra.mrb[0].mxu0 %v2867
  %v2906 = vpop.f32.mrb[0].mxu0
  %v2907 = vadd.f32 0.0, %v2906
  %v2908 = vpop.f32.mrb[0].mxu0
  %v2909 = vpop.f32.mrb[0].mxu0
  %v2910 = vadd.f32 0.0, %v2909
  %v2911 = vpop.f32.mrb[0].mxu0
  %2912 = vdwg.mxu0
  %v2913 = vmul.f32 %v2907, 0.17677669
  %v2914 = vmul.f32 %v2910, 0.17677669
  %v2915 = vsel %vm341, %v2913, -inf
  %2916 = vmax.xlane.f32.xlu0 %v2915
  %v2917 = vpop.xlane.xlu0 %2916
  %v2918 = vsel %vm341, %v2914, -inf
  %2919 = vmax.xlane.f32.xlu0 %v2918
  %v2920 = vpop.xlane.xlu0 %2919
  %v2921 = vsub.f32 %v2913, %v2917
  %v2922 = vsub.f32 %v2914, %v2920
  %v2923 = vmul.f32 %v2921, 1.442695
  %v2924 = vpow.pop %v2923
  %v2925 = vmul.f32 %v2922, 1.442695
  %v2926 = vpow.pop %v2925
  %v2927 = vsel %vm341, %v2924, 0.0
  %2928 = vadd.xlane.f32.xlu0 %v2927
  %v2929 = vpop.xlane.xlu0 %2928
  %v2930 = vsel %vm341, %v2926, 0.0
  %2931 = vadd.xlane.f32.xlu0 %v2930
  %v2932 = vpop.xlane.xlu0 %2931
  %v2933 = vrcp.pop %v2929
  %v2934 = vrcp.pop %v2932
  %v2935 = vmul.f32 %v2924, %v2933
  %v2936 = vmul.f32 %v2926, %v2934
  %v2937 = vpack.c.bf16 %v2936, %v2935
  %2938 = vrot.lane.b32.xlu0 %v2568, 80
  %v2939 = vpop.permute.xlu0 %2938
  %v2942 = vsel %vm341, %v2937, 0
  %2944 = vmatprep.subr.bf16.mxu0 0
  %2945 = vmatpush1.bf16.msra.mxu0 %v2939
  %2946 = vmatprep.subr.bf16.mxu0 0
  %2947 = vmatpush1.bf16.msra.mxu0 0
  %2948 = vmatprep.subr.bf16.mxu0 0
  %2949 = vmatpush1.bf16.msra.mxu0 0
  %2950 = vmatprep.subr.bf16.mxu0 0
  %2951 = vmatpush1.bf16.msra.mxu0 0
  %2952 = vmatprep.subr.bf16.mxu0 0
  %2953 = vmatpush1.bf16.msra.mxu0 0
  %2954 = vmatprep.subr.bf16.mxu0 0
  %2955 = vmatpush1.bf16.msra.mxu0 0
  %2956 = vmatprep.subr.bf16.mxu0 0
  %2957 = vmatpush1.bf16.msra.mxu0 0
  %2958 = vmatprep.subr.bf16.mxu0 0
  %2959 = vmatpush1.bf16.msra.mxu0 0
  %2960 = vmatprep.subr.bf16.mxu0 0
  %2961 = vmatpush1.bf16.msra.mxu0 0
  %2962 = vmatprep.subr.bf16.mxu0 0
  %2963 = vmatpush1.bf16.msra.mxu0 0
  %2964 = vmatprep.subr.bf16.mxu0 0
  %2965 = vmatpush1.bf16.msra.mxu0 0
  %2966 = vmatprep.subr.bf16.mxu0 0
  %2967 = vmatpush1.bf16.msra.mxu0 0
  %2968 = vmatprep.subr.bf16.mxu0 0
  %2969 = vmatpush1.bf16.msra.mxu0 0
  %2970 = vmatprep.subr.bf16.mxu0 0
  %2971 = vmatpush1.bf16.msra.mxu0 0
  %2972 = vmatprep.subr.bf16.mxu0 0
  %2973 = vmatpush1.bf16.msra.mxu0 0
  %2974 = vmatprep.subr.bf16.mxu0 0
  %2975 = vmatpush1.bf16.msra.mxu0 0
  %2976 = vmatprep.mubr.bf16.mxu0 0
  %2977 = vmatmul.mubr.bf16.gmra.mrb[0].mxu0 %v2942
  %v2978 = vpop.f32.mrb[0].mxu0
  %v2979 = vadd.f32 0.0, %v2978
  %v2980 = vpop.f32.mrb[0].mxu0
  %v2981 = vpop.f32.mrb[0].mxu0
  %v2982 = vadd.f32 0.0, %v2981
  %v2983 = vpop.f32.mrb[0].mxu0
  %2984 = vdwg.mxu0
  %2987 = vrot.lane.b32.xlu0 %v2733, 16
  %v2988 = vpop.permute.xlu0 %2987
  %2989 = vrot.lane.b32.xlu0 %v2736, 16
  %v2990 = vpop.permute.xlu0 %2989
  %2995 = vrot.lane.b32.xlu0 %v2856, 32
  %v2996 = vpop.permute.xlu0 %2995
  %2997 = vrot.lane.b32.xlu0 %v2859, 32
  %v2998 = vpop.permute.xlu0 %2997
  %3003 = vrot.lane.b32.xlu0 %v2979, 48
  %v3004 = vpop.permute.xlu0 %3003
  %3005 = vrot.lane.b32.xlu0 %v2982, 48
  %v3006 = vpop.permute.xlu0 %3005
  %v3009 = vsel %vm341, %v2607, %v2988
  %v3010 = vsel %vm341, %v2610, %v2990
  %v3011 = vsel %vm159, %v3009, %v2996
  %v3012 = vsel %vm159, %v3010, %v2998
  %v3013 = vsel %vm859, %v3011, %v3004
  %v3014 = vsel %vm859, %v3012, %v3006
  %s3015 = scalar_lea.vmem %s9, 64
  %v3016 = vld [vmem:[%s3015] sm:$0xff]
  %v3017 = vld [vmem:[%s3015 + $0x8] sm:$0xff]
  %v3018 = vld [vmem:[%s3015 + $0x10] sm:$0xff]
  %v3019 = vld [vmem:[%s3015 + $0x18] sm:$0xff]
  %v3020 = vld [vmem:[%s3015 + $0x20] sm:$0xff]
  %v3021 = vld [vmem:[%s3015 + $0x28] sm:$0xff]
  %v3022 = vld [vmem:[%s3015 + $0x30] sm:$0xff]
  %v3023 = vld [vmem:[%s3015 + $0x38] sm:$0xff]
  %v3024 = vpack.c.bf16 %v2493, %v2492
  %v3025 = vpack.c.bf16 %v3014, %v3013
  %v3026 = vpack.c.bf16 %v3017, %v3016
  %v3027 = vpack.c.bf16 %v3019, %v3018
  %v3028 = vpack.c.bf16 %v3021, %v3020
  %v3029 = vpack.c.bf16 %v3023, %v3022
  %s3030 = scalar_lea.vmem %s10, 1
  %v3031 = vld [vmem:[%s3030] sm:$0x1]
  %v3033 = vlaneseq
  %v3034 = vshrl.u32 %v3033, 7
  %v3035 = vsub.s32 0, %v3034
  %v3036 = vrot.slane %v3031, %v3035
  %v3039 = vsel %vm1404, %v3024, 0
  %v3042 = vsel %vm1404, %v3025, 0
  %3044 = vmatprep.subr.bf16.mxu0 0
  %3045 = vmatpush1.bf16.msra.mxu0 %v3026
  %3046 = vmatprep.subr.bf16.mxu0 0
  %3047 = vmatpush1.bf16.msra.mxu0 %v3027
  %3048 = vmatprep.subr.bf16.mxu0 0
  %3049 = vmatpush1.bf16.msra.mxu0 %v3028
  %3050 = vmatprep.subr.bf16.mxu0 0
  %3051 = vmatpush1.bf16.msra.mxu0 %v3029
  %3052 = vmatprep.subr.bf16.mxu0 0
  %3053 = vmatpush1.bf16.msra.mxu0 0
  %3054 = vmatprep.subr.bf16.mxu0 0
  %3055 = vmatpush1.bf16.msra.mxu0 0
  %3056 = vmatprep.subr.bf16.mxu0 0
  %3057 = vmatpush1.bf16.msra.mxu0 0
  %3058 = vmatprep.subr.bf16.mxu0 0
  %3059 = vmatpush1.bf16.msra.mxu0 0
  %3060 = vmatprep.subr.bf16.mxu0 0
  %3061 = vmatpush1.bf16.msra.mxu0 0
  %3062 = vmatprep.subr.bf16.mxu0 0
  %3063 = vmatpush1.bf16.msra.mxu0 0
  %3064 = vmatprep.subr.bf16.mxu0 0
  %3065 = vmatpush1.bf16.msra.mxu0 0
  %3066 = vmatprep.subr.bf16.mxu0 0
  %3067 = vmatpush1.bf16.msra.mxu0 0
  %3068 = vmatprep.subr.bf16.mxu0 0
  %3069 = vmatpush1.bf16.msra.mxu0 0
  %3070 = vmatprep.subr.bf16.mxu0 0
  %3071 = vmatpush1.bf16.msra.mxu0 0
  %3072 = vmatprep.subr.bf16.mxu0 0
  %3073 = vmatpush1.bf16.msra.mxu0 0
  %3074 = vmatprep.subr.bf16.mxu0 0
  %3075 = vmatpush1.bf16.msra.mxu0 0
  %3076 = vmatprep.mubr.bf16.mxu0 0
  %3077 = vmatmul.mubr.bf16.gmra.mrb[0].mxu0 %v3039
  %v3078 = vpop.f32.mrb[0].mxu0
  %v3079 = vadd.f32 %v3036, %v3078
  %v3080 = vpop.f32.mrb[0].mxu0
  %v3081 = vpop.f32.mrb[0].mxu0
  %v3082 = vadd.f32 %v3036, %v3081
  %v3083 = vpop.f32.mrb[0].mxu0
  %3084 = vmatprep.mubr.bf16.mxu0 0
  %3085 = vmatmul.mubr.bf16.gmra.mrb[0].mxu0 %v3042
  %v3086 = vpop.f32.mrb[0].mxu0
  %v3087 = vadd.f32 %v3036, %v3086
  %v3088 = vpop.f32.mrb[0].mxu0
  %v3089 = vpop.f32.mrb[0].mxu0
  %v3090 = vadd.f32 %v3036, %v3089
  %v3091 = vpop.f32.mrb[0].mxu0
  %3092 = vdwg.mxu0
  %v3093 = vadd.f32 %v1769, %v3079
  %v3094 = vadd.f32 %v1770, %v3082
  %v3095 = vadd.f32 %v1771, %v3087
  %v3096 = vadd.f32 %v1772, %v3090
  %s3097 = scalar_lea.vmem %s11, 1
  %v3098 = vld [vmem:[%s3097] sm:$0x1]
  %s3099 = scalar_lea.vmem %s12, 1
  %v3100 = vld [vmem:[%s3099] sm:$0x1]
  %v3101 = vsel %vm159, %v3093, 0.0
  %3102 = vadd.xlane.f32.xlu0 %v3101
  %v3103 = vpop.xlane.xlu0 %3102
  %v3104 = vsel %vm159, %v3094, 0.0
  %3105 = vadd.xlane.f32.xlu0 %v3104
  %v3106 = vpop.xlane.xlu0 %3105
  %v3107 = vsel %vm159, %v3095, 0.0
  %3108 = vadd.xlane.f32.xlu0 %v3107
  %v3109 = vpop.xlane.xlu0 %3108
  %v3110 = vsel %vm159, %v3096, 0.0
  %3111 = vadd.xlane.f32.xlu0 %v3110
  %v3112 = vpop.xlane.xlu0 %3111
  %v3113 = vmul.f32 %v3103, %v1478
  %v3114 = vmul.f32 %v3106, %v1478
  %v3115 = vmul.f32 %v3109, %v1478
  %v3116 = vmul.f32 %v3112, %v1478
  %v3117 = vsub.f32 %v3093, %v3113
  %v3118 = vsub.f32 %v3094, %v3114
  %v3119 = vsub.f32 %v3095, %v3115
  %v3120 = vsub.f32 %v3096, %v3116
  %v3121 = vmul.f32 %v3117, %v3117
  %v3122 = vmul.f32 %v3118, %v3118
  %v3123 = vmul.f32 %v3119, %v3119
  %v3124 = vmul.f32 %v3120, %v3120
  %v3125 = vsel %vm159, %v3121, 0.0
  %3126 = vadd.xlane.f32.xlu0 %v3125
  %v3127 = vpop.xlane.xlu0 %3126
  %v3128 = vsel %vm159, %v3122, 0.0
  %3129 = vadd.xlane.f32.xlu0 %v3128
  %v3130 = vpop.xlane.xlu0 %3129
  %v3131 = vsel %vm159, %v3123, 0.0
  %3132 = vadd.xlane.f32.xlu0 %v3131
  %v3133 = vpop.xlane.xlu0 %3132
  %v3134 = vsel %vm159, %v3124, 0.0
  %3135 = vadd.xlane.f32.xlu0 %v3134
  %v3136 = vpop.xlane.xlu0 %3135
  %v3137 = vmul.f32 %v3127, %v1478
  %v3138 = vmul.f32 %v3130, %v1478
  %v3139 = vmul.f32 %v3133, %v1478
  %v3140 = vmul.f32 %v3136, %v1478
  %v3141 = vadd.f32 %v3137, 1e-05
  %v3142 = vadd.f32 %v3138, 1e-05
  %v3143 = vadd.f32 %v3139, 1e-05
  %v3144 = vadd.f32 %v3140, 1e-05
  %v3145 = vrsqrt.pop %v3141
  %v3146 = vrsqrt.pop %v3142
  %v3147 = vrsqrt.pop %v3143
  %v3148 = vrsqrt.pop %v3144
  %v3149 = vmul.f32 %v3117, %v3145
  %v3150 = vmul.f32 %v3118, %v3146
  %v3151 = vmul.f32 %v3119, %v3147
  %v3152 = vmul.f32 %v3120, %v3148
  %v3154 = vlaneseq
  %v3155 = vshrl.u32 %v3154, 7
  %v3156 = vsub.s32 0, %v3155
  %v3157 = vrot.slane %v3098, %v3156
  %v3159 = vmul.f32 %v3149, %v3157
  %v3160 = vmul.f32 %v3150, %v3157
  %v3161 = vmul.f32 %v3151, %v3157
  %v3162 = vmul.f32 %v3152, %v3157
  %v3164 = vlaneseq
  %v3165 = vshrl.u32 %v3164, 7
  %v3166 = vsub.s32 0, %v3165
  %v3167 = vrot.slane %v3100, %v3166
  %v3169 = vadd.f32 %v3159, %v3167
  %v3170 = vadd.f32 %v3160, %v3167
  %v3171 = vadd.f32 %v3161, %v3167
  %v3172 = vadd.f32 %v3162, %v3167
  %s3173 = scalar_lea.vmem %s13, 32
  %v3174 = vld [vmem:[%s3173] sm:$0xff]
  %v3175 = vld [vmem:[%s3173 + $0x8] sm:$0xff]
  %v3176 = vld [vmem:[%s3173 + $0x10] sm:$0xff]
  %v3177 = vld [vmem:[%s3173 + $0x18] sm:$0xff]
  %v3178 = vpack.c.bf16 %v3170, %v3169
  %v3179 = vpack.c.bf16 %v3172, %v3171
  %v3180 = vpack.c.bf16 %v3175, %v3174
  %v3181 = vpack.c.bf16 %v3177, %v3176
  %s3182 = scalar_lea.vmem %s14, 1
  %v3183 = vld [vmem:[%s3182] sm:$0x1]
  %v3185 = vlaneseq
  %v3186 = vshrl.u32 %v3185, 7
  %v3187 = vsub.s32 0, %v3186
  %v3188 = vrot.slane %v3183, %v3187
  %v3191 = vsel %vm159, %v3178, 0
  %v3194 = vsel %vm159, %v3179, 0
  %3196 = vmatprep.subr.bf16.mxu0 0
  %3197 = vmatpush1.bf16.msra.mxu0 %v3180
  %3198 = vmatprep.subr.bf16.mxu0 0
  %3199 = vmatpush1.bf16.msra.mxu0 %v3181
  %3200 = vmatprep.subr.bf16.mxu0 0
  %3201 = vmatpush1.bf16.msra.mxu0 0
  %3202 = vmatprep.subr.bf16.mxu0 0
  %3203 = vmatpush1.bf16.msra.mxu0 0
  %3204 = vmatprep.subr.bf16.mxu0 0
  %3205 = vmatpush1.bf16.msra.mxu0 0
  %3206 = vmatprep.subr.bf16.mxu0 0
  %3207 = vmatpush1.bf16.msra.mxu0 0
  %3208 = vmatprep.subr.bf16.mxu0 0
  %3209 = vmatpush1.bf16.msra.mxu0 0
  %3210 = vmatprep.subr.bf16.mxu0 0
  %3211 = vmatpush1.bf16.msra.mxu0 0
  %3212 = vmatprep.subr.bf16.mxu0 0
  %3213 = vmatpush1.bf16.msra.mxu0 0
  %3214 = vmatprep.subr.bf16.mxu0 0
  %3215 = vmatpush1.bf16.msra.mxu0 0
  %3216 = vmatprep.subr.bf16.mxu0 0
  %3217 = vmatpush1.bf16.msra.mxu0 0
  %3218 = vmatprep.subr.bf16.mxu0 0
  %3219 = vmatpush1.bf16.msra.mxu0 0
  %3220 = vmatprep.subr.bf16.mxu0 0
  %3221 = vmatpush1.bf16.msra.mxu0 0
  %3222 = vmatprep.subr.bf16.mxu0 0
  %3223 = vmatpush1.bf16.msra.mxu0 0
  %3224 = vmatprep.subr.bf16.mxu0 0
  %3225 = vmatpush1.bf16.msra.mxu0 0
  %3226 = vmatprep.subr.bf16.mxu0 0
  %3227 = vmatpush1.bf16.msra.mxu0 0
  %3228 = vmatprep.mubr.bf16.mxu0 0
  %3229 = vmatmul.mubr.bf16.gmra.mrb[0].mxu0 %v3191
  %v3230 = vpop.f32.mrb[0].mxu0
  %v3231 = vadd.f32 %v3188, %v3230
  %v3232 = vpop.f32.mrb[0].mxu0
  %v3233 = vpop.f32.mrb[0].mxu0
  %v3234 = vadd.f32 %v3188, %v3233
  %v3235 = vpop.f32.mrb[0].mxu0
  %3236 = vmatprep.mubr.bf16.mxu0 0
  %3237 = vmatmul.mubr.bf16.gmra.mrb[0].mxu0 %v3194
  %v3238 = vpop.f32.mrb[0].mxu0
  %v3239 = vadd.f32 %v3188, %v3238
  %v3240 = vpop.f32.mrb[0].mxu0
  %v3241 = vpop.f32.mrb[0].mxu0
  %v3242 = vadd.f32 %v3188, %v3241
  %v3243 = vpop.f32.mrb[0].mxu0
  %3244 = vdwg.mxu0
  %v3245 = vmax.f32 %v3231, 0.0
  %v3246 = vmax.f32 %v3234, 0.0
  %v3247 = vmax.f32 %v3239, 0.0
  %v3248 = vmax.f32 %v3242, 0.0
  %s3249 = scalar_lea.vmem %s15, 128
  %v3250 = vld [vmem:[%s3249] sm:$0xff]
  %v3251 = vld [vmem:[%s3249 + $0x8] sm:$0xff]
  %v3252 = vld [vmem:[%s3249 + $0x10] sm:$0xff]
  %v3253 = vld [vmem:[%s3249 + $0x18] sm:$0xff]
  %v3254 = vld [vmem:[%s3249 + $0x20] sm:$0xff]
  %v3255 = vld [vmem:[%s3249 + $0x28] sm:$0xff]
  %v3256 = vld [vmem:[%s3249 + $0x30] sm:$0xff]
  %v3257 = vld [vmem:[%s3249 + $0x38] sm:$0xff]
  %v3258 = vld [vmem:[%s3249 + $0x40] sm:$0xff]
  %v3259 = vld [vmem:[%s3249 + $0x48] sm:$0xff]
  %v3260 = vld [vmem:[%s3249 + $0x50] sm:$0xff]
  %v3261 = vld [vmem:[%s3249 + $0x58] sm:$0xff]
  %v3262 = vld [vmem:[%s3249 + $0x60] sm:$0xff]
  %v3263 = vld [vmem:[%s3249 + $0x68] sm:$0xff]
  %v3264 = vld [vmem:[%s3249 + $0x70] sm:$0xff]
  %v3265 = vld [vmem:[%s3249 + $0x78] sm:$0xff]
  %v3266 = vpack.c.bf16 %v3246, %v3245
  %v3267 = vpack.c.bf16 %v3248, %v3247
  %v3268 = vpack.c.bf16 %v3251, %v3250
  %v3269 = vpack.c.bf16 %v3253, %v3252
  %v3270 = vpack.c.bf16 %v3255, %v3254
  %v3271 = vpack.c.bf16 %v3257, %v3256
  %v3272 = vpack.c.bf16 %v3259, %v3258
  %v3273 = vpack.c.bf16 %v3261, %v3260
  %v3274 = vpack.c.bf16 %v3263, %v3262
  %v3275 = vpack.c.bf16 %v3265, %v3264
  %s3276 = scalar_lea.vmem %s16, 1
  %v3277 = vld [vmem:[%s3276] sm:$0x1]
  %v3279 = vlaneseq
  %v3280 = vshrl.u32 %v3279, 7
  %v3281 = vsub.s32 0, %v3280
  %v3282 = vrot.slane %v3277, %v3281
  %3284 = vmatprep.subr.bf16.mxu0 0
  %3285 = vmatpush1.bf16.msra.mxu0 %v3268
  %3286 = vmatprep.subr.bf16.mxu0 0
  %3287 = vmatpush1.bf16.msra.mxu0 %v3269
  %3288 = vmatprep.subr.bf16.mxu0 0
  %3289 = vmatpush1.bf16.msra.mxu0 %v3270
  %3290 = vmatprep.subr.bf16.mxu0 0
  %3291 = vmatpush1.bf16.msra.mxu0 %v3271
  %3292 = vmatprep.subr.bf16.mxu0 0
  %3293 = vmatpush1.bf16.msra.mxu0 %v3272
  %3294 = vmatprep.subr.bf16.mxu0 0
  %3295 = vmatpush1.bf16.msra.mxu0 %v3273
  %3296 = vmatprep.subr.bf16.mxu0 0
  %3297 = vmatpush1.bf16.msra.mxu0 %v3274
  %3298 = vmatprep.subr.bf16.mxu0 0
  %3299 = vmatpush1.bf16.msra.mxu0 %v3275
  %3300 = vmatprep.subr.bf16.mxu0 0
  %3301 = vmatpush1.bf16.msra.mxu0 0
  %3302 = vmatprep.subr.bf16.mxu0 0
  %3303 = vmatpush1.bf16.msra.mxu0 0
  %3304 = vmatprep.subr.bf16.mxu0 0
  %3305 = vmatpush1.bf16.msra.mxu0 0
  %3306 = vmatprep.subr.bf16.mxu0 0
  %3307 = vmatpush1.bf16.msra.mxu0 0
  %3308 = vmatprep.subr.bf16.mxu0 0
  %3309 = vmatpush1.bf16.msra.mxu0 0
  %3310 = vmatprep.subr.bf16.mxu0 0
  %3311 = vmatpush1.bf16.msra.mxu0 0
  %3312 = vmatprep.subr.bf16.mxu0 0
  %3313 = vmatpush1.bf16.msra.mxu0 0
  %3314 = vmatprep.subr.bf16.mxu0 0
  %3315 = vmatpush1.bf16.msra.mxu0 0
  %3316 = vmatprep.mubr.bf16.mxu0 0
  %3317 = vmatmul.mubr.bf16.gmra.mrb[0].mxu0 %v3266
  %v3318 = vpop.f32.mrb[0].mxu0
  %v3319 = vadd.f32 %v3282, %v3318
  %v3320 = vpop.f32.mrb[0].mxu0
  %v3321 = vpop.f32.mrb[0].mxu0
  %v3322 = vadd.f32 %v3282, %v3321
  %v3323 = vpop.f32.mrb[0].mxu0
  %3324 = vmatprep.mubr.bf16.mxu0 0
  %3325 = vmatmul.mubr.bf16.gmra.mrb[0].mxu0 %v3267
  %v3326 = vpop.f32.mrb[0].mxu0
  %v3327 = vadd.f32 %v3282, %v3326
  %v3328 = vpop.f32.mrb[0].mxu0
  %v3329 = vpop.f32.mrb[0].mxu0
  %v3330 = vadd.f32 %v3282, %v3329
  %v3331 = vpop.f32.mrb[0].mxu0
  %3332 = vdwg.mxu0
  %v3333 = vadd.f32 %v3169, %v3319
  %v3334 = vadd.f32 %v3170, %v3322
  %v3335 = vadd.f32 %v3171, %v3327
  %v3336 = vadd.f32 %v3172, %v3330
  %s3337 = scalar_lea.vmem %s17, 1
  %v3338 = vld [vmem:[%s3337] sm:$0x1]
  %s3339 = scalar_lea.vmem %s18, 1
  %v3340 = vld [vmem:[%s3339] sm:$0x1]
  %v3341 = vsel %vm159, %v3333, 0.0
  %3342 = vadd.xlane.f32.xlu0 %v3341
  %v3343 = vpop.xlane.xlu0 %3342
  %v3344 = vsel %vm159, %v3334, 0.0
  %3345 = vadd.xlane.f32.xlu0 %v3344
  %v3346 = vpop.xlane.xlu0 %3345
  %v3347 = vsel %vm159, %v3335, 0.0
  %3348 = vadd.xlane.f32.xlu0 %v3347
  %v3349 = vpop.xlane.xlu0 %3348
  %v3350 = vsel %vm159, %v3336, 0.0
  %3351 = vadd.xlane.f32.xlu0 %v3350
  %v3352 = vpop.xlane.xlu0 %3351
  %v3353 = vmul.f32 %v3343, %v1478
  %v3354 = vmul.f32 %v3346, %v1478
  %v3355 = vmul.f32 %v3349, %v1478
  %v3356 = vmul.f32 %v3352, %v1478
  %v3357 = vsub.f32 %v3333, %v3353
  %v3358 = vsub.f32 %v3334, %v3354
  %v3359 = vsub.f32 %v3335, %v3355
  %v3360 = vsub.f32 %v3336, %v3356
  %v3361 = vmul.f32 %v3357, %v3357
  %v3362 = vmul.f32 %v3358, %v3358
  %v3363 = vmul.f32 %v3359, %v3359
  %v3364 = vmul.f32 %v3360, %v3360
  %v3365 = vsel %vm159, %v3361, 0.0
  %3366 = vadd.xlane.f32.xlu0 %v3365
  %v3367 = vpop.xlane.xlu0 %3366
  %v3368 = vsel %vm159, %v3362, 0.0
  %3369 = vadd.xlane.f32.xlu0 %v3368
  %v3370 = vpop.xlane.xlu0 %3369
  %v3371 = vsel %vm159, %v3363, 0.0
  %3372 = vadd.xlane.f32.xlu0 %v3371
  %v3373 = vpop.xlane.xlu0 %3372
  %v3374 = vsel %vm159, %v3364, 0.0
  %3375 = vadd.xlane.f32.xlu0 %v3374
  %v3376 = vpop.xlane.xlu0 %3375
  %v3377 = vmul.f32 %v3367, %v1478
  %v3378 = vmul.f32 %v3370, %v1478
  %v3379 = vmul.f32 %v3373, %v1478
  %v3380 = vmul.f32 %v3376, %v1478
  %v3381 = vadd.f32 %v3377, 1e-05
  %v3382 = vadd.f32 %v3378, 1e-05
  %v3383 = vadd.f32 %v3379, 1e-05
  %v3384 = vadd.f32 %v3380, 1e-05
  %v3385 = vrsqrt.pop %v3381
  %v3386 = vrsqrt.pop %v3382
  %v3387 = vrsqrt.pop %v3383
  %v3388 = vrsqrt.pop %v3384
  %v3389 = vmul.f32 %v3357, %v3385
  %v3390 = vmul.f32 %v3358, %v3386
  %v3391 = vmul.f32 %v3359, %v3387
  %v3392 = vmul.f32 %v3360, %v3388
  %v3394 = vlaneseq
  %v3395 = vshrl.u32 %v3394, 7
  %v3396 = vsub.s32 0, %v3395
  %v3397 = vrot.slane %v3338, %v3396
  %v3399 = vmul.f32 %v3389, %v3397
  %v3400 = vmul.f32 %v3390, %v3397
  %v3401 = vmul.f32 %v3391, %v3397
  %v3402 = vmul.f32 %v3392, %v3397
  %v3404 = vlaneseq
  %v3405 = vshrl.u32 %v3404, 7
  %v3406 = vsub.s32 0, %v3405
  %v3407 = vrot.slane %v3340, %v3406
  %v3409 = vadd.f32 %v3399, %v3407
  %v3410 = vadd.f32 %v3400, %v3407
  %v3411 = vadd.f32 %v3401, %v3407
  %v3412 = vadd.f32 %v3402, %v3407
  %v3413 = vld [vmem:[%s19] sm:$0xff]
  %v3414 = vld [vmem:[%s19 + $0x8] sm:$0xff]
  %v3415 = vld [vmem:[%s19 + $0x10] sm:$0xff]
  %v3416 = vld [vmem:[%s19 + $0x18] sm:$0xff]
  %v3417 = vpack.c.bf16 %v3410, %v3409
  %v3418 = vpack.c.bf16 %v3412, %v3411
  %v3419 = vpack.c.bf16 %v3414, %v3413
  %v3420 = vpack.c.bf16 %v3416, %v3415
  %v3421 = vld [vmem:[%s20] sm:$0x1]
  %v3423 = vlaneseq
  %v3424 = vshrl.u32 %v3423, 7
  %v3425 = vsub.s32 0, %v3424
  %v3426 = vrot.slane %v3421, %v3425
  %v3429 = vsel %vm159, %v3417, 0
  %v3432 = vsel %vm159, %v3418, 0
  %3434 = vmatprep.subr.bf16.mxu0 0
  %3435 = vmatpush1.bf16.msra.mxu0 %v3419
  %3436 = vmatprep.subr.bf16.mxu0 0
  %3437 = vmatpush1.bf16.msra.mxu0 %v3420
  %3438 = vmatprep.subr.bf16.mxu0 0
  %3439 = vmatpush1.bf16.msra.mxu0 0
  %3440 = vmatprep.subr.bf16.mxu0 0
  %3441 = vmatpush1.bf16.msra.mxu0 0
  %3442 = vmatprep.subr.bf16.mxu0 0
  %3443 = vmatpush1.bf16.msra.mxu0 0
  %3444 = vmatprep.subr.bf16.mxu0 0
  %3445 = vmatpush1.bf16.msra.mxu0 0
  %3446 = vmatprep.subr.bf16.mxu0 0
  %3447 = vmatpush1.bf16.msra.mxu0 0
  %3448 = vmatprep.subr.bf16.mxu0 0
  %3449 = vmatpush1.bf16.msra.mxu0 0
  %3450 = vmatprep.subr.bf16.mxu0 0
  %3451 = vmatpush1.bf16.msra.mxu0 0
  %3452 = vmatprep.subr.bf16.mxu0 0
  %3453 = vmatpush1.bf16.msra.mxu0 0
  %3454 = vmatprep.subr.bf16.mxu0 0
  %3455 = vmatpush1.bf16.msra.mxu0 0
  %3456 = vmatprep.subr.bf16.mxu0 0
  %3457 = vmatpush1.bf16.msra.mxu0 0
  %3458 = vmatprep.subr.bf16.mxu0 0
  %3459 = vmatpush1.bf16.msra.mxu0 0
  %3460 = vmatprep.subr.bf16.mxu0 0
  %3461 = vmatpush1.bf16.msra.mxu0 0
  %3462 = vmatprep.subr.bf16.mxu0 0
  %3463 = vmatpush1.bf16.msra.mxu0 0
  %3464 = vmatprep.subr.bf16.mxu0 0
  %3465 = vmatpush1.bf16.msra.mxu0 0
  %3466 = vmatprep.mubr.bf16.mxu0 0
  %3467 = vmatmul.mubr.bf16.gmra.mrb[0].mxu0 %v3429
  %v3468 = vpop.f32.mrb[0].mxu0
  %v3469 = vadd.f32 %v3426, %v3468
  %v3470 = vpop.f32.mrb[0].mxu0
  %v3471 = vpop.f32.mrb[0].mxu0
  %v3472 = vadd.f32 %v3426, %v3471
  %v3473 = vpop.f32.mrb[0].mxu0
  %3474 = vmatprep.mubr.bf16.mxu0 0
  %3475 = vmatmul.mubr.bf16.gmra.mrb[0].mxu0 %v3432
  %v3476 = vpop.f32.mrb[0].mxu0
  %v3477 = vadd.f32 %v3426, %v3476
  %v3478 = vpop.f32.mrb[0].mxu0
  %v3479 = vpop.f32.mrb[0].mxu0
  %v3480 = vadd.f32 %v3426, %v3479
  %v3481 = vpop.f32.mrb[0].mxu0
  %3482 = vdwg.mxu0
  %3483 = vst.msk [vmem:[%s21] sm:$0xff] %vm84, %v3469
  %3484 = vst.msk [vmem:[%s21 + $0x8] sm:$0xff] %vm84, %v3472
  %s3485 = scalar_lea.vmem %s21, 16
  %3486 = vst.msk [vmem:[%s3485] sm:$0xff] %vm84, %v3477
  %3487 = vst.msk [vmem:[%s3485 + $0x8] sm:$0xff] %vm84, %v3480
  // Predicated region
  $region86: #{tpu_custom_call.1} parent=0 // pred_check
    _
  $region87: #{tpu_custom_call.1} parent=0 // pred_check_branch
    %3489 = sbr.rel (0) target = $region89
  $region88: #{tpu_custom_call.1} parent=0 // pred_region
    _
  $region89: #{tpu_custom_call.1} parent=0 // pred_fallthru
    _
  // Predicated region
  $region90: #{tpu_custom_call.1} parent=0 // pred_check
    _
  $region91: #{tpu_custom_call.1} parent=0 // pred_check_branch
    %3491 = sbr.rel (0) target = $region93
  $region92: #{tpu_custom_call.1} parent=0 // pred_region
    _
  $region93: #{tpu_custom_call.1} parent=0 // pred_fallthru
    _

</llo_original>
